<compile_context>
chip_gen: v7x
topology: tpu7x:2x2x1
jax: 0.10.0
libtpu: 0.0.40
codegen_flags: <defaults>
</compile_context>

<pallas_src>
import math

import numpy as np
import jax
import jax.numpy as jnp
from jax import lax
from jax.experimental import pallas as pl
from jax.experimental.pallas import tpu as pltpu  # TPU backend (Mosaic)

# ---------------- configuration (small synthetic shapes) ----------------
B = 2            # batch
L = 8            # sequence length ("length" arg of Discriminator)
D_IN = 4         # d_in
D_MODEL = 32     # d_model
D_HIDDEN = 64    # d_hidden
D_K = 8          # d_k
D_V = 8          # d_v (must equal d_k for the reference module's shapes)
HEADS = 4
NUM_LAYER = 2
LN_EPS = 1e-5    # Python float (never a jnp constant -> nothing captured)
BL = B * L


def _layer_norm(y, gamma, beta):
    mu = jnp.mean(y, axis=-1, keepdims=True)
    var = jnp.mean((y - mu) ** 2, axis=-1, keepdims=True)
    return (y - mu) * lax.rsqrt(var + LN_EPS) * gamma + beta


# ---------------- the Pallas kernel (single invocation, no grid) ----------------
def discriminator_kernel(x_ref, bpos_ref, maskadd_ref, w_emb_ref,
                         wqo_ref, w1_ref, b1_ref, w2_ref, vecs_ref,
                         lin1_w_ref, lin1_b_ref, selw_ref, lin2_b_ref,
                         out_ref):
    x = x_ref[...]                 # (B*L, d_in)   batch flattened onto sublanes
    mask_add = maskadd_ref[...]    # (B*L, B*L)    0 = allowed, -1e30 = blocked

    # Embedding linear + (bias + positional encoding) precombined outside.
    h = jnp.dot(x, w_emb_ref[...], preferred_element_type=jnp.float32) + bpos_ref[...]

    inv_sqrt_l = 1.0 / math.sqrt(L)   # Python literal, folds into the mul

    for layer in range(NUM_LAYER):       # static unroll (weight index is free)
        wq = wqo_ref[layer, 0]            # (D_MODEL, H*D_K)
        wo = wqo_ref[layer, 1]            # (H*D_V, D_MODEL)
        bq = vecs_ref[layer, 0]           # (1, D_MODEL)
        bo = vecs_ref[layer, 1]
        b2 = vecs_ref[layer, 2]
        g1 = vecs_ref[layer, 3]
        be1 = vecs_ref[layer, 4]
        g2 = vecs_ref[layer, 5]
        be2 = vecs_ref[layer, 6]

        # -------- multi-head self attention (W_q reused for q/k/v) --------
        residual = h
        qkv = jnp.dot(h, wq, preferred_element_type=jnp.float32) + bq   # (BL, H*D_K)
        # Fold the 1/sqrt(L) score scale into the query side once per layer
        # (keys/values must stay unscaled because q == k == v here).
        q_scaled = qkv * inv_sqrt_l

        heads = []
        for hd in range(HEADS):
            lo = hd * D_K
            qh = qkv[:, lo:lo + D_K]        # keys / values for this head (BL, d_k)
            qs = q_scaled[:, lo:lo + D_K]   # pre-scaled queries          (BL, d_k)
            # scores = q @ k^T / sqrt(L) + additive (block-diag + missing) mask
            s = lax.dot_general(qs, qh, (((1,), (1,)), ((), ())),
                                preferred_element_type=jnp.float32) + mask_add
            s = s - jnp.max(s, axis=-1, keepdims=True)
            p = jnp.exp(s)
            p = p * pl.reciprocal(jnp.sum(p, axis=-1, keepdims=True), approx=True)
            heads.append(jnp.dot(p, qh, preferred_element_type=jnp.float32))

        attn = jnp.concatenate(heads, axis=-1)                    # (BL, H*D_V)
        attn = jnp.dot(attn, wo, preferred_element_type=jnp.float32) + bo
        h = _layer_norm(attn + residual, g1, be1)

        # -------- positionwise feed forward --------
        residual = h
        ff = jnp.maximum(
            jnp.dot(h, w1_ref[layer], preferred_element_type=jnp.float32)
            + b1_ref[layer], 0.0)
        ff = jnp.dot(ff, w2_ref[layer], preferred_element_type=jnp.float32) + b2
        h = _layer_norm(ff + residual, g2, be2)

    # -------- discriminator head --------
    o1 = jnp.maximum(
        jnp.dot(h, lin1_w_ref[...], preferred_element_type=jnp.float32)
        + lin1_b_ref[...], 0.0)                                   # (BL, 1)
    # lin2 folded into a block-diagonal selection-weight matrix (B, B*L):
    # out[b] = sum_l lin2_w[l] * o1[b*L + l] + lin2_b
    out_ref[...] = (jnp.dot(selw_ref[...], o1, preferred_element_type=jnp.float32)
                    + lin2_b_ref[...])


# ---------------- wrapper ----------------
def discriminator_forward(x, missing_mask, params, pos):
    # ---- glue (cheap, runs as plain XLA outside the kernel) ----
    x_flat = x.reshape(BL, D_IN)

    # embedding bias + positional encoding, tiled over batch: (B*L, D_MODEL)
    bpos = jnp.tile(pos, (B, 1)) + params["b_emb"]

    # Additive attention mask, block-diagonal over batch and masking missing
    # KEY positions: 0.0 where (same batch AND key observed), else -1e30.
    key_obs = missing_mask[:, :, 0]                                  # (B, L)
    eye = jnp.eye(B, dtype=jnp.float32)
    allowed = eye[:, None, :, None] * key_obs[None, None, :, :]      # (B,1,B,L)
    allowed = jnp.broadcast_to(allowed, (B, L, B, L)).reshape(BL, BL)
    mask_add = (allowed - 1.0) * 1e30                                # (BL, BL)

    # Pack per-layer weights (works because HEADS*D_K == HEADS*D_V == D_MODEL).
    wqo = jnp.stack([params["wq"], params["wo"]], axis=1)            # (NL,2,DM,DM)
    vecs = jnp.stack([params["bq"], params["bo"], params["b2"],
                      params["g1"], params["be1"], params["g2"],
                      params["be2"]], axis=1)                        # (NL,7,1,DM)

    # Fold lin2 weight into a (B, B*L) block-diagonal selection matrix.
    selw = jnp.kron(jnp.eye(B, dtype=jnp.float32), params["lin2_w"].T)  # (B, B*L)

    out = pl.pallas_call(
        discriminator_kernel,
        out_shape=jax.ShapeDtypeStruct((B, 1), jnp.float32),
        compiler_params=pltpu.CompilerParams(vmem_limit_bytes=16 << 20),
    )(x_flat, bpos, mask_add, params["w_emb"], wqo,
      params["w1"], params["b1"], params["w2"], vecs,
      params["lin1_w"], params["lin1_b"], selw, params["lin2_b"])
    return out


# ---------------- deterministic parameter init ----------------
def make_params(key):
    keys = jax.random.split(key, 14)

    def u(k, shape, fan_in):
        bound = 1.0 / (fan_in ** 0.5)
        return jax.random.uniform(k, shape, jnp.float32, -bound, bound)

    return dict(
        w_emb=u(keys[0], (D_IN, D_MODEL), D_IN),
        b_emb=u(keys[1], (1, D_MODEL), D_IN),
        wq=u(keys[2], (NUM_LAYER, D_MODEL, HEADS * D_K), D_MODEL),
        bq=u(keys[3], (NUM_LAYER, 1, HEADS * D_K), D_MODEL),
        wo=u(keys[4], (NUM_LAYER, HEADS * D_V, D_MODEL), HEADS * D_V),
        bo=u(keys[5], (NUM_LAYER, 1, D_MODEL), HEADS * D_V),
        w1=u(keys[6], (NUM_LAYER, D_MODEL, D_HIDDEN), D_MODEL),
        b1=u(keys[7], (NUM_LAYER, 1, D_HIDDEN), D_MODEL),
        w2=u(keys[8], (NUM_LAYER, D_HIDDEN, D_MODEL), D_HIDDEN),
        b2=u(keys[9], (NUM_LAYER, 1, D_MODEL), D_HIDDEN),
        g1=jnp.ones((NUM_LAYER, 1, D_MODEL), jnp.float32),
        be1=jnp.zeros((NUM_LAYER, 1, D_MODEL), jnp.float32),
        g2=jnp.ones((NUM_LAYER, 1, D_MODEL), jnp.float32),
        be2=jnp.zeros((NUM_LAYER, 1, D_MODEL), jnp.float32),
        lin1_w=u(keys[10], (D_MODEL, 1), D_MODEL),
        lin1_b=u(keys[11], (1, 1), D_MODEL),
        lin2_w=u(keys[12], (L, 1), L),
        lin2_b=u(keys[13], (1, 1), L),
    )


def position_encoding(length, d_model):
    pos = jnp.arange(length, dtype=jnp.float32)[:, None]
    even = jnp.arange(0, d_model, 2, dtype=jnp.float32) / d_model
    odd = jnp.arange(1, d_model, 2, dtype=jnp.float32) / d_model
    enc = jnp.zeros((length, d_model), jnp.float32)
    enc = enc.at[:, 0::2].set(jnp.sin(pos / jnp.power(10000.0, even)))
    enc = enc.at[:, 1::2].set(jnp.cos(pos / jnp.power(10000.0, odd)))
    return enc


# ---------------- pure-JAX reference (for correctness check) ----------------
def ref_forward(x, missing_mask, params, pos):
    hp = lax.Precision.HIGHEST
    h = jnp.einsum('bli,io->blo', x, params["w_emb"], precision=hp) \
        + params["b_emb"] + pos[None]
    key_missing = missing_mask[..., 0] == 0.0                       # (B, L)
    scale = 1.0 / np.sqrt(L)
    for layer in range(NUM_LAYER):
        residual = h
        qkv = jnp.einsum('bld,dk->blk', h, params["wq"][layer], precision=hp) \
            + params["bq"][layer]
        heads = []
        for hd in range(HEADS):
            qh = qkv[..., hd * D_K:(hd + 1) * D_K]
            s = jnp.einsum('bid,bjd->bij', qh, qh, precision=hp) * scale
            s = jnp.where(key_missing[:, None, :], -1e30, s)
            p = jax.nn.softmax(s, axis=-1)
            heads.append(jnp.einsum('bij,bjd->bid', p, qh, precision=hp))
        attn = jnp.concatenate(heads, axis=-1)
        attn = jnp.einsum('blk,kd->bld', attn, params["wo"][layer], precision=hp) \
            + params["bo"][layer]
        h = _layer_norm(attn + residual, params["g1"][layer], params["be1"][layer])
        residual = h
        ff = jnp.maximum(
            jnp.einsum('bld,dh->blh', h, params["w1"][layer], precision=hp)
            + params["b1"][layer], 0.0)
        ff = jnp.einsum('blh,hd->bld', ff, params["w2"][layer], precision=hp) \
            + params["b2"][layer]
        h = _layer_norm(ff + residual, params["g2"][layer], params["be2"][layer])
    o1 = jnp.maximum(
        jnp.einsum('bld,do->blo', h, params["lin1_w"], precision=hp)
        + params["lin1_b"], 0.0)
    out = jnp.einsum('bl,lo->bo', o1[..., 0], params["lin2_w"], precision=hp) \
        + params["lin2_b"]
    return out


if __name__ == "__main__":
    key = jax.random.PRNGKey(0)
    kx, km, kp = jax.random.split(key, 3)

    x = jax.random.normal(kx, (B, L, D_IN), jnp.float32)
    missing_mask = (jax.random.uniform(km, (B, L, 1)) > 0.3).astype(jnp.float32)
    missing_mask = missing_mask.at[:, 0, :].set(1.0)   # >=1 observed key per sample

    params = make_params(kp)
    pos = position_encoding(L, D_MODEL)

    out = discriminator_forward(x, missing_mask, params, pos)
    out = jax.block_until_ready(out)

    ref = ref_forward(x, missing_mask, params, pos)
    assert out.shape == (B, 1)
    np.testing.assert_allclose(np.asarray(out), np.asarray(ref), rtol=1e-2, atol=1e-2)
    print("KERNEL_OK")
</pallas_src>

<mosaic_0001>
module attributes {stable_mosaic.version = 11 : i64} {
  func.func @discriminator_kernel(%arg0: memref<16x4xf32, #tpu.memory_space<vmem>>, %arg1: memref<16x32xf32, #tpu.memory_space<vmem>>, %arg2: memref<16x16xf32, #tpu.memory_space<vmem>>, %arg3: memref<4x32xf32, #tpu.memory_space<vmem>>, %arg4: memref<2x2x32x32xf32, #tpu.memory_space<vmem>>, %arg5: memref<2x32x64xf32, #tpu.memory_space<vmem>>, %arg6: memref<2x1x64xf32, #tpu.memory_space<vmem>>, %arg7: memref<2x64x32xf32, #tpu.memory_space<vmem>>, %arg8: memref<2x7x1x32xf32, #tpu.memory_space<vmem>>, %arg9: memref<32x1xf32, #tpu.memory_space<vmem>>, %arg10: memref<1x1xf32, #tpu.memory_space<vmem>>, %arg11: memref<2x16xf32, #tpu.memory_space<vmem>>, %arg12: memref<1x1xf32, #tpu.memory_space<vmem>>, %arg13: memref<2x1xf32, #tpu.memory_space<vmem>>) attributes {dimension_semantics = [], scalar_prefetch = 0 : i64, scratch_operands = 0 : i64, tpu.core_type = #tpu.core_type<tc>} {
    %c0 = arith.constant 0 : index
    %c0_0 = arith.constant 0 : index
    %0 = vector.load %arg0[%c0, %c0_0] : memref<16x4xf32, #tpu.memory_space<vmem>>, vector<16x4xf32>
    %c0_1 = arith.constant 0 : index
    %c0_2 = arith.constant 0 : index
    %1 = vector.load %arg2[%c0_1, %c0_2] : memref<16x16xf32, #tpu.memory_space<vmem>>, vector<16x16xf32>
    %c0_3 = arith.constant 0 : index
    %c0_4 = arith.constant 0 : index
    %2 = vector.load %arg3[%c0_3, %c0_4] : memref<4x32xf32, #tpu.memory_space<vmem>>, vector<4x32xf32>
    %cst = arith.constant dense<0.000000e+00> : vector<16x32xf32>
    %3 = tpu.matmul %0, %2, %cst {dimension_numbers = #tpu.dot_dimension_numbers<[1], [0], [0], [1], [0, 0, 1, 1], [], []>} : vector<16x4xf32>, vector<4x32xf32>, vector<16x32xf32> -> vector<16x32xf32>
    %c0_5 = arith.constant 0 : index
    %c0_6 = arith.constant 0 : index
    %4 = vector.load %arg1[%c0_5, %c0_6] : memref<16x32xf32, #tpu.memory_space<vmem>>, vector<16x32xf32>
    %5 = arith.addf %3, %4 : vector<16x32xf32>
    %c0_7 = arith.constant 0 : index
    %c0_8 = arith.constant 0 : index
    %c0_9 = arith.constant 0 : index
    %c0_10 = arith.constant 0 : index
    %6 = vector.load %arg4[%c0_7, %c0_8, %c0_9, %c0_10] : memref<2x2x32x32xf32, #tpu.memory_space<vmem>>, vector<1x1x32x32xf32>
    %7 = vector.shape_cast %6 : vector<1x1x32x32xf32> to vector<32x32xf32>
    %c0_11 = arith.constant 0 : index
    %c1 = arith.constant 1 : index
    %c0_12 = arith.constant 0 : index
    %c0_13 = arith.constant 0 : index
    %8 = vector.load %arg4[%c0_11, %c1, %c0_12, %c0_13] : memref<2x2x32x32xf32, #tpu.memory_space<vmem>>, vector<1x1x32x32xf32>
    %9 = vector.shape_cast %8 : vector<1x1x32x32xf32> to vector<32x32xf32>
    %c0_14 = arith.constant 0 : index
    %c0_15 = arith.constant 0 : index
    %c0_16 = arith.constant 0 : index
    %c0_17 = arith.constant 0 : index
    %10 = vector.load %arg8[%c0_14, %c0_15, %c0_16, %c0_17] : memref<2x7x1x32xf32, #tpu.memory_space<vmem>>, vector<1x1x1x32xf32>
    %11 = vector.shape_cast %10 : vector<1x1x1x32xf32> to vector<1x32xf32>
    %c0_18 = arith.constant 0 : index
    %c1_19 = arith.constant 1 : index
    %c0_20 = arith.constant 0 : index
    %c0_21 = arith.constant 0 : index
    %12 = vector.load %arg8[%c0_18, %c1_19, %c0_20, %c0_21] : memref<2x7x1x32xf32, #tpu.memory_space<vmem>>, vector<1x1x1x32xf32>
    %13 = vector.shape_cast %12 : vector<1x1x1x32xf32> to vector<1x32xf32>
    %c0_22 = arith.constant 0 : index
    %c2 = arith.constant 2 : index
    %c0_23 = arith.constant 0 : index
    %c0_24 = arith.constant 0 : index
    %14 = vector.load %arg8[%c0_22, %c2, %c0_23, %c0_24] : memref<2x7x1x32xf32, #tpu.memory_space<vmem>>, vector<1x1x1x32xf32>
    %15 = vector.shape_cast %14 : vector<1x1x1x32xf32> to vector<1x32xf32>
    %c0_25 = arith.constant 0 : index
    %c3 = arith.constant 3 : index
    %c0_26 = arith.constant 0 : index
    %c0_27 = arith.constant 0 : index
    %16 = vector.load %arg8[%c0_25, %c3, %c0_26, %c0_27] : memref<2x7x1x32xf32, #tpu.memory_space<vmem>>, vector<1x1x1x32xf32>
    %17 = vector.shape_cast %16 : vector<1x1x1x32xf32> to vector<1x32xf32>
    %c0_28 = arith.constant 0 : index
    %c4 = arith.constant 4 : index
    %c0_29 = arith.constant 0 : index
    %c0_30 = arith.constant 0 : index
    %18 = vector.load %arg8[%c0_28, %c4, %c0_29, %c0_30] : memref<2x7x1x32xf32, #tpu.memory_space<vmem>>, vector<1x1x1x32xf32>
    %19 = vector.shape_cast %18 : vector<1x1x1x32xf32> to vector<1x32xf32>
    %c0_31 = arith.constant 0 : index
    %c5 = arith.constant 5 : index
    %c0_32 = arith.constant 0 : index
    %c0_33 = arith.constant 0 : index
    %20 = vector.load %arg8[%c0_31, %c5, %c0_32, %c0_33] : memref<2x7x1x32xf32, #tpu.memory_space<vmem>>, vector<1x1x1x32xf32>
    %21 = vector.shape_cast %20 : vector<1x1x1x32xf32> to vector<1x32xf32>
    %c0_34 = arith.constant 0 : index
    %c6 = arith.constant 6 : index
    %c0_35 = arith.constant 0 : index
    %c0_36 = arith.constant 0 : index
    %22 = vector.load %arg8[%c0_34, %c6, %c0_35, %c0_36] : memref<2x7x1x32xf32, #tpu.memory_space<vmem>>, vector<1x1x1x32xf32>
    %23 = vector.shape_cast %22 : vector<1x1x1x32xf32> to vector<1x32xf32>
    %cst_37 = arith.constant dense<0.000000e+00> : vector<16x32xf32>
    %24 = tpu.matmul %5, %7, %cst_37 {dimension_numbers = #tpu.dot_dimension_numbers<[1], [0], [0], [1], [0, 0, 1, 1], [], []>} : vector<16x32xf32>, vector<32x32xf32>, vector<16x32xf32> -> vector<16x32xf32>
    %25 = vector.broadcast %11 : vector<1x32xf32> to vector<16x32xf32>
    %26 = arith.addf %24, %25 : vector<16x32xf32>
    %cst_38 = arith.constant 0.353553385 : f32
    %27 = vector.broadcast %cst_38 : f32 to vector<16x32xf32>
    %28 = arith.mulf %26, %27 : vector<16x32xf32>
    %29 = vector.extract_strided_slice %26 {offsets = [0, 0], sizes = [16, 8], strides = [1, 1]} : vector<16x32xf32> to vector<16x8xf32>
    %30 = vector.extract_strided_slice %28 {offsets = [0, 0], sizes = [16, 8], strides = [1, 1]} : vector<16x32xf32> to vector<16x8xf32>
    %cst_39 = arith.constant dense<0.000000e+00> : vector<16x16xf32>
    %31 = tpu.matmul %30, %29, %cst_39 {dimension_numbers = #tpu.dot_dimension_numbers<[1], [1], [0], [0], [0, 0, 1, 0], [], []>} : vector<16x8xf32>, vector<16x8xf32>, vector<16x16xf32> -> vector<16x16xf32>
    %32 = arith.addf %31, %1 : vector<16x16xf32>
    %cst_40 = arith.constant dense<0xFF800000> : vector<16xf32>
    %33 = vector.multi_reduction <maximumf>, %32, %cst_40 [1] : vector<16x16xf32> to vector<16xf32>
    %34 = vector.shape_cast %33 : vector<16xf32> to vector<16x1xf32>
    %35 = vector.broadcast %34 : vector<16x1xf32> to vector<16x16xf32>
    %36 = arith.subf %32, %35 : vector<16x16xf32>
    %37 = math.exp %36 : vector<16x16xf32>
    %cst_41 = arith.constant dense<0.000000e+00> : vector<16xf32>
    %38 = vector.multi_reduction <add>, %37, %cst_41 [1] : vector<16x16xf32> to vector<16xf32>
    %39 = vector.shape_cast %38 : vector<16xf32> to vector<16x1xf32>
    %40 = tpu.reciprocal %39 {approx = true} : vector<16x1xf32> -> vector<16x1xf32>
    %41 = vector.broadcast %40 : vector<16x1xf32> to vector<16x16xf32>
    %42 = arith.mulf %37, %41 : vector<16x16xf32>
    %cst_42 = arith.constant dense<0.000000e+00> : vector<16x8xf32>
    %43 = tpu.matmul %42, %29, %cst_42 {dimension_numbers = #tpu.dot_dimension_numbers<[1], [0], [0], [1], [0, 0, 1, 1], [], []>} : vector<16x16xf32>, vector<16x8xf32>, vector<16x8xf32> -> vector<16x8xf32>
    %44 = vector.extract_strided_slice %26 {offsets = [0, 8], sizes = [16, 8], strides = [1, 1]} : vector<16x32xf32> to vector<16x8xf32>
    %45 = vector.extract_strided_slice %28 {offsets = [0, 8], sizes = [16, 8], strides = [1, 1]} : vector<16x32xf32> to vector<16x8xf32>
    %cst_43 = arith.constant dense<0.000000e+00> : vector<16x16xf32>
    %46 = tpu.matmul %45, %44, %cst_43 {dimension_numbers = #tpu.dot_dimension_numbers<[1], [1], [0], [0], [0, 0, 1, 0], [], []>} : vector<16x8xf32>, vector<16x8xf32>, vector<16x16xf32> -> vector<16x16xf32>
    %47 = arith.addf %46, %1 : vector<16x16xf32>
    %cst_44 = arith.constant dense<0xFF800000> : vector<16xf32>
    %48 = vector.multi_reduction <maximumf>, %47, %cst_44 [1] : vector<16x16xf32> to vector<16xf32>
    %49 = vector.shape_cast %48 : vector<16xf32> to vector<16x1xf32>
    %50 = vector.broadcast %49 : vector<16x1xf32> to vector<16x16xf32>
    %51 = arith.subf %47, %50 : vector<16x16xf32>
    %52 = math.exp %51 : vector<16x16xf32>
    %cst_45 = arith.constant dense<0.000000e+00> : vector<16xf32>
    %53 = vector.multi_reduction <add>, %52, %cst_45 [1] : vector<16x16xf32> to vector<16xf32>
    %54 = vector.shape_cast %53 : vector<16xf32> to vector<16x1xf32>
    %55 = tpu.reciprocal %54 {approx = true} : vector<16x1xf32> -> vector<16x1xf32>
    %56 = vector.broadcast %55 : vector<16x1xf32> to vector<16x16xf32>
    %57 = arith.mulf %52, %56 : vector<16x16xf32>
    %cst_46 = arith.constant dense<0.000000e+00> : vector<16x8xf32>
    %58 = tpu.matmul %57, %44, %cst_46 {dimension_numbers = #tpu.dot_dimension_numbers<[1], [0], [0], [1], [0, 0, 1, 1], [], []>} : vector<16x16xf32>, vector<16x8xf32>, vector<16x8xf32> -> vector<16x8xf32>
    %59 = vector.extract_strided_slice %26 {offsets = [0, 16], sizes = [16, 8], strides = [1, 1]} : vector<16x32xf32> to vector<16x8xf32>
    %60 = vector.extract_strided_slice %28 {offsets = [0, 16], sizes = [16, 8], strides = [1, 1]} : vector<16x32xf32> to vector<16x8xf32>
    %cst_47 = arith.constant dense<0.000000e+00> : vector<16x16xf32>
    %61 = tpu.matmul %60, %59, %cst_47 {dimension_numbers = #tpu.dot_dimension_numbers<[1], [1], [0], [0], [0, 0, 1, 0], [], []>} : vector<16x8xf32>, vector<16x8xf32>, vector<16x16xf32> -> vector<16x16xf32>
    %62 = arith.addf %61, %1 : vector<16x16xf32>
    %cst_48 = arith.constant dense<0xFF800000> : vector<16xf32>
    %63 = vector.multi_reduction <maximumf>, %62, %cst_48 [1] : vector<16x16xf32> to vector<16xf32>
    %64 = vector.shape_cast %63 : vector<16xf32> to vector<16x1xf32>
    %65 = vector.broadcast %64 : vector<16x1xf32> to vector<16x16xf32>
    %66 = arith.subf %62, %65 : vector<16x16xf32>
    %67 = math.exp %66 : vector<16x16xf32>
    %cst_49 = arith.constant dense<0.000000e+00> : vector<16xf32>
    %68 = vector.multi_reduction <add>, %67, %cst_49 [1] : vector<16x16xf32> to vector<16xf32>
    %69 = vector.shape_cast %68 : vector<16xf32> to vector<16x1xf32>
    %70 = tpu.reciprocal %69 {approx = true} : vector<16x1xf32> -> vector<16x1xf32>
    %71 = vector.broadcast %70 : vector<16x1xf32> to vector<16x16xf32>
    %72 = arith.mulf %67, %71 : vector<16x16xf32>
    %cst_50 = arith.constant dense<0.000000e+00> : vector<16x8xf32>
    %73 = tpu.matmul %72, %59, %cst_50 {dimension_numbers = #tpu.dot_dimension_numbers<[1], [0], [0], [1], [0, 0, 1, 1], [], []>} : vector<16x16xf32>, vector<16x8xf32>, vector<16x8xf32> -> vector<16x8xf32>
    %74 = vector.extract_strided_slice %26 {offsets = [0, 24], sizes = [16, 8], strides = [1, 1]} : vector<16x32xf32> to vector<16x8xf32>
    %75 = vector.extract_strided_slice %28 {offsets = [0, 24], sizes = [16, 8], strides = [1, 1]} : vector<16x32xf32> to vector<16x8xf32>
    %cst_51 = arith.constant dense<0.000000e+00> : vector<16x16xf32>
    %76 = tpu.matmul %75, %74, %cst_51 {dimension_numbers = #tpu.dot_dimension_numbers<[1], [1], [0], [0], [0, 0, 1, 0], [], []>} : vector<16x8xf32>, vector<16x8xf32>, vector<16x16xf32> -> vector<16x16xf32>
    %77 = arith.addf %76, %1 : vector<16x16xf32>
    %cst_52 = arith.constant dense<0xFF800000> : vector<16xf32>
    %78 = vector.multi_reduction <maximumf>, %77, %cst_52 [1] : vector<16x16xf32> to vector<16xf32>
    %79 = vector.shape_cast %78 : vector<16xf32> to vector<16x1xf32>
    %80 = vector.broadcast %79 : vector<16x1xf32> to vector<16x16xf32>
    %81 = arith.subf %77, %80 : vector<16x16xf32>
    %82 = math.exp %81 : vector<16x16xf32>
    %cst_53 = arith.constant dense<0.000000e+00> : vector<16xf32>
    %83 = vector.multi_reduction <add>, %82, %cst_53 [1] : vector<16x16xf32> to vector<16xf32>
    %84 = vector.shape_cast %83 : vector<16xf32> to vector<16x1xf32>
    %85 = tpu.reciprocal %84 {approx = true} : vector<16x1xf32> -> vector<16x1xf32>
    %86 = vector.broadcast %85 : vector<16x1xf32> to vector<16x16xf32>
    %87 = arith.mulf %82, %86 : vector<16x16xf32>
    %cst_54 = arith.constant dense<0.000000e+00> : vector<16x8xf32>
    %88 = tpu.matmul %87, %74, %cst_54 {dimension_numbers = #tpu.dot_dimension_numbers<[1], [0], [0], [1], [0, 0, 1, 1], [], []>} : vector<16x16xf32>, vector<16x8xf32>, vector<16x8xf32> -> vector<16x8xf32>
    %89 = tpu.concatenate %43, %58, %73, %88 in 1 : vector<16x8xf32>, vector<16x8xf32>, vector<16x8xf32>, vector<16x8xf32> -> vector<16x32xf32>
    %cst_55 = arith.constant dense<0.000000e+00> : vector<16x32xf32>
    %90 = tpu.matmul %89, %9, %cst_55 {dimension_numbers = #tpu.dot_dimension_numbers<[1], [0], [0], [1], [0, 0, 1, 1], [], []>} : vector<16x32xf32>, vector<32x32xf32>, vector<16x32xf32> -> vector<16x32xf32>
    %91 = vector.broadcast %13 : vector<1x32xf32> to vector<16x32xf32>
    %92 = arith.addf %90, %91 : vector<16x32xf32>
    %93 = arith.addf %92, %5 : vector<16x32xf32>
    %cst_56 = arith.constant dense<0.000000e+00> : vector<16xf32>
    %94 = vector.multi_reduction <add>, %93, %cst_56 [1] : vector<16x32xf32> to vector<16xf32>
    %95 = vector.shape_cast %94 : vector<16xf32> to vector<16x1xf32>
    %cst_57 = arith.constant 3.200000e+01 : f32
    %96 = vector.broadcast %cst_57 : f32 to vector<16x1xf32>
    %97 = arith.divf %95, %96 : vector<16x1xf32>
    %98 = vector.broadcast %97 : vector<16x1xf32> to vector<16x32xf32>
    %99 = arith.subf %93, %98 : vector<16x32xf32>
    %100 = arith.mulf %99, %99 : vector<16x32xf32>
    %cst_58 = arith.constant dense<0.000000e+00> : vector<16xf32>
    %101 = vector.multi_reduction <add>, %100, %cst_58 [1] : vector<16x32xf32> to vector<16xf32>
    %102 = vector.shape_cast %101 : vector<16xf32> to vector<16x1xf32>
    %cst_59 = arith.constant 3.200000e+01 : f32
    %103 = vector.broadcast %cst_59 : f32 to vector<16x1xf32>
    %104 = arith.divf %102, %103 : vector<16x1xf32>
    %105 = vector.broadcast %97 : vector<16x1xf32> to vector<16x32xf32>
    %106 = arith.subf %93, %105 : vector<16x32xf32>
    %cst_60 = arith.constant 9.99999974E-6 : f32
    %107 = vector.broadcast %cst_60 : f32 to vector<16x1xf32>
    %108 = arith.addf %104, %107 : vector<16x1xf32>
    %109 = math.rsqrt %108 : vector<16x1xf32>
    %110 = vector.broadcast %109 : vector<16x1xf32> to vector<16x32xf32>
    %111 = arith.mulf %106, %110 : vector<16x32xf32>
    %112 = vector.broadcast %17 : vector<1x32xf32> to vector<16x32xf32>
    %113 = arith.mulf %111, %112 : vector<16x32xf32>
    %114 = vector.broadcast %19 : vector<1x32xf32> to vector<16x32xf32>
    %115 = arith.addf %113, %114 : vector<16x32xf32>
    %c0_61 = arith.constant 0 : index
    %c0_62 = arith.constant 0 : index
    %c0_63 = arith.constant 0 : index
    %116 = vector.load %arg5[%c0_61, %c0_62, %c0_63] : memref<2x32x64xf32, #tpu.memory_space<vmem>>, vector<1x32x64xf32>
    %117 = vector.shape_cast %116 : vector<1x32x64xf32> to vector<32x64xf32>
    %cst_64 = arith.constant dense<0.000000e+00> : vector<16x64xf32>
    %118 = tpu.matmul %115, %117, %cst_64 {dimension_numbers = #tpu.dot_dimension_numbers<[1], [0], [0], [1], [0, 0, 1, 1], [], []>} : vector<16x32xf32>, vector<32x64xf32>, vector<16x64xf32> -> vector<16x64xf32>
    %c0_65 = arith.constant 0 : index
    %c0_66 = arith.constant 0 : index
    %c0_67 = arith.constant 0 : index
    %119 = vector.load %arg6[%c0_65, %c0_66, %c0_67] : memref<2x1x64xf32, #tpu.memory_space<vmem>>, vector<1x1x64xf32>
    %120 = vector.shape_cast %119 : vector<1x1x64xf32> to vector<1x64xf32>
    %121 = vector.broadcast %120 : vector<1x64xf32> to vector<16x64xf32>
    %122 = arith.addf %118, %121 : vector<16x64xf32>
    %cst_68 = arith.constant 0.000000e+00 : f32
    %123 = vector.broadcast %cst_68 : f32 to vector<16x64xf32>
    %124 = arith.maximumf %122, %123 : vector<16x64xf32>
    %c0_69 = arith.constant 0 : index
    %c0_70 = arith.constant 0 : index
    %c0_71 = arith.constant 0 : index
    %125 = vector.load %arg7[%c0_69, %c0_70, %c0_71] : memref<2x64x32xf32, #tpu.memory_space<vmem>>, vector<1x64x32xf32>
    %126 = vector.shape_cast %125 : vector<1x64x32xf32> to vector<64x32xf32>
    %cst_72 = arith.constant dense<0.000000e+00> : vector<16x32xf32>
    %127 = tpu.matmul %124, %126, %cst_72 {dimension_numbers = #tpu.dot_dimension_numbers<[1], [0], [0], [1], [0, 0, 1, 1], [], []>} : vector<16x64xf32>, vector<64x32xf32>, vector<16x32xf32> -> vector<16x32xf32>
    %128 = vector.broadcast %15 : vector<1x32xf32> to vector<16x32xf32>
    %129 = arith.addf %127, %128 : vector<16x32xf32>
    %130 = arith.addf %129, %115 : vector<16x32xf32>
    %cst_73 = arith.constant dense<0.000000e+00> : vector<16xf32>
    %131 = vector.multi_reduction <add>, %130, %cst_73 [1] : vector<16x32xf32> to vector<16xf32>
    %132 = vector.shape_cast %131 : vector<16xf32> to vector<16x1xf32>
    %cst_74 = arith.constant 3.200000e+01 : f32
    %133 = vector.broadcast %cst_74 : f32 to vector<16x1xf32>
    %134 = arith.divf %132, %133 : vector<16x1xf32>
    %135 = vector.broadcast %134 : vector<16x1xf32> to vector<16x32xf32>
    %136 = arith.subf %130, %135 : vector<16x32xf32>
    %137 = arith.mulf %136, %136 : vector<16x32xf32>
    %cst_75 = arith.constant dense<0.000000e+00> : vector<16xf32>
    %138 = vector.multi_reduction <add>, %137, %cst_75 [1] : vector<16x32xf32> to vector<16xf32>
    %139 = vector.shape_cast %138 : vector<16xf32> to vector<16x1xf32>
    %cst_76 = arith.constant 3.200000e+01 : f32
    %140 = vector.broadcast %cst_76 : f32 to vector<16x1xf32>
    %141 = arith.divf %139, %140 : vector<16x1xf32>
    %142 = vector.broadcast %134 : vector<16x1xf32> to vector<16x32xf32>
    %143 = arith.subf %130, %142 : vector<16x32xf32>
    %cst_77 = arith.constant 9.99999974E-6 : f32
    %144 = vector.broadcast %cst_77 : f32 to vector<16x1xf32>
    %145 = arith.addf %141, %144 : vector<16x1xf32>
    %146 = math.rsqrt %145 : vector<16x1xf32>
    %147 = vector.broadcast %146 : vector<16x1xf32> to vector<16x32xf32>
    %148 = arith.mulf %143, %147 : vector<16x32xf32>
    %149 = vector.broadcast %21 : vector<1x32xf32> to vector<16x32xf32>
    %150 = arith.mulf %148, %149 : vector<16x32xf32>
    %151 = vector.broadcast %23 : vector<1x32xf32> to vector<16x32xf32>
    %152 = arith.addf %150, %151 : vector<16x32xf32>
    %c1_78 = arith.constant 1 : index
    %c0_79 = arith.constant 0 : index
    %c0_80 = arith.constant 0 : index
    %c0_81 = arith.constant 0 : index
    %153 = vector.load %arg4[%c1_78, %c0_79, %c0_80, %c0_81] : memref<2x2x32x32xf32, #tpu.memory_space<vmem>>, vector<1x1x32x32xf32>
    %154 = vector.shape_cast %153 : vector<1x1x32x32xf32> to vector<32x32xf32>
    %c1_82 = arith.constant 1 : index
    %c1_83 = arith.constant 1 : index
    %c0_84 = arith.constant 0 : index
    %c0_85 = arith.constant 0 : index
    %155 = vector.load %arg4[%c1_82, %c1_83, %c0_84, %c0_85] : memref<2x2x32x32xf32, #tpu.memory_space<vmem>>, vector<1x1x32x32xf32>
    %156 = vector.shape_cast %155 : vector<1x1x32x32xf32> to vector<32x32xf32>
    %c1_86 = arith.constant 1 : index
    %c0_87 = arith.constant 0 : index
    %c0_88 = arith.constant 0 : index
    %c0_89 = arith.constant 0 : index
    %157 = vector.load %arg8[%c1_86, %c0_87, %c0_88, %c0_89] : memref<2x7x1x32xf32, #tpu.memory_space<vmem>>, vector<1x1x1x32xf32>
    %158 = vector.shape_cast %157 : vector<1x1x1x32xf32> to vector<1x32xf32>
    %c1_90 = arith.constant 1 : index
    %c1_91 = arith.constant 1 : index
    %c0_92 = arith.constant 0 : index
    %c0_93 = arith.constant 0 : index
    %159 = vector.load %arg8[%c1_90, %c1_91, %c0_92, %c0_93] : memref<2x7x1x32xf32, #tpu.memory_space<vmem>>, vector<1x1x1x32xf32>
    %160 = vector.shape_cast %159 : vector<1x1x1x32xf32> to vector<1x32xf32>
    %c1_94 = arith.constant 1 : index
    %c2_95 = arith.constant 2 : index
    %c0_96 = arith.constant 0 : index
    %c0_97 = arith.constant 0 : index
    %161 = vector.load %arg8[%c1_94, %c2_95, %c0_96, %c0_97] : memref<2x7x1x32xf32, #tpu.memory_space<vmem>>, vector<1x1x1x32xf32>
    %162 = vector.shape_cast %161 : vector<1x1x1x32xf32> to vector<1x32xf32>
    %c1_98 = arith.constant 1 : index
    %c3_99 = arith.constant 3 : index
    %c0_100 = arith.constant 0 : index
    %c0_101 = arith.constant 0 : index
    %163 = vector.load %arg8[%c1_98, %c3_99, %c0_100, %c0_101] : memref<2x7x1x32xf32, #tpu.memory_space<vmem>>, vector<1x1x1x32xf32>
    %164 = vector.shape_cast %163 : vector<1x1x1x32xf32> to vector<1x32xf32>
    %c1_102 = arith.constant 1 : index
    %c4_103 = arith.constant 4 : index
    %c0_104 = arith.constant 0 : index
    %c0_105 = arith.constant 0 : index
    %165 = vector.load %arg8[%c1_102, %c4_103, %c0_104, %c0_105] : memref<2x7x1x32xf32, #tpu.memory_space<vmem>>, vector<1x1x1x32xf32>
    %166 = vector.shape_cast %165 : vector<1x1x1x32xf32> to vector<1x32xf32>
    %c1_106 = arith.constant 1 : index
    %c5_107 = arith.constant 5 : index
    %c0_108 = arith.constant 0 : index
    %c0_109 = arith.constant 0 : index
    %167 = vector.load %arg8[%c1_106, %c5_107, %c0_108, %c0_109] : memref<2x7x1x32xf32, #tpu.memory_space<vmem>>, vector<1x1x1x32xf32>
    %168 = vector.shape_cast %167 : vector<1x1x1x32xf32> to vector<1x32xf32>
    %c1_110 = arith.constant 1 : index
    %c6_111 = arith.constant 6 : index
    %c0_112 = arith.constant 0 : index
    %c0_113 = arith.constant 0 : index
    %169 = vector.load %arg8[%c1_110, %c6_111, %c0_112, %c0_113] : memref<2x7x1x32xf32, #tpu.memory_space<vmem>>, vector<1x1x1x32xf32>
    %170 = vector.shape_cast %169 : vector<1x1x1x32xf32> to vector<1x32xf32>
    %cst_114 = arith.constant dense<0.000000e+00> : vector<16x32xf32>
    %171 = tpu.matmul %152, %154, %cst_114 {dimension_numbers = #tpu.dot_dimension_numbers<[1], [0], [0], [1], [0, 0, 1, 1], [], []>} : vector<16x32xf32>, vector<32x32xf32>, vector<16x32xf32> -> vector<16x32xf32>
    %172 = vector.broadcast %158 : vector<1x32xf32> to vector<16x32xf32>
    %173 = arith.addf %171, %172 : vector<16x32xf32>
    %cst_115 = arith.constant 0.353553385 : f32
    %174 = vector.broadcast %cst_115 : f32 to vector<16x32xf32>
    %175 = arith.mulf %173, %174 : vector<16x32xf32>
    %176 = vector.extract_strided_slice %173 {offsets = [0, 0], sizes = [16, 8], strides = [1, 1]} : vector<16x32xf32> to vector<16x8xf32>
    %177 = vector.extract_strided_slice %175 {offsets = [0, 0], sizes = [16, 8], strides = [1, 1]} : vector<16x32xf32> to vector<16x8xf32>
    %cst_116 = arith.constant dense<0.000000e+00> : vector<16x16xf32>
    %178 = tpu.matmul %177, %176, %cst_116 {dimension_numbers = #tpu.dot_dimension_numbers<[1], [1], [0], [0], [0, 0, 1, 0], [], []>} : vector<16x8xf32>, vector<16x8xf32>, vector<16x16xf32> -> vector<16x16xf32>
    %179 = arith.addf %178, %1 : vector<16x16xf32>
    %cst_117 = arith.constant dense<0xFF800000> : vector<16xf32>
    %180 = vector.multi_reduction <maximumf>, %179, %cst_117 [1] : vector<16x16xf32> to vector<16xf32>
    %181 = vector.shape_cast %180 : vector<16xf32> to vector<16x1xf32>
    %182 = vector.broadcast %181 : vector<16x1xf32> to vector<16x16xf32>
    %183 = arith.subf %179, %182 : vector<16x16xf32>
    %184 = math.exp %183 : vector<16x16xf32>
    %cst_118 = arith.constant dense<0.000000e+00> : vector<16xf32>
    %185 = vector.multi_reduction <add>, %184, %cst_118 [1] : vector<16x16xf32> to vector<16xf32>
    %186 = vector.shape_cast %185 : vector<16xf32> to vector<16x1xf32>
    %187 = tpu.reciprocal %186 {approx = true} : vector<16x1xf32> -> vector<16x1xf32>
    %188 = vector.broadcast %187 : vector<16x1xf32> to vector<16x16xf32>
    %189 = arith.mulf %184, %188 : vector<16x16xf32>
    %cst_119 = arith.constant dense<0.000000e+00> : vector<16x8xf32>
    %190 = tpu.matmul %189, %176, %cst_119 {dimension_numbers = #tpu.dot_dimension_numbers<[1], [0], [0], [1], [0, 0, 1, 1], [], []>} : vector<16x16xf32>, vector<16x8xf32>, vector<16x8xf32> -> vector<16x8xf32>
    %191 = vector.extract_strided_slice %173 {offsets = [0, 8], sizes = [16, 8], strides = [1, 1]} : vector<16x32xf32> to vector<16x8xf32>
    %192 = vector.extract_strided_slice %175 {offsets = [0, 8], sizes = [16, 8], strides = [1, 1]} : vector<16x32xf32> to vector<16x8xf32>
    %cst_120 = arith.constant dense<0.000000e+00> : vector<16x16xf32>
    %193 = tpu.matmul %192, %191, %cst_120 {dimension_numbers = #tpu.dot_dimension_numbers<[1], [1], [0], [0], [0, 0, 1, 0], [], []>} : vector<16x8xf32>, vector<16x8xf32>, vector<16x16xf32> -> vector<16x16xf32>
    %194 = arith.addf %193, %1 : vector<16x16xf32>
    %cst_121 = arith.constant dense<0xFF800000> : vector<16xf32>
    %195 = vector.multi_reduction <maximumf>, %194, %cst_121 [1] : vector<16x16xf32> to vector<16xf32>
    %196 = vector.shape_cast %195 : vector<16xf32> to vector<16x1xf32>
    %197 = vector.broadcast %196 : vector<16x1xf32> to vector<16x16xf32>
    %198 = arith.subf %194, %197 : vector<16x16xf32>
    %199 = math.exp %198 : vector<16x16xf32>
    %cst_122 = arith.constant dense<0.000000e+00> : vector<16xf32>
    %200 = vector.multi_reduction <add>, %199, %cst_122 [1] : vector<16x16xf32> to vector<16xf32>
    %201 = vector.shape_cast %200 : vector<16xf32> to vector<16x1xf32>
    %202 = tpu.reciprocal %201 {approx = true} : vector<16x1xf32> -> vector<16x1xf32>
    %203 = vector.broadcast %202 : vector<16x1xf32> to vector<16x16xf32>
    %204 = arith.mulf %199, %203 : vector<16x16xf32>
    %cst_123 = arith.constant dense<0.000000e+00> : vector<16x8xf32>
    %205 = tpu.matmul %204, %191, %cst_123 {dimension_numbers = #tpu.dot_dimension_numbers<[1], [0], [0], [1], [0, 0, 1, 1], [], []>} : vector<16x16xf32>, vector<16x8xf32>, vector<16x8xf32> -> vector<16x8xf32>
    %206 = vector.extract_strided_slice %173 {offsets = [0, 16], sizes = [16, 8], strides = [1, 1]} : vector<16x32xf32> to vector<16x8xf32>
    %207 = vector.extract_strided_slice %175 {offsets = [0, 16], sizes = [16, 8], strides = [1, 1]} : vector<16x32xf32> to vector<16x8xf32>
    %cst_124 = arith.constant dense<0.000000e+00> : vector<16x16xf32>
    %208 = tpu.matmul %207, %206, %cst_124 {dimension_numbers = #tpu.dot_dimension_numbers<[1], [1], [0], [0], [0, 0, 1, 0], [], []>} : vector<16x8xf32>, vector<16x8xf32>, vector<16x16xf32> -> vector<16x16xf32>
    %209 = arith.addf %208, %1 : vector<16x16xf32>
    %cst_125 = arith.constant dense<0xFF800000> : vector<16xf32>
    %210 = vector.multi_reduction <maximumf>, %209, %cst_125 [1] : vector<16x16xf32> to vector<16xf32>
    %211 = vector.shape_cast %210 : vector<16xf32> to vector<16x1xf32>
    %212 = vector.broadcast %211 : vector<16x1xf32> to vector<16x16xf32>
    %213 = arith.subf %209, %212 : vector<16x16xf32>
    %214 = math.exp %213 : vector<16x16xf32>
    %cst_126 = arith.constant dense<0.000000e+00> : vector<16xf32>
    %215 = vector.multi_reduction <add>, %214, %cst_126 [1] : vector<16x16xf32> to vector<16xf32>
    %216 = vector.shape_cast %215 : vector<16xf32> to vector<16x1xf32>
    %217 = tpu.reciprocal %216 {approx = true} : vector<16x1xf32> -> vector<16x1xf32>
    %218 = vector.broadcast %217 : vector<16x1xf32> to vector<16x16xf32>
    %219 = arith.mulf %214, %218 : vector<16x16xf32>
    %cst_127 = arith.constant dense<0.000000e+00> : vector<16x8xf32>
    %220 = tpu.matmul %219, %206, %cst_127 {dimension_numbers = #tpu.dot_dimension_numbers<[1], [0], [0], [1], [0, 0, 1, 1], [], []>} : vector<16x16xf32>, vector<16x8xf32>, vector<16x8xf32> -> vector<16x8xf32>
    %221 = vector.extract_strided_slice %173 {offsets = [0, 24], sizes = [16, 8], strides = [1, 1]} : vector<16x32xf32> to vector<16x8xf32>
    %222 = vector.extract_strided_slice %175 {offsets = [0, 24], sizes = [16, 8], strides = [1, 1]} : vector<16x32xf32> to vector<16x8xf32>
    %cst_128 = arith.constant dense<0.000000e+00> : vector<16x16xf32>
    %223 = tpu.matmul %222, %221, %cst_128 {dimension_numbers = #tpu.dot_dimension_numbers<[1], [1], [0], [0], [0, 0, 1, 0], [], []>} : vector<16x8xf32>, vector<16x8xf32>, vector<16x16xf32> -> vector<16x16xf32>
    %224 = arith.addf %223, %1 : vector<16x16xf32>
    %cst_129 = arith.constant dense<0xFF800000> : vector<16xf32>
    %225 = vector.multi_reduction <maximumf>, %224, %cst_129 [1] : vector<16x16xf32> to vector<16xf32>
    %226 = vector.shape_cast %225 : vector<16xf32> to vector<16x1xf32>
    %227 = vector.broadcast %226 : vector<16x1xf32> to vector<16x16xf32>
    %228 = arith.subf %224, %227 : vector<16x16xf32>
    %229 = math.exp %228 : vector<16x16xf32>
    %cst_130 = arith.constant dense<0.000000e+00> : vector<16xf32>
    %230 = vector.multi_reduction <add>, %229, %cst_130 [1] : vector<16x16xf32> to vector<16xf32>
    %231 = vector.shape_cast %230 : vector<16xf32> to vector<16x1xf32>
    %232 = tpu.reciprocal %231 {approx = true} : vector<16x1xf32> -> vector<16x1xf32>
    %233 = vector.broadcast %232 : vector<16x1xf32> to vector<16x16xf32>
    %234 = arith.mulf %229, %233 : vector<16x16xf32>
    %cst_131 = arith.constant dense<0.000000e+00> : vector<16x8xf32>
    %235 = tpu.matmul %234, %221, %cst_131 {dimension_numbers = #tpu.dot_dimension_numbers<[1], [0], [0], [1], [0, 0, 1, 1], [], []>} : vector<16x16xf32>, vector<16x8xf32>, vector<16x8xf32> -> vector<16x8xf32>
    %236 = tpu.concatenate %190, %205, %220, %235 in 1 : vector<16x8xf32>, vector<16x8xf32>, vector<16x8xf32>, vector<16x8xf32> -> vector<16x32xf32>
    %cst_132 = arith.constant dense<0.000000e+00> : vector<16x32xf32>
    %237 = tpu.matmul %236, %156, %cst_132 {dimension_numbers = #tpu.dot_dimension_numbers<[1], [0], [0], [1], [0, 0, 1, 1], [], []>} : vector<16x32xf32>, vector<32x32xf32>, vector<16x32xf32> -> vector<16x32xf32>
    %238 = vector.broadcast %160 : vector<1x32xf32> to vector<16x32xf32>
    %239 = arith.addf %237, %238 : vector<16x32xf32>
    %240 = arith.addf %239, %152 : vector<16x32xf32>
    %cst_133 = arith.constant dense<0.000000e+00> : vector<16xf32>
    %241 = vector.multi_reduction <add>, %240, %cst_133 [1] : vector<16x32xf32> to vector<16xf32>
    %242 = vector.shape_cast %241 : vector<16xf32> to vector<16x1xf32>
    %cst_134 = arith.constant 3.200000e+01 : f32
    %243 = vector.broadcast %cst_134 : f32 to vector<16x1xf32>
    %244 = arith.divf %242, %243 : vector<16x1xf32>
    %245 = vector.broadcast %244 : vector<16x1xf32> to vector<16x32xf32>
    %246 = arith.subf %240, %245 : vector<16x32xf32>
    %247 = arith.mulf %246, %246 : vector<16x32xf32>
    %cst_135 = arith.constant dense<0.000000e+00> : vector<16xf32>
    %248 = vector.multi_reduction <add>, %247, %cst_135 [1] : vector<16x32xf32> to vector<16xf32>
    %249 = vector.shape_cast %248 : vector<16xf32> to vector<16x1xf32>
    %cst_136 = arith.constant 3.200000e+01 : f32
    %250 = vector.broadcast %cst_136 : f32 to vector<16x1xf32>
    %251 = arith.divf %249, %250 : vector<16x1xf32>
    %252 = vector.broadcast %244 : vector<16x1xf32> to vector<16x32xf32>
    %253 = arith.subf %240, %252 : vector<16x32xf32>
    %cst_137 = arith.constant 9.99999974E-6 : f32
    %254 = vector.broadcast %cst_137 : f32 to vector<16x1xf32>
    %255 = arith.addf %251, %254 : vector<16x1xf32>
    %256 = math.rsqrt %255 : vector<16x1xf32>
    %257 = vector.broadcast %256 : vector<16x1xf32> to vector<16x32xf32>
    %258 = arith.mulf %253, %257 : vector<16x32xf32>
    %259 = vector.broadcast %164 : vector<1x32xf32> to vector<16x32xf32>
    %260 = arith.mulf %258, %259 : vector<16x32xf32>
    %261 = vector.broadcast %166 : vector<1x32xf32> to vector<16x32xf32>
    %262 = arith.addf %260, %261 : vector<16x32xf32>
    %c1_138 = arith.constant 1 : index
    %c0_139 = arith.constant 0 : index
    %c0_140 = arith.constant 0 : index
    %263 = vector.load %arg5[%c1_138, %c0_139, %c0_140] : memref<2x32x64xf32, #tpu.memory_space<vmem>>, vector<1x32x64xf32>
    %264 = vector.shape_cast %263 : vector<1x32x64xf32> to vector<32x64xf32>
    %cst_141 = arith.constant dense<0.000000e+00> : vector<16x64xf32>
    %265 = tpu.matmul %262, %264, %cst_141 {dimension_numbers = #tpu.dot_dimension_numbers<[1], [0], [0], [1], [0, 0, 1, 1], [], []>} : vector<16x32xf32>, vector<32x64xf32>, vector<16x64xf32> -> vector<16x64xf32>
    %c1_142 = arith.constant 1 : index
    %c0_143 = arith.constant 0 : index
    %c0_144 = arith.constant 0 : index
    %266 = vector.load %arg6[%c1_142, %c0_143, %c0_144] : memref<2x1x64xf32, #tpu.memory_space<vmem>>, vector<1x1x64xf32>
    %267 = vector.shape_cast %266 : vector<1x1x64xf32> to vector<1x64xf32>
    %268 = vector.broadcast %267 : vector<1x64xf32> to vector<16x64xf32>
    %269 = arith.addf %265, %268 : vector<16x64xf32>
    %cst_145 = arith.constant 0.000000e+00 : f32
    %270 = vector.broadcast %cst_145 : f32 to vector<16x64xf32>
    %271 = arith.maximumf %269, %270 : vector<16x64xf32>
    %c1_146 = arith.constant 1 : index
    %c0_147 = arith.constant 0 : index
    %c0_148 = arith.constant 0 : index
    %272 = vector.load %arg7[%c1_146, %c0_147, %c0_148] : memref<2x64x32xf32, #tpu.memory_space<vmem>>, vector<1x64x32xf32>
    %273 = vector.shape_cast %272 : vector<1x64x32xf32> to vector<64x32xf32>
    %cst_149 = arith.constant dense<0.000000e+00> : vector<16x32xf32>
    %274 = tpu.matmul %271, %273, %cst_149 {dimension_numbers = #tpu.dot_dimension_numbers<[1], [0], [0], [1], [0, 0, 1, 1], [], []>} : vector<16x64xf32>, vector<64x32xf32>, vector<16x32xf32> -> vector<16x32xf32>
    %275 = vector.broadcast %162 : vector<1x32xf32> to vector<16x32xf32>
    %276 = arith.addf %274, %275 : vector<16x32xf32>
    %277 = arith.addf %276, %262 : vector<16x32xf32>
    %cst_150 = arith.constant dense<0.000000e+00> : vector<16xf32>
    %278 = vector.multi_reduction <add>, %277, %cst_150 [1] : vector<16x32xf32> to vector<16xf32>
    %279 = vector.shape_cast %278 : vector<16xf32> to vector<16x1xf32>
    %cst_151 = arith.constant 3.200000e+01 : f32
    %280 = vector.broadcast %cst_151 : f32 to vector<16x1xf32>
    %281 = arith.divf %279, %280 : vector<16x1xf32>
    %282 = vector.broadcast %281 : vector<16x1xf32> to vector<16x32xf32>
    %283 = arith.subf %277, %282 : vector<16x32xf32>
    %284 = arith.mulf %283, %283 : vector<16x32xf32>
    %cst_152 = arith.constant dense<0.000000e+00> : vector<16xf32>
    %285 = vector.multi_reduction <add>, %284, %cst_152 [1] : vector<16x32xf32> to vector<16xf32>
    %286 = vector.shape_cast %285 : vector<16xf32> to vector<16x1xf32>
    %cst_153 = arith.constant 3.200000e+01 : f32
    %287 = vector.broadcast %cst_153 : f32 to vector<16x1xf32>
    %288 = arith.divf %286, %287 : vector<16x1xf32>
    %289 = vector.broadcast %281 : vector<16x1xf32> to vector<16x32xf32>
    %290 = arith.subf %277, %289 : vector<16x32xf32>
    %cst_154 = arith.constant 9.99999974E-6 : f32
    %291 = vector.broadcast %cst_154 : f32 to vector<16x1xf32>
    %292 = arith.addf %288, %291 : vector<16x1xf32>
    %293 = math.rsqrt %292 : vector<16x1xf32>
    %294 = vector.broadcast %293 : vector<16x1xf32> to vector<16x32xf32>
    %295 = arith.mulf %290, %294 : vector<16x32xf32>
    %296 = vector.broadcast %168 : vector<1x32xf32> to vector<16x32xf32>
    %297 = arith.mulf %295, %296 : vector<16x32xf32>
    %298 = vector.broadcast %170 : vector<1x32xf32> to vector<16x32xf32>
    %299 = arith.addf %297, %298 : vector<16x32xf32>
    %c0_155 = arith.constant 0 : index
    %c0_156 = arith.constant 0 : index
    %300 = vector.load %arg9[%c0_155, %c0_156] : memref<32x1xf32, #tpu.memory_space<vmem>>, vector<32x1xf32>
    %cst_157 = arith.constant dense<0.000000e+00> : vector<16x1xf32>
    %301 = tpu.matmul %299, %300, %cst_157 {dimension_numbers = #tpu.dot_dimension_numbers<[1], [0], [0], [1], [0, 0, 1, 1], [], []>} : vector<16x32xf32>, vector<32x1xf32>, vector<16x1xf32> -> vector<16x1xf32>
    %c0_158 = arith.constant 0 : index
    %c0_159 = arith.constant 0 : index
    %302 = vector.load %arg10[%c0_158, %c0_159] : memref<1x1xf32, #tpu.memory_space<vmem>>, vector<1x1xf32>
    %303 = vector.broadcast %302 : vector<1x1xf32> to vector<16x1xf32>
    %304 = arith.addf %301, %303 : vector<16x1xf32>
    %cst_160 = arith.constant 0.000000e+00 : f32
    %305 = vector.broadcast %cst_160 : f32 to vector<16x1xf32>
    %306 = arith.maximumf %304, %305 : vector<16x1xf32>
    %c0_161 = arith.constant 0 : index
    %c0_162 = arith.constant 0 : index
    %307 = vector.load %arg11[%c0_161, %c0_162] : memref<2x16xf32, #tpu.memory_space<vmem>>, vector<2x16xf32>
    %cst_163 = arith.constant dense<0.000000e+00> : vector<2x1xf32>
    %308 = tpu.matmul %307, %306, %cst_163 {dimension_numbers = #tpu.dot_dimension_numbers<[1], [0], [0], [1], [0, 0, 1, 1], [], []>} : vector<2x16xf32>, vector<16x1xf32>, vector<2x1xf32> -> vector<2x1xf32>
    %c0_164 = arith.constant 0 : index
    %c0_165 = arith.constant 0 : index
    %309 = vector.load %arg12[%c0_164, %c0_165] : memref<1x1xf32, #tpu.memory_space<vmem>>, vector<1x1xf32>
    %310 = vector.broadcast %309 : vector<1x1xf32> to vector<2x1xf32>
    %311 = arith.addf %308, %310 : vector<2x1xf32>
    %c0_166 = arith.constant 0 : index
    %c0_167 = arith.constant 0 : index
    %312 = vector.load %arg13[%c0_166, %c0_167] : memref<2x1xf32, #tpu.memory_space<vmem>>, vector<2x1xf32>
    tpu.vector_store %arg13[%c0_166, %c0_167], %311 {strides = array<i32>} : memref<2x1xf32, #tpu.memory_space<vmem>>, vector<2x1xf32>,
    return
  }
}

</mosaic_0001>

<llo_original>
// kernel: tpu_custom_call.1
$region0: #{tpu_custom_call.1}
  #allocation0 [shape = 'u32[]', space=smem, size = 0x4, offset = 0x4, fixed_abs, tag = 'smem constant byte address 0x4 - core index']
  #allocation1 [shape = 'u32[144,128]{1,0:T(1,128)}', space=vmem, size = 0x12000, scoped, tag = 'internal scratch']
  #allocation2 [shape = 'f32[1,1]{1,0:T(1,128)S(1)}', space=vmem, size = 0x200, scoped, tag = 'scoped memory for tpu_custom_call.1']
  #allocation3 [shape = 'f32[1,1]{1,0:T(1,128)S(1)}', space=vmem, size = 0x200, scoped, tag = 'scoped memory for tpu_custom_call.1']
  %s0 = inlined_call_operand.vmem [shape: f32[16,4], index: 0, kind: input, shape index: {}]
  %s1 = inlined_call_operand.vmem [shape: f32[16,32], index: 1, kind: input, shape index: {}]
  %s2 = inlined_call_operand.hbm [shape: f32[16,16], index: 2, kind: input, shape index: {}]
  %s3 = inlined_call_operand.vmem [shape: f32[4,32], index: 3, kind: input, shape index: {}]
  %s4 = inlined_call_operand.vmem [shape: f32[2,2,32,32], index: 4, kind: input, shape index: {}]
  %s5 = inlined_call_operand.vmem [shape: f32[2,32,64], index: 5, kind: input, shape index: {}]
  %s6 = inlined_call_operand.vmem [shape: f32[2,1,64], index: 6, kind: input, shape index: {}]
  %s7 = inlined_call_operand.vmem [shape: f32[2,64,32], index: 7, kind: input, shape index: {}]
  %s8 = inlined_call_operand.hbm [shape: f32[2,7,1,32], index: 8, kind: input, shape index: {}]
  %s9 = inlined_call_operand.vmem [shape: f32[32,1], index: 9, kind: input, shape index: {}]
  %s10 = inlined_call_operand.<no memory space> [shape: f32[1,1], index: 10, kind: input, shape index: {}]
  %s11 = inlined_call_operand.vmem [shape: f32[2,16], index: 11, kind: input, shape index: {}]
  %s12 = inlined_call_operand.<no memory space> [shape: f32[1,1], index: 12, kind: input, shape index: {}]
  %s13 = inlined_call_operand.vmem [shape: f32[2,1], index: 13, kind: output, shape index: {}]
  %s14 = sld [smem:[#allocation0]]
  $region70: #{tpu_custom_call.1} parent=0
    _
  %s16 = ssub.s32 1, %s14
  %s17 = scalar_select 0, %s16, %s14
  %v18 = vstv %s10
  %19 = vst [vmem:[#allocation2] sm:$0x1] %v18
  %v20 = vstv %s12
  %21 = vst [vmem:[#allocation3] sm:$0x1] %v20
  $region1: #{tpu_custom_call.1} parent=0
    #allocation4 [shape = 'u8[8192]{0}', space=vmem, size = 0x2000, scoped, tag = 'input window, operand 2, single buffered']
    #allocation5 [shape = 's32[1]{0}', space=sflag, size = 0x4, scoped, tag = 'scoped memory for tpu_custom_call.1']
    #allocation6 [shape = 'u8[7168]{0}', space=vmem, size = 0x1c00, scoped, tag = 'input window, operand 8, single buffered']
    #allocation7 [shape = 's32[1]{0}', space=sflag, size = 0x4, scoped, tag = 'scoped memory for tpu_custom_call.1']
    %22 = vsyncpa [#allocation5], 0
    %23 = vsyncpa [#allocation7], 0
    // Predicated region
    $region2: #{tpu_custom_call.1} parent=1 // pred_check
      _
    $region3: #{tpu_custom_call.1} parent=1 // pred_check_branch
      %25 = sbr.rel (0) target = $region5
    $region4: #{tpu_custom_call.1} parent=1 // pred_region
      _
    $region5: #{tpu_custom_call.1} parent=1 // pred_fallthru
      _
    // Predicated region
    $region6: #{tpu_custom_call.1} parent=1 // pred_check
      _
    $region7: #{tpu_custom_call.1} parent=1 // pred_check_branch
      %27 = sbr.rel (0) target = $region9
    $region8: #{tpu_custom_call.1} parent=1 // pred_region
      _
    $region9: #{tpu_custom_call.1} parent=1 // pred_fallthru
      _
    // Predicated region
    $region10: #{tpu_custom_call.1} parent=1 // pred_check
      _
    $region11: #{tpu_custom_call.1} parent=1 // pred_check_branch
      %29 = sbr.rel (0) target = $region13
    $region12: #{tpu_custom_call.1} parent=1 // pred_region
      %s31 = ssub.s32 256, 256
      %32 = vsyncadd [#allocation5], %s31
      %s33 = sshll.u32 [#allocation4], 4
      %s34 = int_to_ptr.vmem [resolvable:$true] %s33
      %39 = dma.hbm_to_vmem [thread:$0]  %s2, 256, %s34, [#allocation5], 128, 128, 8
    $region13: #{tpu_custom_call.1} parent=1 // pred_fallthru
      _
    // Predicated region
    $region14: #{tpu_custom_call.1} parent=1 // pred_check
      _
    $region15: #{tpu_custom_call.1} parent=1 // pred_check_branch
      %41 = sbr.rel (0) target = $region17
    $region16: #{tpu_custom_call.1} parent=1 // pred_region
      _
    $region17: #{tpu_custom_call.1} parent=1 // pred_fallthru
      _
    // Predicated region
    $region18: #{tpu_custom_call.1} parent=1 // pred_check
      _
    $region19: #{tpu_custom_call.1} parent=1 // pred_check_branch
      %43 = sbr.rel (0) target = $region21
    $region20: #{tpu_custom_call.1} parent=1 // pred_region
      _
    $region21: #{tpu_custom_call.1} parent=1 // pred_fallthru
      _
    // Predicated region
    $region22: #{tpu_custom_call.1} parent=1 // pred_check
      _
    $region23: #{tpu_custom_call.1} parent=1 // pred_check_branch
      %45 = sbr.rel (0) target = $region25
    $region24: #{tpu_custom_call.1} parent=1 // pred_region
      _
    $region25: #{tpu_custom_call.1} parent=1 // pred_fallthru
      _
    // Predicated region
    $region26: #{tpu_custom_call.1} parent=1 // pred_check
      _
    $region27: #{tpu_custom_call.1} parent=1 // pred_check_branch
      %47 = sbr.rel (0) target = $region29
    $region28: #{tpu_custom_call.1} parent=1 // pred_region
      _
    $region29: #{tpu_custom_call.1} parent=1 // pred_fallthru
      _
    // Predicated region
    $region30: #{tpu_custom_call.1} parent=1 // pred_check
      _
    $region31: #{tpu_custom_call.1} parent=1 // pred_check_branch
      %49 = sbr.rel (0) target = $region33
    $region32: #{tpu_custom_call.1} parent=1 // pred_region
      _
    $region33: #{tpu_custom_call.1} parent=1 // pred_fallthru
      _
    // Predicated region
    $region34: #{tpu_custom_call.1} parent=1 // pred_check
      _
    $region35: #{tpu_custom_call.1} parent=1 // pred_check_branch
      %51 = sbr.rel (0) target = $region37
    $region36: #{tpu_custom_call.1} parent=1 // pred_region
      %s53 = ssub.s32 224, 224
      %54 = vsyncadd [#allocation7], %s53
      %s55 = sshll.u32 [#allocation6], 4
      %s56 = int_to_ptr.vmem [resolvable:$true] %s55
      %61 = dma.hbm_to_vmem [thread:$0]  %s8, 224, %s56, [#allocation7], 16, 16, 1
    $region37: #{tpu_custom_call.1} parent=1 // pred_fallthru
      _
    // Predicated region
    $region38: #{tpu_custom_call.1} parent=1 // pred_check
      _
    $region39: #{tpu_custom_call.1} parent=1 // pred_check_branch
      %63 = sbr.rel (0) target = $region41
    $region40: #{tpu_custom_call.1} parent=1 // pred_region
      _
    $region41: #{tpu_custom_call.1} parent=1 // pred_fallthru
      _
    // Predicated region
    $region42: #{tpu_custom_call.1} parent=1 // pred_check
      _
    $region43: #{tpu_custom_call.1} parent=1 // pred_check_branch
      %65 = sbr.rel (0) target = $region45
    $region44: #{tpu_custom_call.1} parent=1 // pred_region
      _
    $region45: #{tpu_custom_call.1} parent=1 // pred_fallthru
      _
    // Predicated region
    $region46: #{tpu_custom_call.1} parent=1 // pred_check
      _
    $region47: #{tpu_custom_call.1} parent=1 // pred_check_branch
      %67 = sbr.rel (0) target = $region49
    $region48: #{tpu_custom_call.1} parent=1 // pred_region
      _
    $region49: #{tpu_custom_call.1} parent=1 // pred_fallthru
      _
    // Predicated region
    $region50: #{tpu_custom_call.1} parent=1 // pred_check
      _
    $region51: #{tpu_custom_call.1} parent=1 // pred_check_branch
      %69 = sbr.rel (0) target = $region53
    $region52: #{tpu_custom_call.1} parent=1 // pred_region
      _
    $region53: #{tpu_custom_call.1} parent=1 // pred_fallthru
      _
    // Predicated region
    $region54: #{tpu_custom_call.1} parent=1 // pred_check
      _
    $region55: #{tpu_custom_call.1} parent=1 // pred_check_branch
      %71 = sbr.rel (0) target = $region57
    $region56: #{tpu_custom_call.1} parent=1 // pred_region
      %72 = dma.done [#allocation5], 256
    $region57: #{tpu_custom_call.1} parent=1 // pred_fallthru
      _
    // Predicated region
    $region58: #{tpu_custom_call.1} parent=1 // pred_check
      _
    $region59: #{tpu_custom_call.1} parent=1 // pred_check_branch
      %74 = sbr.rel (0) target = $region61
    $region60: #{tpu_custom_call.1} parent=1 // pred_region
      %75 = dma.done [#allocation7], 224
    $region61: #{tpu_custom_call.1} parent=1 // pred_fallthru
      _
    %v76 = vld [vmem:[%s0] sm:$0xff]
    %v77 = vld [vmem:[%s0 + $0x8] sm:$0xff]
    %v78 = vld [vmem:[#allocation4] sm:$0xff]
    %v79 = vld [vmem:[#allocation4 + $0x8] sm:$0xff]
    %v80 = vld [vmem:[%s3] sm:$0xf]
    %v81 = vld [vmem:[%s1] sm:$0xff]
    %v82 = vld [vmem:[%s1 + $0x8] sm:$0xff]
    %vm83 = vcmask 31744
    %v85 = vsel %vm83, %v76, 0
    %v88 = vsel %vm83, %v77, 0
    %vm90 = vcmask 1043456
    %v92 = vsel %vm90, %v80, 0
    %94 = vmatprep.subr.mxu0 0.0
    %95 = vmatpush1.msra.mxu0 %v92
    %96 = vmatprep.subr.mxu0 0.0
    %97 = vmatpush1.msra.mxu0 0.0
    %98 = vmatprep.subr.mxu0 0.0
    %99 = vmatpush1.msra.mxu0 0.0
    %100 = vmatprep.subr.mxu0 0.0
    %101 = vmatpush1.msra.mxu0 0.0
    %102 = vmatprep.subr.mxu0 0.0
    %103 = vmatpush1.msra.mxu0 0.0
    %104 = vmatprep.subr.mxu0 0.0
    %105 = vmatpush1.msra.mxu0 0.0
    %106 = vmatprep.subr.mxu0 0.0
    %107 = vmatpush1.msra.mxu0 0.0
    %108 = vmatprep.subr.mxu0 0.0
    %109 = vmatpush1.msra.mxu0 0.0
    %110 = vmatprep.subr.mxu0 0.0
    %111 = vmatpush1.msra.mxu0 0.0
    %112 = vmatprep.subr.mxu0 0.0
    %113 = vmatpush1.msra.mxu0 0.0
    %114 = vmatprep.subr.mxu0 0.0
    %115 = vmatpush1.msra.mxu0 0.0
    %116 = vmatprep.subr.mxu0 0.0
    %117 = vmatpush1.msra.mxu0 0.0
    %118 = vmatprep.subr.mxu0 0.0
    %119 = vmatpush1.msra.mxu0 0.0
    %120 = vmatprep.subr.mxu0 0.0
    %121 = vmatpush1.msra.mxu0 0.0
    %122 = vmatprep.subr.mxu0 0.0
    %123 = vmatpush1.msra.mxu0 0.0
    %124 = vmatprep.subr.mxu0 0.0
    %125 = vmatpush1.msra.mxu0 0.0
    %126 = vmatprep.subr.mxu0 0.0
    %127 = vmatpush1.msra.mxu0 0.0
    %128 = vmatprep.subr.mxu0 0.0
    %129 = vmatpush1.msra.mxu0 0.0
    %130 = vmatprep.subr.mxu0 0.0
    %131 = vmatpush1.msra.mxu0 0.0
    %132 = vmatprep.subr.mxu0 0.0
    %133 = vmatpush1.msra.mxu0 0.0
    %134 = vmatprep.subr.mxu0 0.0
    %135 = vmatpush1.msra.mxu0 0.0
    %136 = vmatprep.subr.mxu0 0.0
    %137 = vmatpush1.msra.mxu0 0.0
    %138 = vmatprep.subr.mxu0 0.0
    %139 = vmatpush1.msra.mxu0 0.0
    %140 = vmatprep.subr.mxu0 0.0
    %141 = vmatpush1.msra.mxu0 0.0
    %142 = vmatprep.subr.mxu0 0.0
    %143 = vmatpush1.msra.mxu0 0.0
    %144 = vmatprep.subr.mxu0 0.0
    %145 = vmatpush1.msra.mxu0 0.0
    %146 = vmatprep.subr.mxu0 0.0
    %147 = vmatpush1.msra.mxu0 0.0
    %148 = vmatprep.subr.mxu0 0.0
    %149 = vmatpush1.msra.mxu0 0.0
    %150 = vmatprep.subr.mxu0 0.0
    %151 = vmatpush1.msra.mxu0 0.0
    %152 = vmatprep.subr.mxu0 0.0
    %153 = vmatpush1.msra.mxu0 0.0
    %154 = vmatprep.subr.mxu0 0.0
    %155 = vmatpush1.msra.mxu0 0.0
    %156 = vmatprep.subr.mxu0 0.0
    %157 = vmatpush1.msra.mxu0 0.0
    %158 = vmatprep.mubr.f32.mxu0 0.0
    %159 = vmatmul.mubr.f32.gmra.mrb[0].mxu0 %v85
    %v160 = vpop.f32.mrb[0].mxu0
    %v161 = vadd.f32 %v81, %v160
    %v162 = vpop.f32.mrb[0].mxu0
    %163 = vmatprep.mubr.f32.mxu0 0.0
    %164 = vmatmul.mubr.f32.gmra.mrb[0].mxu0 %v88
    %v165 = vpop.f32.mrb[0].mxu0
    %v166 = vadd.f32 %v82, %v165
    %v167 = vpop.f32.mrb[0].mxu0
    %168 = vdwg.mxu0
    %v169 = vld [vmem:[%s4] sm:$0xff]
    %v170 = vld [vmem:[%s4 + $0x8] sm:$0xff]
    %v171 = vld [vmem:[%s4 + $0x10] sm:$0xff]
    %v172 = vld [vmem:[%s4 + $0x18] sm:$0xff]
    %s173 = scalar_lea.vmem %s4, 32
    %v174 = vld [vmem:[%s173] sm:$0xff]
    %v175 = vld [vmem:[%s173 + $0x8] sm:$0xff]
    %v176 = vld [vmem:[%s173 + $0x10] sm:$0xff]
    %v177 = vld [vmem:[%s173 + $0x18] sm:$0xff]
    %v178 = vld [vmem:[#allocation6] sm:$0x1]
    %s179 = scalar_lea.vmem [#allocation6], 1
    %v180 = vld [vmem:[%s179] sm:$0x1]
    %s181 = scalar_lea.vmem [#allocation6], 2
    %v182 = vld [vmem:[%s181] sm:$0x1]
    %s183 = scalar_lea.vmem [#allocation6], 3
    %v184 = vld [vmem:[%s183] sm:$0x1]
    %s185 = scalar_lea.vmem [#allocation6], 4
    %v186 = vld [vmem:[%s185] sm:$0x1]
    %s187 = scalar_lea.vmem [#allocation6], 5
    %v188 = vld [vmem:[%s187] sm:$0x1]
    %s189 = scalar_lea.vmem [#allocation6], 6
    %v190 = vld [vmem:[%s189] sm:$0x1]
    %v192 = vlaneseq
    %v193 = vshrl.u32 %v192, 7
    %v194 = vsub.s32 0, %v193
    %v195 = vrot.slane %v178, %v194
    %vm197 = vcmask 261120
    %v199 = vsel %vm197, %v161, 0
    %v202 = vsel %vm197, %v166, 0
    %204 = vmatprep.subr.mxu0 0.0
    %205 = vmatpush1.msra.mxu0 %v169
    %206 = vmatprep.subr.mxu0 0.0
    %207 = vmatpush1.msra.mxu0 %v170
    %208 = vmatprep.subr.mxu0 0.0
    %209 = vmatpush1.msra.mxu0 %v171
    %210 = vmatprep.subr.mxu0 0.0
    %211 = vmatpush1.msra.mxu0 %v172
    %212 = vmatprep.subr.mxu0 0.0
    %213 = vmatpush1.msra.mxu0 0.0
    %214 = vmatprep.subr.mxu0 0.0
    %215 = vmatpush1.msra.mxu0 0.0
    %216 = vmatprep.subr.mxu0 0.0
    %217 = vmatpush1.msra.mxu0 0.0
    %218 = vmatprep.subr.mxu0 0.0
    %219 = vmatpush1.msra.mxu0 0.0
    %220 = vmatprep.subr.mxu0 0.0
    %221 = vmatpush1.msra.mxu0 0.0
    %222 = vmatprep.subr.mxu0 0.0
    %223 = vmatpush1.msra.mxu0 0.0
    %224 = vmatprep.subr.mxu0 0.0
    %225 = vmatpush1.msra.mxu0 0.0
    %226 = vmatprep.subr.mxu0 0.0
    %227 = vmatpush1.msra.mxu0 0.0
    %228 = vmatprep.subr.mxu0 0.0
    %229 = vmatpush1.msra.mxu0 0.0
    %230 = vmatprep.subr.mxu0 0.0
    %231 = vmatpush1.msra.mxu0 0.0
    %232 = vmatprep.subr.mxu0 0.0
    %233 = vmatpush1.msra.mxu0 0.0
    %234 = vmatprep.subr.mxu0 0.0
    %235 = vmatpush1.msra.mxu0 0.0
    %236 = vmatprep.subr.mxu0 0.0
    %237 = vmatpush1.msra.mxu0 0.0
    %238 = vmatprep.subr.mxu0 0.0
    %239 = vmatpush1.msra.mxu0 0.0
    %240 = vmatprep.subr.mxu0 0.0
    %241 = vmatpush1.msra.mxu0 0.0
    %242 = vmatprep.subr.mxu0 0.0
    %243 = vmatpush1.msra.mxu0 0.0
    %244 = vmatprep.subr.mxu0 0.0
    %245 = vmatpush1.msra.mxu0 0.0
    %246 = vmatprep.subr.mxu0 0.0
    %247 = vmatpush1.msra.mxu0 0.0
    %248 = vmatprep.subr.mxu0 0.0
    %249 = vmatpush1.msra.mxu0 0.0
    %250 = vmatprep.subr.mxu0 0.0
    %251 = vmatpush1.msra.mxu0 0.0
    %252 = vmatprep.subr.mxu0 0.0
    %253 = vmatpush1.msra.mxu0 0.0
    %254 = vmatprep.subr.mxu0 0.0
    %255 = vmatpush1.msra.mxu0 0.0
    %256 = vmatprep.subr.mxu0 0.0
    %257 = vmatpush1.msra.mxu0 0.0
    %258 = vmatprep.subr.mxu0 0.0
    %259 = vmatpush1.msra.mxu0 0.0
    %260 = vmatprep.subr.mxu0 0.0
    %261 = vmatpush1.msra.mxu0 0.0
    %262 = vmatprep.subr.mxu0 0.0
    %263 = vmatpush1.msra.mxu0 0.0
    %264 = vmatprep.subr.mxu0 0.0
    %265 = vmatpush1.msra.mxu0 0.0
    %266 = vmatprep.subr.mxu0 0.0
    %267 = vmatpush1.msra.mxu0 0.0
    %268 = vmatprep.mubr.f32.mxu0 0.0
    %269 = vmatmul.mubr.f32.gmra.mrb[0].mxu0 %v199
    %v270 = vpop.f32.mrb[0].mxu0
    %v271 = vadd.f32 %v195, %v270
    %v272 = vpop.f32.mrb[0].mxu0
    %273 = vmatprep.mubr.f32.mxu0 0.0
    %274 = vmatmul.mubr.f32.gmra.mrb[0].mxu0 %v202
    %v275 = vpop.f32.mrb[0].mxu0
    %v276 = vadd.f32 %v195, %v275
    %v277 = vpop.f32.mrb[0].mxu0
    %278 = vdwg.mxu0
    %v279 = vmul.f32 %v271, 0.35355338
    %v280 = vmul.f32 %v276, 0.35355338
    %vm281 = vcmask 64512
    %v283 = vsel %vm281, %v279, 0
    %v286 = vsel %vm281, %v280, 0
    %v289 = vsel %vm281, %v271, 0
    %v292 = vsel %vm281, %v276, 0
    %294 = vmatprep.subr.mxu0 0.0
    %295 = vmatpush1.xpose.msra.mxu0 %v289
    %296 = vmatprep.subr.mxu0 0.0
    %297 = vmatpush1.xpose.msra.mxu0 %v292
    %298 = vmatprep.subr.mxu0 0.0
    %299 = vmatpush1.xpose.msra.mxu0 0.0
    %300 = vmatprep.subr.mxu0 0.0
    %301 = vmatpush1.xpose.msra.mxu0 0.0
    %302 = vmatprep.subr.mxu0 0.0
    %303 = vmatpush1.xpose.msra.mxu0 0.0
    %304 = vmatprep.subr.mxu0 0.0
    %305 = vmatpush1.xpose.msra.mxu0 0.0
    %306 = vmatprep.subr.mxu0 0.0
    %307 = vmatpush1.xpose.msra.mxu0 0.0
    %308 = vmatprep.subr.mxu0 0.0
    %309 = vmatpush1.xpose.msra.mxu0 0.0
    %310 = vmatprep.subr.mxu0 0.0
    %311 = vmatpush1.xpose.msra.mxu0 0.0
    %312 = vmatprep.subr.mxu0 0.0
    %313 = vmatpush1.xpose.msra.mxu0 0.0
    %314 = vmatprep.subr.mxu0 0.0
    %315 = vmatpush1.xpose.msra.mxu0 0.0
    %316 = vmatprep.subr.mxu0 0.0
    %317 = vmatpush1.xpose.msra.mxu0 0.0
    %318 = vmatprep.subr.mxu0 0.0
    %319 = vmatpush1.xpose.msra.mxu0 0.0
    %320 = vmatprep.subr.mxu0 0.0
    %321 = vmatpush1.xpose.msra.mxu0 0.0
    %322 = vmatprep.subr.mxu0 0.0
    %323 = vmatpush1.xpose.msra.mxu0 0.0
    %324 = vmatprep.subr.mxu0 0.0
    %325 = vmatpush1.xpose.msra.mxu0 0.0
    %326 = vmatprep.subr.mxu0 0.0
    %327 = vmatpush1.xpose.msra.mxu0 0.0
    %328 = vmatprep.subr.mxu0 0.0
    %329 = vmatpush1.xpose.msra.mxu0 0.0
    %330 = vmatprep.subr.mxu0 0.0
    %331 = vmatpush1.xpose.msra.mxu0 0.0
    %332 = vmatprep.subr.mxu0 0.0
    %333 = vmatpush1.xpose.msra.mxu0 0.0
    %334 = vmatprep.subr.mxu0 0.0
    %335 = vmatpush1.xpose.msra.mxu0 0.0
    %336 = vmatprep.subr.mxu0 0.0
    %337 = vmatpush1.xpose.msra.mxu0 0.0
    %338 = vmatprep.subr.mxu0 0.0
    %339 = vmatpush1.xpose.msra.mxu0 0.0
    %340 = vmatprep.subr.mxu0 0.0
    %341 = vmatpush1.xpose.msra.mxu0 0.0
    %342 = vmatprep.subr.mxu0 0.0
    %343 = vmatpush1.xpose.msra.mxu0 0.0
    %344 = vmatprep.subr.mxu0 0.0
    %345 = vmatpush1.xpose.msra.mxu0 0.0
    %346 = vmatprep.subr.mxu0 0.0
    %347 = vmatpush1.xpose.msra.mxu0 0.0
    %348 = vmatprep.subr.mxu0 0.0
    %349 = vmatpush1.xpose.msra.mxu0 0.0
    %350 = vmatprep.subr.mxu0 0.0
    %351 = vmatpush1.xpose.msra.mxu0 0.0
    %352 = vmatprep.subr.mxu0 0.0
    %353 = vmatpush1.xpose.msra.mxu0 0.0
    %354 = vmatprep.subr.mxu0 0.0
    %355 = vmatpush1.xpose.msra.mxu0 0.0
    %356 = vmatprep.subr.mxu0 0.0
    %357 = vmatpush1.xpose.msra.mxu0 0.0
    %358 = vmatprep.mubr.f32.mxu0 0.0
    %359 = vmatmul.mubr.f32.gmra.mrb[0].mxu0 %v283
    %v360 = vpop.f32.mrb[0].mxu0
    %v361 = vadd.f32 %v78, %v360
    %v362 = vpop.f32.mrb[0].mxu0
    %363 = vmatprep.mubr.f32.mxu0 0.0
    %364 = vmatmul.mubr.f32.gmra.mrb[0].mxu0 %v286
    %v365 = vpop.f32.mrb[0].mxu0
    %v366 = vadd.f32 %v79, %v365
    %v367 = vpop.f32.mrb[0].mxu0
    %368 = vdwg.mxu0
    %vm369 = vcmask 130048
    %v370 = vsel %vm369, %v361, -inf
    %371 = vmax.xlane.f32.xlu0 %v370
    %v372 = vpop.xlane.xlu0 %371
    %v373 = vsel %vm369, %v366, -inf
    %374 = vmax.xlane.f32.xlu0 %v373
    %v375 = vpop.xlane.xlu0 %374
    %v376 = vsub.f32 %v361, %v372
    %v377 = vsub.f32 %v366, %v375
    %v378 = vmul.f32 %v376, 1.442695
    %v379 = vpow.pop %v378
    %v380 = vmul.f32 %v377, 1.442695
    %v381 = vpow.pop %v380
    %v382 = vsel %vm369, %v379, 0.0
    %383 = vadd.xlane.f32.xlu0 %v382
    %v384 = vpop.xlane.xlu0 %383
    %v385 = vsel %vm369, %v381, 0.0
    %386 = vadd.xlane.f32.xlu0 %v385
    %v387 = vpop.xlane.xlu0 %386
    %v388 = vrcp.pop %v384
    %v389 = vrcp.pop %v387
    %v390 = vmul.f32 %v379, %v388
    %v391 = vmul.f32 %v381, %v389
    %v393 = vsel %vm369, %v390, 0
    %v396 = vsel %vm369, %v391, 0
    %398 = vmatprep.subr.mxu0 0.0
    %399 = vmatpush1.msra.mxu0 %v271
    %400 = vmatprep.subr.mxu0 0.0
    %401 = vmatpush1.msra.mxu0 %v276
    %402 = vmatprep.subr.mxu0 0.0
    %403 = vmatpush1.msra.mxu0 0.0
    %404 = vmatprep.subr.mxu0 0.0
    %405 = vmatpush1.msra.mxu0 0.0
    %406 = vmatprep.subr.mxu0 0.0
    %407 = vmatpush1.msra.mxu0 0.0
    %408 = vmatprep.subr.mxu0 0.0
    %409 = vmatpush1.msra.mxu0 0.0
    %410 = vmatprep.subr.mxu0 0.0
    %411 = vmatpush1.msra.mxu0 0.0
    %412 = vmatprep.subr.mxu0 0.0
    %413 = vmatpush1.msra.mxu0 0.0
    %414 = vmatprep.subr.mxu0 0.0
    %415 = vmatpush1.msra.mxu0 0.0
    %416 = vmatprep.subr.mxu0 0.0
    %417 = vmatpush1.msra.mxu0 0.0
    %418 = vmatprep.subr.mxu0 0.0
    %419 = vmatpush1.msra.mxu0 0.0
    %420 = vmatprep.subr.mxu0 0.0
    %421 = vmatpush1.msra.mxu0 0.0
    %422 = vmatprep.subr.mxu0 0.0
    %423 = vmatpush1.msra.mxu0 0.0
    %424 = vmatprep.subr.mxu0 0.0
    %425 = vmatpush1.msra.mxu0 0.0
    %426 = vmatprep.subr.mxu0 0.0
    %427 = vmatpush1.msra.mxu0 0.0
    %428 = vmatprep.subr.mxu0 0.0
    %429 = vmatpush1.msra.mxu0 0.0
    %430 = vmatprep.subr.mxu0 0.0
    %431 = vmatpush1.msra.mxu0 0.0
    %432 = vmatprep.subr.mxu0 0.0
    %433 = vmatpush1.msra.mxu0 0.0
    %434 = vmatprep.subr.mxu0 0.0
    %435 = vmatpush1.msra.mxu0 0.0
    %436 = vmatprep.subr.mxu0 0.0
    %437 = vmatpush1.msra.mxu0 0.0
    %438 = vmatprep.subr.mxu0 0.0
    %439 = vmatpush1.msra.mxu0 0.0
    %440 = vmatprep.subr.mxu0 0.0
    %441 = vmatpush1.msra.mxu0 0.0
    %442 = vmatprep.subr.mxu0 0.0
    %443 = vmatpush1.msra.mxu0 0.0
    %444 = vmatprep.subr.mxu0 0.0
    %445 = vmatpush1.msra.mxu0 0.0
    %446 = vmatprep.subr.mxu0 0.0
    %447 = vmatpush1.msra.mxu0 0.0
    %448 = vmatprep.subr.mxu0 0.0
    %449 = vmatpush1.msra.mxu0 0.0
    %450 = vmatprep.subr.mxu0 0.0
    %451 = vmatpush1.msra.mxu0 0.0
    %452 = vmatprep.subr.mxu0 0.0
    %453 = vmatpush1.msra.mxu0 0.0
    %454 = vmatprep.subr.mxu0 0.0
    %455 = vmatpush1.msra.mxu0 0.0
    %456 = vmatprep.subr.mxu0 0.0
    %457 = vmatpush1.msra.mxu0 0.0
    %458 = vmatprep.subr.mxu0 0.0
    %459 = vmatpush1.msra.mxu0 0.0
    %460 = vmatprep.subr.mxu0 0.0
    %461 = vmatpush1.msra.mxu0 0.0
    %462 = vmatprep.mubr.f32.mxu0 0.0
    %463 = vmatmul.mubr.f32.gmra.mrb[0].mxu0 %v393
    %v464 = vpop.f32.mrb[0].mxu0
    %v465 = vadd.f32 0.0, %v464
    %v466 = vpop.f32.mrb[0].mxu0
    %467 = vmatprep.mubr.f32.mxu0 0.0
    %468 = vmatmul.mubr.f32.gmra.mrb[0].mxu0 %v396
    %v469 = vpop.f32.mrb[0].mxu0
    %v470 = vadd.f32 0.0, %v469
    %v471 = vpop.f32.mrb[0].mxu0
    %472 = vdwg.mxu0
    %473 = vrot.lane.b32.xlu0 %v279, 120
    %v474 = vpop.permute.xlu0 %473
    %475 = vrot.lane.b32.xlu0 %v280, 120
    %v476 = vpop.permute.xlu0 %475
    %477 = vrot.lane.b32.xlu0 %v271, 120
    %v478 = vpop.permute.xlu0 %477
    %479 = vrot.lane.b32.xlu0 %v276, 120
    %v480 = vpop.permute.xlu0 %479
    %v481 = vsel %vm281, %v474, 0
    %v483 = vsel %vm281, %v476, 0
    %v485 = vsel %vm281, %v478, 0
    %v487 = vsel %vm281, %v480, 0
    %489 = vmatprep.subr.mxu0 0.0
    %490 = vmatpush1.xpose.msra.mxu0 %v485
    %491 = vmatprep.subr.mxu0 0.0
    %492 = vmatpush1.xpose.msra.mxu0 %v487
    %493 = vmatprep.subr.mxu0 0.0
    %494 = vmatpush1.xpose.msra.mxu0 0.0
    %495 = vmatprep.subr.mxu0 0.0
    %496 = vmatpush1.xpose.msra.mxu0 0.0
    %497 = vmatprep.subr.mxu0 0.0
    %498 = vmatpush1.xpose.msra.mxu0 0.0
    %499 = vmatprep.subr.mxu0 0.0
    %500 = vmatpush1.xpose.msra.mxu0 0.0
    %501 = vmatprep.subr.mxu0 0.0
    %502 = vmatpush1.xpose.msra.mxu0 0.0
    %503 = vmatprep.subr.mxu0 0.0
    %504 = vmatpush1.xpose.msra.mxu0 0.0
    %505 = vmatprep.subr.mxu0 0.0
    %506 = vmatpush1.xpose.msra.mxu0 0.0
    %507 = vmatprep.subr.mxu0 0.0
    %508 = vmatpush1.xpose.msra.mxu0 0.0
    %509 = vmatprep.subr.mxu0 0.0
    %510 = vmatpush1.xpose.msra.mxu0 0.0
    %511 = vmatprep.subr.mxu0 0.0
    %512 = vmatpush1.xpose.msra.mxu0 0.0
    %513 = vmatprep.subr.mxu0 0.0
    %514 = vmatpush1.xpose.msra.mxu0 0.0
    %515 = vmatprep.subr.mxu0 0.0
    %516 = vmatpush1.xpose.msra.mxu0 0.0
    %517 = vmatprep.subr.mxu0 0.0
    %518 = vmatpush1.xpose.msra.mxu0 0.0
    %519 = vmatprep.subr.mxu0 0.0
    %520 = vmatpush1.xpose.msra.mxu0 0.0
    %521 = vmatprep.subr.mxu0 0.0
    %522 = vmatpush1.xpose.msra.mxu0 0.0
    %523 = vmatprep.subr.mxu0 0.0
    %524 = vmatpush1.xpose.msra.mxu0 0.0
    %525 = vmatprep.subr.mxu0 0.0
    %526 = vmatpush1.xpose.msra.mxu0 0.0
    %527 = vmatprep.subr.mxu0 0.0
    %528 = vmatpush1.xpose.msra.mxu0 0.0
    %529 = vmatprep.subr.mxu0 0.0
    %530 = vmatpush1.xpose.msra.mxu0 0.0
    %531 = vmatprep.subr.mxu0 0.0
    %532 = vmatpush1.xpose.msra.mxu0 0.0
    %533 = vmatprep.subr.mxu0 0.0
    %534 = vmatpush1.xpose.msra.mxu0 0.0
    %535 = vmatprep.subr.mxu0 0.0
    %536 = vmatpush1.xpose.msra.mxu0 0.0
    %537 = vmatprep.subr.mxu0 0.0
    %538 = vmatpush1.xpose.msra.mxu0 0.0
    %539 = vmatprep.subr.mxu0 0.0
    %540 = vmatpush1.xpose.msra.mxu0 0.0
    %541 = vmatprep.subr.mxu0 0.0
    %542 = vmatpush1.xpose.msra.mxu0 0.0
    %543 = vmatprep.subr.mxu0 0.0
    %544 = vmatpush1.xpose.msra.mxu0 0.0
    %545 = vmatprep.subr.mxu0 0.0
    %546 = vmatpush1.xpose.msra.mxu0 0.0
    %547 = vmatprep.subr.mxu0 0.0
    %548 = vmatpush1.xpose.msra.mxu0 0.0
    %549 = vmatprep.subr.mxu0 0.0
    %550 = vmatpush1.xpose.msra.mxu0 0.0
    %551 = vmatprep.subr.mxu0 0.0
    %552 = vmatpush1.xpose.msra.mxu0 0.0
    %553 = vmatprep.mubr.f32.mxu0 0.0
    %554 = vmatmul.mubr.f32.gmra.mrb[0].mxu0 %v481
    %v555 = vpop.f32.mrb[0].mxu0
    %v556 = vadd.f32 %v78, %v555
    %v557 = vpop.f32.mrb[0].mxu0
    %558 = vmatprep.mubr.f32.mxu0 0.0
    %559 = vmatmul.mubr.f32.gmra.mrb[0].mxu0 %v483
    %v560 = vpop.f32.mrb[0].mxu0
    %v561 = vadd.f32 %v79, %v560
    %v562 = vpop.f32.mrb[0].mxu0
    %563 = vdwg.mxu0
    %v564 = vsel %vm369, %v556, -inf
    %565 = vmax.xlane.f32.xlu0 %v564
    %v566 = vpop.xlane.xlu0 %565
    %v567 = vsel %vm369, %v561, -inf
    %568 = vmax.xlane.f32.xlu0 %v567
    %v569 = vpop.xlane.xlu0 %568
    %v570 = vsub.f32 %v556, %v566
    %v571 = vsub.f32 %v561, %v569
    %v572 = vmul.f32 %v570, 1.442695
    %v573 = vpow.pop %v572
    %v574 = vmul.f32 %v571, 1.442695
    %v575 = vpow.pop %v574
    %v576 = vsel %vm369, %v573, 0.0
    %577 = vadd.xlane.f32.xlu0 %v576
    %v578 = vpop.xlane.xlu0 %577
    %v579 = vsel %vm369, %v575, 0.0
    %580 = vadd.xlane.f32.xlu0 %v579
    %v581 = vpop.xlane.xlu0 %580
    %v582 = vrcp.pop %v578
    %v583 = vrcp.pop %v581
    %v584 = vmul.f32 %v573, %v582
    %v585 = vmul.f32 %v575, %v583
    %v589 = vsel %vm369, %v584, 0
    %v592 = vsel %vm369, %v585, 0
    %594 = vmatprep.subr.mxu0 0.0
    %595 = vmatpush1.msra.mxu0 %v478
    %596 = vmatprep.subr.mxu0 0.0
    %597 = vmatpush1.msra.mxu0 %v480
    %598 = vmatprep.subr.mxu0 0.0
    %599 = vmatpush1.msra.mxu0 0.0
    %600 = vmatprep.subr.mxu0 0.0
    %601 = vmatpush1.msra.mxu0 0.0
    %602 = vmatprep.subr.mxu0 0.0
    %603 = vmatpush1.msra.mxu0 0.0
    %604 = vmatprep.subr.mxu0 0.0
    %605 = vmatpush1.msra.mxu0 0.0
    %606 = vmatprep.subr.mxu0 0.0
    %607 = vmatpush1.msra.mxu0 0.0
    %608 = vmatprep.subr.mxu0 0.0
    %609 = vmatpush1.msra.mxu0 0.0
    %610 = vmatprep.subr.mxu0 0.0
    %611 = vmatpush1.msra.mxu0 0.0
    %612 = vmatprep.subr.mxu0 0.0
    %613 = vmatpush1.msra.mxu0 0.0
    %614 = vmatprep.subr.mxu0 0.0
    %615 = vmatpush1.msra.mxu0 0.0
    %616 = vmatprep.subr.mxu0 0.0
    %617 = vmatpush1.msra.mxu0 0.0
    %618 = vmatprep.subr.mxu0 0.0
    %619 = vmatpush1.msra.mxu0 0.0
    %620 = vmatprep.subr.mxu0 0.0
    %621 = vmatpush1.msra.mxu0 0.0
    %622 = vmatprep.subr.mxu0 0.0
    %623 = vmatpush1.msra.mxu0 0.0
    %624 = vmatprep.subr.mxu0 0.0
    %625 = vmatpush1.msra.mxu0 0.0
    %626 = vmatprep.subr.mxu0 0.0
    %627 = vmatpush1.msra.mxu0 0.0
    %628 = vmatprep.subr.mxu0 0.0
    %629 = vmatpush1.msra.mxu0 0.0
    %630 = vmatprep.subr.mxu0 0.0
    %631 = vmatpush1.msra.mxu0 0.0
    %632 = vmatprep.subr.mxu0 0.0
    %633 = vmatpush1.msra.mxu0 0.0
    %634 = vmatprep.subr.mxu0 0.0
    %635 = vmatpush1.msra.mxu0 0.0
    %636 = vmatprep.subr.mxu0 0.0
    %637 = vmatpush1.msra.mxu0 0.0
    %638 = vmatprep.subr.mxu0 0.0
    %639 = vmatpush1.msra.mxu0 0.0
    %640 = vmatprep.subr.mxu0 0.0
    %641 = vmatpush1.msra.mxu0 0.0
    %642 = vmatprep.subr.mxu0 0.0
    %643 = vmatpush1.msra.mxu0 0.0
    %644 = vmatprep.subr.mxu0 0.0
    %645 = vmatpush1.msra.mxu0 0.0
    %646 = vmatprep.subr.mxu0 0.0
    %647 = vmatpush1.msra.mxu0 0.0
    %648 = vmatprep.subr.mxu0 0.0
    %649 = vmatpush1.msra.mxu0 0.0
    %650 = vmatprep.subr.mxu0 0.0
    %651 = vmatpush1.msra.mxu0 0.0
    %652 = vmatprep.subr.mxu0 0.0
    %653 = vmatpush1.msra.mxu0 0.0
    %654 = vmatprep.subr.mxu0 0.0
    %655 = vmatpush1.msra.mxu0 0.0
    %656 = vmatprep.subr.mxu0 0.0
    %657 = vmatpush1.msra.mxu0 0.0
    %658 = vmatprep.mubr.f32.mxu0 0.0
    %659 = vmatmul.mubr.f32.gmra.mrb[0].mxu0 %v589
    %v660 = vpop.f32.mrb[0].mxu0
    %v661 = vadd.f32 0.0, %v660
    %v662 = vpop.f32.mrb[0].mxu0
    %663 = vmatprep.mubr.f32.mxu0 0.0
    %664 = vmatmul.mubr.f32.gmra.mrb[0].mxu0 %v592
    %v665 = vpop.f32.mrb[0].mxu0
    %v666 = vadd.f32 0.0, %v665
    %v667 = vpop.f32.mrb[0].mxu0
    %668 = vdwg.mxu0
    %669 = vrot.lane.b32.xlu0 %v279, 112
    %v670 = vpop.permute.xlu0 %669
    %671 = vrot.lane.b32.xlu0 %v280, 112
    %v672 = vpop.permute.xlu0 %671
    %673 = vrot.lane.b32.xlu0 %v271, 112
    %v674 = vpop.permute.xlu0 %673
    %675 = vrot.lane.b32.xlu0 %v276, 112
    %v676 = vpop.permute.xlu0 %675
    %v677 = vsel %vm281, %v670, 0
    %v679 = vsel %vm281, %v672, 0
    %v681 = vsel %vm281, %v674, 0
    %v683 = vsel %vm281, %v676, 0
    %685 = vmatprep.subr.mxu0 0.0
    %686 = vmatpush1.xpose.msra.mxu0 %v681
    %687 = vmatprep.subr.mxu0 0.0
    %688 = vmatpush1.xpose.msra.mxu0 %v683
    %689 = vmatprep.subr.mxu0 0.0
    %690 = vmatpush1.xpose.msra.mxu0 0.0
    %691 = vmatprep.subr.mxu0 0.0
    %692 = vmatpush1.xpose.msra.mxu0 0.0
    %693 = vmatprep.subr.mxu0 0.0
    %694 = vmatpush1.xpose.msra.mxu0 0.0
    %695 = vmatprep.subr.mxu0 0.0
    %696 = vmatpush1.xpose.msra.mxu0 0.0
    %697 = vmatprep.subr.mxu0 0.0
    %698 = vmatpush1.xpose.msra.mxu0 0.0
    %699 = vmatprep.subr.mxu0 0.0
    %700 = vmatpush1.xpose.msra.mxu0 0.0
    %701 = vmatprep.subr.mxu0 0.0
    %702 = vmatpush1.xpose.msra.mxu0 0.0
    %703 = vmatprep.subr.mxu0 0.0
    %704 = vmatpush1.xpose.msra.mxu0 0.0
    %705 = vmatprep.subr.mxu0 0.0
    %706 = vmatpush1.xpose.msra.mxu0 0.0
    %707 = vmatprep.subr.mxu0 0.0
    %708 = vmatpush1.xpose.msra.mxu0 0.0
    %709 = vmatprep.subr.mxu0 0.0
    %710 = vmatpush1.xpose.msra.mxu0 0.0
    %711 = vmatprep.subr.mxu0 0.0
    %712 = vmatpush1.xpose.msra.mxu0 0.0
    %713 = vmatprep.subr.mxu0 0.0
    %714 = vmatpush1.xpose.msra.mxu0 0.0
    %715 = vmatprep.subr.mxu0 0.0
    %716 = vmatpush1.xpose.msra.mxu0 0.0
    %717 = vmatprep.subr.mxu0 0.0
    %718 = vmatpush1.xpose.msra.mxu0 0.0
    %719 = vmatprep.subr.mxu0 0.0
    %720 = vmatpush1.xpose.msra.mxu0 0.0
    %721 = vmatprep.subr.mxu0 0.0
    %722 = vmatpush1.xpose.msra.mxu0 0.0
    %723 = vmatprep.subr.mxu0 0.0
    %724 = vmatpush1.xpose.msra.mxu0 0.0
    %725 = vmatprep.subr.mxu0 0.0
    %726 = vmatpush1.xpose.msra.mxu0 0.0
    %727 = vmatprep.subr.mxu0 0.0
    %728 = vmatpush1.xpose.msra.mxu0 0.0
    %729 = vmatprep.subr.mxu0 0.0
    %730 = vmatpush1.xpose.msra.mxu0 0.0
    %731 = vmatprep.subr.mxu0 0.0
    %732 = vmatpush1.xpose.msra.mxu0 0.0
    %733 = vmatprep.subr.mxu0 0.0
    %734 = vmatpush1.xpose.msra.mxu0 0.0
    %735 = vmatprep.subr.mxu0 0.0
    %736 = vmatpush1.xpose.msra.mxu0 0.0
    %737 = vmatprep.subr.mxu0 0.0
    %738 = vmatpush1.xpose.msra.mxu0 0.0
    %739 = vmatprep.subr.mxu0 0.0
    %740 = vmatpush1.xpose.msra.mxu0 0.0
    %741 = vmatprep.subr.mxu0 0.0
    %742 = vmatpush1.xpose.msra.mxu0 0.0
    %743 = vmatprep.subr.mxu0 0.0
    %744 = vmatpush1.xpose.msra.mxu0 0.0
    %745 = vmatprep.subr.mxu0 0.0
    %746 = vmatpush1.xpose.msra.mxu0 0.0
    %747 = vmatprep.subr.mxu0 0.0
    %748 = vmatpush1.xpose.msra.mxu0 0.0
    %749 = vmatprep.mubr.f32.mxu0 0.0
    %750 = vmatmul.mubr.f32.gmra.mrb[0].mxu0 %v677
    %v751 = vpop.f32.mrb[0].mxu0
    %v752 = vadd.f32 %v78, %v751
    %v753 = vpop.f32.mrb[0].mxu0
    %754 = vmatprep.mubr.f32.mxu0 0.0
    %755 = vmatmul.mubr.f32.gmra.mrb[0].mxu0 %v679
    %v756 = vpop.f32.mrb[0].mxu0
    %v757 = vadd.f32 %v79, %v756
    %v758 = vpop.f32.mrb[0].mxu0
    %759 = vdwg.mxu0
    %v760 = vsel %vm369, %v752, -inf
    %761 = vmax.xlane.f32.xlu0 %v760
    %v762 = vpop.xlane.xlu0 %761
    %v763 = vsel %vm369, %v757, -inf
    %764 = vmax.xlane.f32.xlu0 %v763
    %v765 = vpop.xlane.xlu0 %764
    %v766 = vsub.f32 %v752, %v762
    %v767 = vsub.f32 %v757, %v765
    %v768 = vmul.f32 %v766, 1.442695
    %v769 = vpow.pop %v768
    %v770 = vmul.f32 %v767, 1.442695
    %v771 = vpow.pop %v770
    %v772 = vsel %vm369, %v769, 0.0
    %773 = vadd.xlane.f32.xlu0 %v772
    %v774 = vpop.xlane.xlu0 %773
    %v775 = vsel %vm369, %v771, 0.0
    %776 = vadd.xlane.f32.xlu0 %v775
    %v777 = vpop.xlane.xlu0 %776
    %v778 = vrcp.pop %v774
    %v779 = vrcp.pop %v777
    %v780 = vmul.f32 %v769, %v778
    %v781 = vmul.f32 %v771, %v779
    %v785 = vsel %vm369, %v780, 0
    %v788 = vsel %vm369, %v781, 0
    %790 = vmatprep.subr.mxu0 0.0
    %791 = vmatpush1.msra.mxu0 %v674
    %792 = vmatprep.subr.mxu0 0.0
    %793 = vmatpush1.msra.mxu0 %v676
    %794 = vmatprep.subr.mxu0 0.0
    %795 = vmatpush1.msra.mxu0 0.0
    %796 = vmatprep.subr.mxu0 0.0
    %797 = vmatpush1.msra.mxu0 0.0
    %798 = vmatprep.subr.mxu0 0.0
    %799 = vmatpush1.msra.mxu0 0.0
    %800 = vmatprep.subr.mxu0 0.0
    %801 = vmatpush1.msra.mxu0 0.0
    %802 = vmatprep.subr.mxu0 0.0
    %803 = vmatpush1.msra.mxu0 0.0
    %804 = vmatprep.subr.mxu0 0.0
    %805 = vmatpush1.msra.mxu0 0.0
    %806 = vmatprep.subr.mxu0 0.0
    %807 = vmatpush1.msra.mxu0 0.0
    %808 = vmatprep.subr.mxu0 0.0
    %809 = vmatpush1.msra.mxu0 0.0
    %810 = vmatprep.subr.mxu0 0.0
    %811 = vmatpush1.msra.mxu0 0.0
    %812 = vmatprep.subr.mxu0 0.0
    %813 = vmatpush1.msra.mxu0 0.0
    %814 = vmatprep.subr.mxu0 0.0
    %815 = vmatpush1.msra.mxu0 0.0
    %816 = vmatprep.subr.mxu0 0.0
    %817 = vmatpush1.msra.mxu0 0.0
    %818 = vmatprep.subr.mxu0 0.0
    %819 = vmatpush1.msra.mxu0 0.0
    %820 = vmatprep.subr.mxu0 0.0
    %821 = vmatpush1.msra.mxu0 0.0
    %822 = vmatprep.subr.mxu0 0.0
    %823 = vmatpush1.msra.mxu0 0.0
    %824 = vmatprep.subr.mxu0 0.0
    %825 = vmatpush1.msra.mxu0 0.0
    %826 = vmatprep.subr.mxu0 0.0
    %827 = vmatpush1.msra.mxu0 0.0
    %828 = vmatprep.subr.mxu0 0.0
    %829 = vmatpush1.msra.mxu0 0.0
    %830 = vmatprep.subr.mxu0 0.0
    %831 = vmatpush1.msra.mxu0 0.0
    %832 = vmatprep.subr.mxu0 0.0
    %833 = vmatpush1.msra.mxu0 0.0
    %834 = vmatprep.subr.mxu0 0.0
    %835 = vmatpush1.msra.mxu0 0.0
    %836 = vmatprep.subr.mxu0 0.0
    %837 = vmatpush1.msra.mxu0 0.0
    %838 = vmatprep.subr.mxu0 0.0
    %839 = vmatpush1.msra.mxu0 0.0
    %840 = vmatprep.subr.mxu0 0.0
    %841 = vmatpush1.msra.mxu0 0.0
    %842 = vmatprep.subr.mxu0 0.0
    %843 = vmatpush1.msra.mxu0 0.0
    %844 = vmatprep.subr.mxu0 0.0
    %845 = vmatpush1.msra.mxu0 0.0
    %846 = vmatprep.subr.mxu0 0.0
    %847 = vmatpush1.msra.mxu0 0.0
    %848 = vmatprep.subr.mxu0 0.0
    %849 = vmatpush1.msra.mxu0 0.0
    %850 = vmatprep.subr.mxu0 0.0
    %851 = vmatpush1.msra.mxu0 0.0
    %852 = vmatprep.subr.mxu0 0.0
    %853 = vmatpush1.msra.mxu0 0.0
    %854 = vmatprep.mubr.f32.mxu0 0.0
    %855 = vmatmul.mubr.f32.gmra.mrb[0].mxu0 %v785
    %v856 = vpop.f32.mrb[0].mxu0
    %v857 = vadd.f32 0.0, %v856
    %v858 = vpop.f32.mrb[0].mxu0
    %859 = vmatprep.mubr.f32.mxu0 0.0
    %860 = vmatmul.mubr.f32.gmra.mrb[0].mxu0 %v788
    %v861 = vpop.f32.mrb[0].mxu0
    %v862 = vadd.f32 0.0, %v861
    %v863 = vpop.f32.mrb[0].mxu0
    %864 = vdwg.mxu0
    %865 = vrot.lane.b32.xlu0 %v279, 104
    %v866 = vpop.permute.xlu0 %865
    %867 = vrot.lane.b32.xlu0 %v280, 104
    %v868 = vpop.permute.xlu0 %867
    %869 = vrot.lane.b32.xlu0 %v271, 104
    %v870 = vpop.permute.xlu0 %869
    %871 = vrot.lane.b32.xlu0 %v276, 104
    %v872 = vpop.permute.xlu0 %871
    %v873 = vsel %vm281, %v866, 0
    %v875 = vsel %vm281, %v868, 0
    %v877 = vsel %vm281, %v870, 0
    %v879 = vsel %vm281, %v872, 0
    %881 = vmatprep.subr.mxu0 0.0
    %882 = vmatpush1.xpose.msra.mxu0 %v877
    %883 = vmatprep.subr.mxu0 0.0
    %884 = vmatpush1.xpose.msra.mxu0 %v879
    %885 = vmatprep.subr.mxu0 0.0
    %886 = vmatpush1.xpose.msra.mxu0 0.0
    %887 = vmatprep.subr.mxu0 0.0
    %888 = vmatpush1.xpose.msra.mxu0 0.0
    %889 = vmatprep.subr.mxu0 0.0
    %890 = vmatpush1.xpose.msra.mxu0 0.0
    %891 = vmatprep.subr.mxu0 0.0
    %892 = vmatpush1.xpose.msra.mxu0 0.0
    %893 = vmatprep.subr.mxu0 0.0
    %894 = vmatpush1.xpose.msra.mxu0 0.0
    %895 = vmatprep.subr.mxu0 0.0
    %896 = vmatpush1.xpose.msra.mxu0 0.0
    %897 = vmatprep.subr.mxu0 0.0
    %898 = vmatpush1.xpose.msra.mxu0 0.0
    %899 = vmatprep.subr.mxu0 0.0
    %900 = vmatpush1.xpose.msra.mxu0 0.0
    %901 = vmatprep.subr.mxu0 0.0
    %902 = vmatpush1.xpose.msra.mxu0 0.0
    %903 = vmatprep.subr.mxu0 0.0
    %904 = vmatpush1.xpose.msra.mxu0 0.0
    %905 = vmatprep.subr.mxu0 0.0
    %906 = vmatpush1.xpose.msra.mxu0 0.0
    %907 = vmatprep.subr.mxu0 0.0
    %908 = vmatpush1.xpose.msra.mxu0 0.0
    %909 = vmatprep.subr.mxu0 0.0
    %910 = vmatpush1.xpose.msra.mxu0 0.0
    %911 = vmatprep.subr.mxu0 0.0
    %912 = vmatpush1.xpose.msra.mxu0 0.0
    %913 = vmatprep.subr.mxu0 0.0
    %914 = vmatpush1.xpose.msra.mxu0 0.0
    %915 = vmatprep.subr.mxu0 0.0
    %916 = vmatpush1.xpose.msra.mxu0 0.0
    %917 = vmatprep.subr.mxu0 0.0
    %918 = vmatpush1.xpose.msra.mxu0 0.0
    %919 = vmatprep.subr.mxu0 0.0
    %920 = vmatpush1.xpose.msra.mxu0 0.0
    %921 = vmatprep.subr.mxu0 0.0
    %922 = vmatpush1.xpose.msra.mxu0 0.0
    %923 = vmatprep.subr.mxu0 0.0
    %924 = vmatpush1.xpose.msra.mxu0 0.0
    %925 = vmatprep.subr.mxu0 0.0
    %926 = vmatpush1.xpose.msra.mxu0 0.0
    %927 = vmatprep.subr.mxu0 0.0
    %928 = vmatpush1.xpose.msra.mxu0 0.0
    %929 = vmatprep.subr.mxu0 0.0
    %930 = vmatpush1.xpose.msra.mxu0 0.0
    %931 = vmatprep.subr.mxu0 0.0
    %932 = vmatpush1.xpose.msra.mxu0 0.0
    %933 = vmatprep.subr.mxu0 0.0
    %934 = vmatpush1.xpose.msra.mxu0 0.0
    %935 = vmatprep.subr.mxu0 0.0
    %936 = vmatpush1.xpose.msra.mxu0 0.0
    %937 = vmatprep.subr.mxu0 0.0
    %938 = vmatpush1.xpose.msra.mxu0 0.0
    %939 = vmatprep.subr.mxu0 0.0
    %940 = vmatpush1.xpose.msra.mxu0 0.0
    %941 = vmatprep.subr.mxu0 0.0
    %942 = vmatpush1.xpose.msra.mxu0 0.0
    %943 = vmatprep.subr.mxu0 0.0
    %944 = vmatpush1.xpose.msra.mxu0 0.0
    %945 = vmatprep.mubr.f32.mxu0 0.0
    %946 = vmatmul.mubr.f32.gmra.mrb[0].mxu0 %v873
    %v947 = vpop.f32.mrb[0].mxu0
    %v948 = vadd.f32 %v78, %v947
    %v949 = vpop.f32.mrb[0].mxu0
    %950 = vmatprep.mubr.f32.mxu0 0.0
    %951 = vmatmul.mubr.f32.gmra.mrb[0].mxu0 %v875
    %v952 = vpop.f32.mrb[0].mxu0
    %v953 = vadd.f32 %v79, %v952
    %v954 = vpop.f32.mrb[0].mxu0
    %955 = vdwg.mxu0
    %v956 = vsel %vm369, %v948, -inf
    %957 = vmax.xlane.f32.xlu0 %v956
    %v958 = vpop.xlane.xlu0 %957
    %v959 = vsel %vm369, %v953, -inf
    %960 = vmax.xlane.f32.xlu0 %v959
    %v961 = vpop.xlane.xlu0 %960
    %v962 = vsub.f32 %v948, %v958
    %v963 = vsub.f32 %v953, %v961
    %v964 = vmul.f32 %v962, 1.442695
    %v965 = vpow.pop %v964
    %v966 = vmul.f32 %v963, 1.442695
    %v967 = vpow.pop %v966
    %v968 = vsel %vm369, %v965, 0.0
    %969 = vadd.xlane.f32.xlu0 %v968
    %v970 = vpop.xlane.xlu0 %969
    %v971 = vsel %vm369, %v967, 0.0
    %972 = vadd.xlane.f32.xlu0 %v971
    %v973 = vpop.xlane.xlu0 %972
    %v974 = vrcp.pop %v970
    %v975 = vrcp.pop %v973
    %v976 = vmul.f32 %v965, %v974
    %v977 = vmul.f32 %v967, %v975
    %v981 = vsel %vm369, %v976, 0
    %v984 = vsel %vm369, %v977, 0
    %986 = vmatprep.subr.mxu0 0.0
    %987 = vmatpush1.msra.mxu0 %v870
    %988 = vmatprep.subr.mxu0 0.0
    %989 = vmatpush1.msra.mxu0 %v872
    %990 = vmatprep.subr.mxu0 0.0
    %991 = vmatpush1.msra.mxu0 0.0
    %992 = vmatprep.subr.mxu0 0.0
    %993 = vmatpush1.msra.mxu0 0.0
    %994 = vmatprep.subr.mxu0 0.0
    %995 = vmatpush1.msra.mxu0 0.0
    %996 = vmatprep.subr.mxu0 0.0
    %997 = vmatpush1.msra.mxu0 0.0
    %998 = vmatprep.subr.mxu0 0.0
    %999 = vmatpush1.msra.mxu0 0.0
    %1000 = vmatprep.subr.mxu0 0.0
    %1001 = vmatpush1.msra.mxu0 0.0
    %1002 = vmatprep.subr.mxu0 0.0
    %1003 = vmatpush1.msra.mxu0 0.0
    %1004 = vmatprep.subr.mxu0 0.0
    %1005 = vmatpush1.msra.mxu0 0.0
    %1006 = vmatprep.subr.mxu0 0.0
    %1007 = vmatpush1.msra.mxu0 0.0
    %1008 = vmatprep.subr.mxu0 0.0
    %1009 = vmatpush1.msra.mxu0 0.0
    %1010 = vmatprep.subr.mxu0 0.0
    %1011 = vmatpush1.msra.mxu0 0.0
    %1012 = vmatprep.subr.mxu0 0.0
    %1013 = vmatpush1.msra.mxu0 0.0
    %1014 = vmatprep.subr.mxu0 0.0
    %1015 = vmatpush1.msra.mxu0 0.0
    %1016 = vmatprep.subr.mxu0 0.0
    %1017 = vmatpush1.msra.mxu0 0.0
    %1018 = vmatprep.subr.mxu0 0.0
    %1019 = vmatpush1.msra.mxu0 0.0
    %1020 = vmatprep.subr.mxu0 0.0
    %1021 = vmatpush1.msra.mxu0 0.0
    %1022 = vmatprep.subr.mxu0 0.0
    %1023 = vmatpush1.msra.mxu0 0.0
    %1024 = vmatprep.subr.mxu0 0.0
    %1025 = vmatpush1.msra.mxu0 0.0
    %1026 = vmatprep.subr.mxu0 0.0
    %1027 = vmatpush1.msra.mxu0 0.0
    %1028 = vmatprep.subr.mxu0 0.0
    %1029 = vmatpush1.msra.mxu0 0.0
    %1030 = vmatprep.subr.mxu0 0.0
    %1031 = vmatpush1.msra.mxu0 0.0
    %1032 = vmatprep.subr.mxu0 0.0
    %1033 = vmatpush1.msra.mxu0 0.0
    %1034 = vmatprep.subr.mxu0 0.0
    %1035 = vmatpush1.msra.mxu0 0.0
    %1036 = vmatprep.subr.mxu0 0.0
    %1037 = vmatpush1.msra.mxu0 0.0
    %1038 = vmatprep.subr.mxu0 0.0
    %1039 = vmatpush1.msra.mxu0 0.0
    %1040 = vmatprep.subr.mxu0 0.0
    %1041 = vmatpush1.msra.mxu0 0.0
    %1042 = vmatprep.subr.mxu0 0.0
    %1043 = vmatpush1.msra.mxu0 0.0
    %1044 = vmatprep.subr.mxu0 0.0
    %1045 = vmatpush1.msra.mxu0 0.0
    %1046 = vmatprep.subr.mxu0 0.0
    %1047 = vmatpush1.msra.mxu0 0.0
    %1048 = vmatprep.subr.mxu0 0.0
    %1049 = vmatpush1.msra.mxu0 0.0
    %1050 = vmatprep.mubr.f32.mxu0 0.0
    %1051 = vmatmul.mubr.f32.gmra.mrb[0].mxu0 %v981
    %v1052 = vpop.f32.mrb[0].mxu0
    %v1053 = vadd.f32 0.0, %v1052
    %v1054 = vpop.f32.mrb[0].mxu0
    %1055 = vmatprep.mubr.f32.mxu0 0.0
    %1056 = vmatmul.mubr.f32.gmra.mrb[0].mxu0 %v984
    %v1057 = vpop.f32.mrb[0].mxu0
    %v1058 = vadd.f32 0.0, %v1057
    %v1059 = vpop.f32.mrb[0].mxu0
    %1060 = vdwg.mxu0
    %1063 = vrot.lane.b32.xlu0 %v661, 8
    %v1064 = vpop.permute.xlu0 %1063
    %1065 = vrot.lane.b32.xlu0 %v666, 8
    %v1066 = vpop.permute.xlu0 %1065
    %1071 = vrot.lane.b32.xlu0 %v857, 16
    %v1072 = vpop.permute.xlu0 %1071
    %1073 = vrot.lane.b32.xlu0 %v862, 16
    %v1074 = vpop.permute.xlu0 %1073
    %1079 = vrot.lane.b32.xlu0 %v1053, 24
    %v1080 = vpop.permute.xlu0 %1079
    %1081 = vrot.lane.b32.xlu0 %v1058, 24
    %v1082 = vpop.permute.xlu0 %1081
    %v1085 = vsel %vm281, %v465, %v1064
    %v1086 = vsel %vm281, %v470, %v1066
    %v1087 = vsel %vm369, %v1085, %v1072
    %v1088 = vsel %vm369, %v1086, %v1074
    %vm1089 = vcmask 195584
    %v1090 = vsel %vm1089, %v1087, %v1080
    %v1091 = vsel %vm1089, %v1088, %v1082
    %v1093 = vlaneseq
    %v1094 = vshrl.u32 %v1093, 7
    %v1095 = vsub.s32 0, %v1094
    %v1096 = vrot.slane %v180, %v1095
    %v1099 = vsel %vm197, %v1090, 0
    %v1102 = vsel %vm197, %v1091, 0
    %1104 = vmatprep.subr.mxu0 0.0
    %1105 = vmatpush1.msra.mxu0 %v174
    %1106 = vmatprep.subr.mxu0 0.0
    %1107 = vmatpush1.msra.mxu0 %v175
    %1108 = vmatprep.subr.mxu0 0.0
    %1109 = vmatpush1.msra.mxu0 %v176
    %1110 = vmatprep.subr.mxu0 0.0
    %1111 = vmatpush1.msra.mxu0 %v177
    %1112 = vmatprep.subr.mxu0 0.0
    %1113 = vmatpush1.msra.mxu0 0.0
    %1114 = vmatprep.subr.mxu0 0.0
    %1115 = vmatpush1.msra.mxu0 0.0
    %1116 = vmatprep.subr.mxu0 0.0
    %1117 = vmatpush1.msra.mxu0 0.0
    %1118 = vmatprep.subr.mxu0 0.0
    %1119 = vmatpush1.msra.mxu0 0.0
    %1120 = vmatprep.subr.mxu0 0.0
    %1121 = vmatpush1.msra.mxu0 0.0
    %1122 = vmatprep.subr.mxu0 0.0
    %1123 = vmatpush1.msra.mxu0 0.0
    %1124 = vmatprep.subr.mxu0 0.0
    %1125 = vmatpush1.msra.mxu0 0.0
    %1126 = vmatprep.subr.mxu0 0.0
    %1127 = vmatpush1.msra.mxu0 0.0
    %1128 = vmatprep.subr.mxu0 0.0
    %1129 = vmatpush1.msra.mxu0 0.0
    %1130 = vmatprep.subr.mxu0 0.0
    %1131 = vmatpush1.msra.mxu0 0.0
    %1132 = vmatprep.subr.mxu0 0.0
    %1133 = vmatpush1.msra.mxu0 0.0
    %1134 = vmatprep.subr.mxu0 0.0
    %1135 = vmatpush1.msra.mxu0 0.0
    %1136 = vmatprep.subr.mxu0 0.0
    %1137 = vmatpush1.msra.mxu0 0.0
    %1138 = vmatprep.subr.mxu0 0.0
    %1139 = vmatpush1.msra.mxu0 0.0
    %1140 = vmatprep.subr.mxu0 0.0
    %1141 = vmatpush1.msra.mxu0 0.0
    %1142 = vmatprep.subr.mxu0 0.0
    %1143 = vmatpush1.msra.mxu0 0.0
    %1144 = vmatprep.subr.mxu0 0.0
    %1145 = vmatpush1.msra.mxu0 0.0
    %1146 = vmatprep.subr.mxu0 0.0
    %1147 = vmatpush1.msra.mxu0 0.0
    %1148 = vmatprep.subr.mxu0 0.0
    %1149 = vmatpush1.msra.mxu0 0.0
    %1150 = vmatprep.subr.mxu0 0.0
    %1151 = vmatpush1.msra.mxu0 0.0
    %1152 = vmatprep.subr.mxu0 0.0
    %1153 = vmatpush1.msra.mxu0 0.0
    %1154 = vmatprep.subr.mxu0 0.0
    %1155 = vmatpush1.msra.mxu0 0.0
    %1156 = vmatprep.subr.mxu0 0.0
    %1157 = vmatpush1.msra.mxu0 0.0
    %1158 = vmatprep.subr.mxu0 0.0
    %1159 = vmatpush1.msra.mxu0 0.0
    %1160 = vmatprep.subr.mxu0 0.0
    %1161 = vmatpush1.msra.mxu0 0.0
    %1162 = vmatprep.subr.mxu0 0.0
    %1163 = vmatpush1.msra.mxu0 0.0
    %1164 = vmatprep.subr.mxu0 0.0
    %1165 = vmatpush1.msra.mxu0 0.0
    %1166 = vmatprep.subr.mxu0 0.0
    %1167 = vmatpush1.msra.mxu0 0.0
    %1168 = vmatprep.mubr.f32.mxu0 0.0
    %1169 = vmatmul.mubr.f32.gmra.mrb[0].mxu0 %v1099
    %v1170 = vpop.f32.mrb[0].mxu0
    %v1171 = vadd.f32 %v1096, %v1170
    %v1172 = vpop.f32.mrb[0].mxu0
    %1173 = vmatprep.mubr.f32.mxu0 0.0
    %1174 = vmatmul.mubr.f32.gmra.mrb[0].mxu0 %v1102
    %v1175 = vpop.f32.mrb[0].mxu0
    %v1176 = vadd.f32 %v1096, %v1175
    %v1177 = vpop.f32.mrb[0].mxu0
    %1178 = vdwg.mxu0
    %v1179 = vadd.f32 %v1171, %v161
    %v1180 = vadd.f32 %v1176, %v166
    %v1181 = vsel %vm197, %v1179, 0.0
    %1182 = vadd.xlane.f32.xlu0 %v1181
    %v1183 = vpop.xlane.xlu0 %1182
    %v1184 = vsel %vm197, %v1180, 0.0
    %1185 = vadd.xlane.f32.xlu0 %v1184
    %v1186 = vpop.xlane.xlu0 %1185
    %v1187 = vrcp.pop 32.0
    %v1188 = vmul.f32 %v1183, %v1187
    %v1189 = vmul.f32 %v1186, %v1187
    %v1190 = vsub.f32 %v1179, %v1188
    %v1191 = vsub.f32 %v1180, %v1189
    %v1192 = vmul.f32 %v1190, %v1190
    %v1193 = vmul.f32 %v1191, %v1191
    %v1194 = vsel %vm197, %v1192, 0.0
    %1195 = vadd.xlane.f32.xlu0 %v1194
    %v1196 = vpop.xlane.xlu0 %1195
    %v1197 = vsel %vm197, %v1193, 0.0
    %1198 = vadd.xlane.f32.xlu0 %v1197
    %v1199 = vpop.xlane.xlu0 %1198
    %v1200 = vmul.f32 %v1196, %v1187
    %v1201 = vmul.f32 %v1199, %v1187
    %v1202 = vadd.f32 %v1200, 1e-05
    %v1203 = vadd.f32 %v1201, 1e-05
    %v1204 = vrsqrt.pop %v1202
    %v1205 = vrsqrt.pop %v1203
    %v1206 = vmul.f32 %v1190, %v1204
    %v1207 = vmul.f32 %v1191, %v1205
    %v1209 = vlaneseq
    %v1210 = vshrl.u32 %v1209, 7
    %v1211 = vsub.s32 0, %v1210
    %v1212 = vrot.slane %v184, %v1211
    %v1214 = vmul.f32 %v1206, %v1212
    %v1215 = vmul.f32 %v1207, %v1212
    %v1217 = vlaneseq
    %v1218 = vshrl.u32 %v1217, 7
    %v1219 = vsub.s32 0, %v1218
    %v1220 = vrot.slane %v186, %v1219
    %v1222 = vadd.f32 %v1214, %v1220
    %v1223 = vadd.f32 %v1215, %v1220
    %v1224 = vld [vmem:[%s5] sm:$0xff]
    %v1225 = vld [vmem:[%s5 + $0x8] sm:$0xff]
    %v1226 = vld [vmem:[%s5 + $0x10] sm:$0xff]
    %v1227 = vld [vmem:[%s5 + $0x18] sm:$0xff]
    %v1228 = vld [vmem:[%s6] sm:$0x1]
    %v1230 = vlaneseq
    %v1231 = vshrl.u32 %v1230, 7
    %v1232 = vsub.s32 0, %v1231
    %v1233 = vrot.slane %v1228, %v1232
    %v1236 = vsel %vm197, %v1222, 0
    %v1239 = vsel %vm197, %v1223, 0
    %1241 = vmatprep.subr.mxu0 0.0
    %1242 = vmatpush1.msra.mxu0 %v1224
    %1243 = vmatprep.subr.mxu0 0.0
    %1244 = vmatpush1.msra.mxu0 %v1225
    %1245 = vmatprep.subr.mxu0 0.0
    %1246 = vmatpush1.msra.mxu0 %v1226
    %1247 = vmatprep.subr.mxu0 0.0
    %1248 = vmatpush1.msra.mxu0 %v1227
    %1249 = vmatprep.subr.mxu0 0.0
    %1250 = vmatpush1.msra.mxu0 0.0
    %1251 = vmatprep.subr.mxu0 0.0
    %1252 = vmatpush1.msra.mxu0 0.0
    %1253 = vmatprep.subr.mxu0 0.0
    %1254 = vmatpush1.msra.mxu0 0.0
    %1255 = vmatprep.subr.mxu0 0.0
    %1256 = vmatpush1.msra.mxu0 0.0
    %1257 = vmatprep.subr.mxu0 0.0
    %1258 = vmatpush1.msra.mxu0 0.0
    %1259 = vmatprep.subr.mxu0 0.0
    %1260 = vmatpush1.msra.mxu0 0.0
    %1261 = vmatprep.subr.mxu0 0.0
    %1262 = vmatpush1.msra.mxu0 0.0
    %1263 = vmatprep.subr.mxu0 0.0
    %1264 = vmatpush1.msra.mxu0 0.0
    %1265 = vmatprep.subr.mxu0 0.0
    %1266 = vmatpush1.msra.mxu0 0.0
    %1267 = vmatprep.subr.mxu0 0.0
    %1268 = vmatpush1.msra.mxu0 0.0
    %1269 = vmatprep.subr.mxu0 0.0
    %1270 = vmatpush1.msra.mxu0 0.0
    %1271 = vmatprep.subr.mxu0 0.0
    %1272 = vmatpush1.msra.mxu0 0.0
    %1273 = vmatprep.subr.mxu0 0.0
    %1274 = vmatpush1.msra.mxu0 0.0
    %1275 = vmatprep.subr.mxu0 0.0
    %1276 = vmatpush1.msra.mxu0 0.0
    %1277 = vmatprep.subr.mxu0 0.0
    %1278 = vmatpush1.msra.mxu0 0.0
    %1279 = vmatprep.subr.mxu0 0.0
    %1280 = vmatpush1.msra.mxu0 0.0
    %1281 = vmatprep.subr.mxu0 0.0
    %1282 = vmatpush1.msra.mxu0 0.0
    %1283 = vmatprep.subr.mxu0 0.0
    %1284 = vmatpush1.msra.mxu0 0.0
    %1285 = vmatprep.subr.mxu0 0.0
    %1286 = vmatpush1.msra.mxu0 0.0
    %1287 = vmatprep.subr.mxu0 0.0
    %1288 = vmatpush1.msra.mxu0 0.0
    %1289 = vmatprep.subr.mxu0 0.0
    %1290 = vmatpush1.msra.mxu0 0.0
    %1291 = vmatprep.subr.mxu0 0.0
    %1292 = vmatpush1.msra.mxu0 0.0
    %1293 = vmatprep.subr.mxu0 0.0
    %1294 = vmatpush1.msra.mxu0 0.0
    %1295 = vmatprep.subr.mxu0 0.0
    %1296 = vmatpush1.msra.mxu0 0.0
    %1297 = vmatprep.subr.mxu0 0.0
    %1298 = vmatpush1.msra.mxu0 0.0
    %1299 = vmatprep.subr.mxu0 0.0
    %1300 = vmatpush1.msra.mxu0 0.0
    %1301 = vmatprep.subr.mxu0 0.0
    %1302 = vmatpush1.msra.mxu0 0.0
    %1303 = vmatprep.subr.mxu0 0.0
    %1304 = vmatpush1.msra.mxu0 0.0
    %1305 = vmatprep.mubr.f32.mxu0 0.0
    %1306 = vmatmul.mubr.f32.gmra.mrb[0].mxu0 %v1236
    %v1307 = vpop.f32.mrb[0].mxu0
    %v1308 = vadd.f32 %v1233, %v1307
    %v1309 = vpop.f32.mrb[0].mxu0
    %1310 = vmatprep.mubr.f32.mxu0 0.0
    %1311 = vmatmul.mubr.f32.gmra.mrb[0].mxu0 %v1239
    %v1312 = vpop.f32.mrb[0].mxu0
    %v1313 = vadd.f32 %v1233, %v1312
    %v1314 = vpop.f32.mrb[0].mxu0
    %1315 = vdwg.mxu0
    %v1316 = vmax.f32 %v1308, 0.0
    %v1317 = vmax.f32 %v1313, 0.0
    %v1318 = vld [vmem:[%s7] sm:$0xff]
    %v1319 = vld [vmem:[%s7 + $0x8] sm:$0xff]
    %v1320 = vld [vmem:[%s7 + $0x10] sm:$0xff]
    %v1321 = vld [vmem:[%s7 + $0x18] sm:$0xff]
    %v1322 = vld [vmem:[%s7 + $0x20] sm:$0xff]
    %v1323 = vld [vmem:[%s7 + $0x28] sm:$0xff]
    %v1324 = vld [vmem:[%s7 + $0x30] sm:$0xff]
    %v1325 = vld [vmem:[%s7 + $0x38] sm:$0xff]
    %v1327 = vlaneseq
    %v1328 = vshrl.u32 %v1327, 7
    %v1329 = vsub.s32 0, %v1328
    %v1330 = vrot.slane %v182, %v1329
    %vm1332 = vcmask 523264
    %v1334 = vsel %vm1332, %v1316, 0
    %v1337 = vsel %vm1332, %v1317, 0
    %1339 = vmatprep.subr.mxu0 0.0
    %1340 = vmatpush1.msra.mxu0 %v1318
    %1341 = vmatprep.subr.mxu0 0.0
    %1342 = vmatpush1.msra.mxu0 %v1319
    %1343 = vmatprep.subr.mxu0 0.0
    %1344 = vmatpush1.msra.mxu0 %v1320
    %1345 = vmatprep.subr.mxu0 0.0
    %1346 = vmatpush1.msra.mxu0 %v1321
    %1347 = vmatprep.subr.mxu0 0.0
    %1348 = vmatpush1.msra.mxu0 %v1322
    %1349 = vmatprep.subr.mxu0 0.0
    %1350 = vmatpush1.msra.mxu0 %v1323
    %1351 = vmatprep.subr.mxu0 0.0
    %1352 = vmatpush1.msra.mxu0 %v1324
    %1353 = vmatprep.subr.mxu0 0.0
    %1354 = vmatpush1.msra.mxu0 %v1325
    %1355 = vmatprep.subr.mxu0 0.0
    %1356 = vmatpush1.msra.mxu0 0.0
    %1357 = vmatprep.subr.mxu0 0.0
    %1358 = vmatpush1.msra.mxu0 0.0
    %1359 = vmatprep.subr.mxu0 0.0
    %1360 = vmatpush1.msra.mxu0 0.0
    %1361 = vmatprep.subr.mxu0 0.0
    %1362 = vmatpush1.msra.mxu0 0.0
    %1363 = vmatprep.subr.mxu0 0.0
    %1364 = vmatpush1.msra.mxu0 0.0
    %1365 = vmatprep.subr.mxu0 0.0
    %1366 = vmatpush1.msra.mxu0 0.0
    %1367 = vmatprep.subr.mxu0 0.0
    %1368 = vmatpush1.msra.mxu0 0.0
    %1369 = vmatprep.subr.mxu0 0.0
    %1370 = vmatpush1.msra.mxu0 0.0
    %1371 = vmatprep.subr.mxu0 0.0
    %1372 = vmatpush1.msra.mxu0 0.0
    %1373 = vmatprep.subr.mxu0 0.0
    %1374 = vmatpush1.msra.mxu0 0.0
    %1375 = vmatprep.subr.mxu0 0.0
    %1376 = vmatpush1.msra.mxu0 0.0
    %1377 = vmatprep.subr.mxu0 0.0
    %1378 = vmatpush1.msra.mxu0 0.0
    %1379 = vmatprep.subr.mxu0 0.0
    %1380 = vmatpush1.msra.mxu0 0.0
    %1381 = vmatprep.subr.mxu0 0.0
    %1382 = vmatpush1.msra.mxu0 0.0
    %1383 = vmatprep.subr.mxu0 0.0
    %1384 = vmatpush1.msra.mxu0 0.0
    %1385 = vmatprep.subr.mxu0 0.0
    %1386 = vmatpush1.msra.mxu0 0.0
    %1387 = vmatprep.subr.mxu0 0.0
    %1388 = vmatpush1.msra.mxu0 0.0
    %1389 = vmatprep.subr.mxu0 0.0
    %1390 = vmatpush1.msra.mxu0 0.0
    %1391 = vmatprep.subr.mxu0 0.0
    %1392 = vmatpush1.msra.mxu0 0.0
    %1393 = vmatprep.subr.mxu0 0.0
    %1394 = vmatpush1.msra.mxu0 0.0
    %1395 = vmatprep.subr.mxu0 0.0
    %1396 = vmatpush1.msra.mxu0 0.0
    %1397 = vmatprep.subr.mxu0 0.0
    %1398 = vmatpush1.msra.mxu0 0.0
    %1399 = vmatprep.subr.mxu0 0.0
    %1400 = vmatpush1.msra.mxu0 0.0
    %1401 = vmatprep.subr.mxu0 0.0
    %1402 = vmatpush1.msra.mxu0 0.0
    %1403 = vmatprep.mubr.f32.mxu0 0.0
    %1404 = vmatmul.mubr.f32.gmra.mrb[0].mxu0 %v1334
    %v1405 = vpop.f32.mrb[0].mxu0
    %v1406 = vadd.f32 %v1330, %v1405
    %v1407 = vpop.f32.mrb[0].mxu0
    %1408 = vmatprep.mubr.f32.mxu0 0.0
    %1409 = vmatmul.mubr.f32.gmra.mrb[0].mxu0 %v1337
    %v1410 = vpop.f32.mrb[0].mxu0
    %v1411 = vadd.f32 %v1330, %v1410
    %v1412 = vpop.f32.mrb[0].mxu0
    %1413 = vdwg.mxu0
    %v1414 = vadd.f32 %v1406, %v1222
    %v1415 = vadd.f32 %v1411, %v1223
    %v1416 = vsel %vm197, %v1414, 0.0
    %1417 = vadd.xlane.f32.xlu0 %v1416
    %v1418 = vpop.xlane.xlu0 %1417
    %v1419 = vsel %vm197, %v1415, 0.0
    %1420 = vadd.xlane.f32.xlu0 %v1419
    %v1421 = vpop.xlane.xlu0 %1420
    %v1422 = vmul.f32 %v1418, %v1187
    %v1423 = vmul.f32 %v1421, %v1187
    %v1424 = vsub.f32 %v1414, %v1422
    %v1425 = vsub.f32 %v1415, %v1423
    %v1426 = vmul.f32 %v1424, %v1424
    %v1427 = vmul.f32 %v1425, %v1425
    %v1428 = vsel %vm197, %v1426, 0.0
    %1429 = vadd.xlane.f32.xlu0 %v1428
    %v1430 = vpop.xlane.xlu0 %1429
    %v1431 = vsel %vm197, %v1427, 0.0
    %1432 = vadd.xlane.f32.xlu0 %v1431
    %v1433 = vpop.xlane.xlu0 %1432
    %v1434 = vmul.f32 %v1430, %v1187
    %v1435 = vmul.f32 %v1433, %v1187
    %v1436 = vadd.f32 %v1434, 1e-05
    %v1437 = vadd.f32 %v1435, 1e-05
    %v1438 = vrsqrt.pop %v1436
    %v1439 = vrsqrt.pop %v1437
    %v1440 = vmul.f32 %v1424, %v1438
    %v1441 = vmul.f32 %v1425, %v1439
    %v1443 = vlaneseq
    %v1444 = vshrl.u32 %v1443, 7
    %v1445 = vsub.s32 0, %v1444
    %v1446 = vrot.slane %v188, %v1445
    %v1448 = vmul.f32 %v1440, %v1446
    %v1449 = vmul.f32 %v1441, %v1446
    %v1451 = vlaneseq
    %v1452 = vshrl.u32 %v1451, 7
    %v1453 = vsub.s32 0, %v1452
    %v1454 = vrot.slane %v190, %v1453
    %v1456 = vadd.f32 %v1448, %v1454
    %v1457 = vadd.f32 %v1449, %v1454
    %s1458 = scalar_lea.vmem %s4, 64
    %v1459 = vld [vmem:[%s1458] sm:$0xff]
    %v1460 = vld [vmem:[%s1458 + $0x8] sm:$0xff]
    %v1461 = vld [vmem:[%s1458 + $0x10] sm:$0xff]
    %v1462 = vld [vmem:[%s1458 + $0x18] sm:$0xff]
    %s1463 = scalar_lea.vmem %s4, 96
    %v1464 = vld [vmem:[%s1463] sm:$0xff]
    %v1465 = vld [vmem:[%s1463 + $0x8] sm:$0xff]
    %v1466 = vld [vmem:[%s1463 + $0x10] sm:$0xff]
    %v1467 = vld [vmem:[%s1463 + $0x18] sm:$0xff]
    %s1468 = scalar_lea.vmem [#allocation6], 7
    %v1469 = vld [vmem:[%s1468] sm:$0x1]
    %s1470 = scalar_lea.vmem [#allocation6], 8
    %v1471 = vld [vmem:[%s1470] sm:$0x1]
    %s1472 = scalar_lea.vmem [#allocation6], 9
    %v1473 = vld [vmem:[%s1472] sm:$0x1]
    %s1474 = scalar_lea.vmem [#allocation6], 10
    %v1475 = vld [vmem:[%s1474] sm:$0x1]
    %s1476 = scalar_lea.vmem [#allocation6], 11
    %v1477 = vld [vmem:[%s1476] sm:$0x1]
    %s1478 = scalar_lea.vmem [#allocation6], 12
    %v1479 = vld [vmem:[%s1478] sm:$0x1]
    %s1480 = scalar_lea.vmem [#allocation6], 13
    %v1481 = vld [vmem:[%s1480] sm:$0x1]
    %v1483 = vlaneseq
    %v1484 = vshrl.u32 %v1483, 7
    %v1485 = vsub.s32 0, %v1484
    %v1486 = vrot.slane %v1469, %v1485
    %v1489 = vsel %vm197, %v1456, 0
    %v1492 = vsel %vm197, %v1457, 0
    %1494 = vmatprep.subr.mxu0 0.0
    %1495 = vmatpush1.msra.mxu0 %v1459
    %1496 = vmatprep.subr.mxu0 0.0
    %1497 = vmatpush1.msra.mxu0 %v1460
    %1498 = vmatprep.subr.mxu0 0.0
    %1499 = vmatpush1.msra.mxu0 %v1461
    %1500 = vmatprep.subr.mxu0 0.0
    %1501 = vmatpush1.msra.mxu0 %v1462
    %1502 = vmatprep.subr.mxu0 0.0
    %1503 = vmatpush1.msra.mxu0 0.0
    %1504 = vmatprep.subr.mxu0 0.0
    %1505 = vmatpush1.msra.mxu0 0.0
    %1506 = vmatprep.subr.mxu0 0.0
    %1507 = vmatpush1.msra.mxu0 0.0
    %1508 = vmatprep.subr.mxu0 0.0
    %1509 = vmatpush1.msra.mxu0 0.0
    %1510 = vmatprep.subr.mxu0 0.0
    %1511 = vmatpush1.msra.mxu0 0.0
    %1512 = vmatprep.subr.mxu0 0.0
    %1513 = vmatpush1.msra.mxu0 0.0
    %1514 = vmatprep.subr.mxu0 0.0
    %1515 = vmatpush1.msra.mxu0 0.0
    %1516 = vmatprep.subr.mxu0 0.0
    %1517 = vmatpush1.msra.mxu0 0.0
    %1518 = vmatprep.subr.mxu0 0.0
    %1519 = vmatpush1.msra.mxu0 0.0
    %1520 = vmatprep.subr.mxu0 0.0
    %1521 = vmatpush1.msra.mxu0 0.0
    %1522 = vmatprep.subr.mxu0 0.0
    %1523 = vmatpush1.msra.mxu0 0.0
    %1524 = vmatprep.subr.mxu0 0.0
    %1525 = vmatpush1.msra.mxu0 0.0
    %1526 = vmatprep.subr.mxu0 0.0
    %1527 = vmatpush1.msra.mxu0 0.0
    %1528 = vmatprep.subr.mxu0 0.0
    %1529 = vmatpush1.msra.mxu0 0.0
    %1530 = vmatprep.subr.mxu0 0.0
    %1531 = vmatpush1.msra.mxu0 0.0
    %1532 = vmatprep.subr.mxu0 0.0
    %1533 = vmatpush1.msra.mxu0 0.0
    %1534 = vmatprep.subr.mxu0 0.0
    %1535 = vmatpush1.msra.mxu0 0.0
    %1536 = vmatprep.subr.mxu0 0.0
    %1537 = vmatpush1.msra.mxu0 0.0
    %1538 = vmatprep.subr.mxu0 0.0
    %1539 = vmatpush1.msra.mxu0 0.0
    %1540 = vmatprep.subr.mxu0 0.0
    %1541 = vmatpush1.msra.mxu0 0.0
    %1542 = vmatprep.subr.mxu0 0.0
    %1543 = vmatpush1.msra.mxu0 0.0
    %1544 = vmatprep.subr.mxu0 0.0
    %1545 = vmatpush1.msra.mxu0 0.0
    %1546 = vmatprep.subr.mxu0 0.0
    %1547 = vmatpush1.msra.mxu0 0.0
    %1548 = vmatprep.subr.mxu0 0.0
    %1549 = vmatpush1.msra.mxu0 0.0
    %1550 = vmatprep.subr.mxu0 0.0
    %1551 = vmatpush1.msra.mxu0 0.0
    %1552 = vmatprep.subr.mxu0 0.0
    %1553 = vmatpush1.msra.mxu0 0.0
    %1554 = vmatprep.subr.mxu0 0.0
    %1555 = vmatpush1.msra.mxu0 0.0
    %1556 = vmatprep.subr.mxu0 0.0
    %1557 = vmatpush1.msra.mxu0 0.0
    %1558 = vmatprep.mubr.f32.mxu0 0.0
    %1559 = vmatmul.mubr.f32.gmra.mrb[0].mxu0 %v1489
    %v1560 = vpop.f32.mrb[0].mxu0
    %v1561 = vadd.f32 %v1486, %v1560
    %v1562 = vpop.f32.mrb[0].mxu0
    %1563 = vmatprep.mubr.f32.mxu0 0.0
    %1564 = vmatmul.mubr.f32.gmra.mrb[0].mxu0 %v1492
    %v1565 = vpop.f32.mrb[0].mxu0
    %v1566 = vadd.f32 %v1486, %v1565
    %v1567 = vpop.f32.mrb[0].mxu0
    %1568 = vdwg.mxu0
    %v1569 = vmul.f32 %v1561, 0.35355338
    %v1570 = vmul.f32 %v1566, 0.35355338
    %v1572 = vsel %vm281, %v1569, 0
    %v1575 = vsel %vm281, %v1570, 0
    %v1578 = vsel %vm281, %v1561, 0
    %v1581 = vsel %vm281, %v1566, 0
    %1583 = vmatprep.subr.mxu0 0.0
    %1584 = vmatpush1.xpose.msra.mxu0 %v1578
    %1585 = vmatprep.subr.mxu0 0.0
    %1586 = vmatpush1.xpose.msra.mxu0 %v1581
    %1587 = vmatprep.subr.mxu0 0.0
    %1588 = vmatpush1.xpose.msra.mxu0 0.0
    %1589 = vmatprep.subr.mxu0 0.0
    %1590 = vmatpush1.xpose.msra.mxu0 0.0
    %1591 = vmatprep.subr.mxu0 0.0
    %1592 = vmatpush1.xpose.msra.mxu0 0.0
    %1593 = vmatprep.subr.mxu0 0.0
    %1594 = vmatpush1.xpose.msra.mxu0 0.0
    %1595 = vmatprep.subr.mxu0 0.0
    %1596 = vmatpush1.xpose.msra.mxu0 0.0
    %1597 = vmatprep.subr.mxu0 0.0
    %1598 = vmatpush1.xpose.msra.mxu0 0.0
    %1599 = vmatprep.subr.mxu0 0.0
    %1600 = vmatpush1.xpose.msra.mxu0 0.0
    %1601 = vmatprep.subr.mxu0 0.0
    %1602 = vmatpush1.xpose.msra.mxu0 0.0
    %1603 = vmatprep.subr.mxu0 0.0
    %1604 = vmatpush1.xpose.msra.mxu0 0.0
    %1605 = vmatprep.subr.mxu0 0.0
    %1606 = vmatpush1.xpose.msra.mxu0 0.0
    %1607 = vmatprep.subr.mxu0 0.0
    %1608 = vmatpush1.xpose.msra.mxu0 0.0
    %1609 = vmatprep.subr.mxu0 0.0
    %1610 = vmatpush1.xpose.msra.mxu0 0.0
    %1611 = vmatprep.subr.mxu0 0.0
    %1612 = vmatpush1.xpose.msra.mxu0 0.0
    %1613 = vmatprep.subr.mxu0 0.0
    %1614 = vmatpush1.xpose.msra.mxu0 0.0
    %1615 = vmatprep.subr.mxu0 0.0
    %1616 = vmatpush1.xpose.msra.mxu0 0.0
    %1617 = vmatprep.subr.mxu0 0.0
    %1618 = vmatpush1.xpose.msra.mxu0 0.0
    %1619 = vmatprep.subr.mxu0 0.0
    %1620 = vmatpush1.xpose.msra.mxu0 0.0
    %1621 = vmatprep.subr.mxu0 0.0
    %1622 = vmatpush1.xpose.msra.mxu0 0.0
    %1623 = vmatprep.subr.mxu0 0.0
    %1624 = vmatpush1.xpose.msra.mxu0 0.0
    %1625 = vmatprep.subr.mxu0 0.0
    %1626 = vmatpush1.xpose.msra.mxu0 0.0
    %1627 = vmatprep.subr.mxu0 0.0
    %1628 = vmatpush1.xpose.msra.mxu0 0.0
    %1629 = vmatprep.subr.mxu0 0.0
    %1630 = vmatpush1.xpose.msra.mxu0 0.0
    %1631 = vmatprep.subr.mxu0 0.0
    %1632 = vmatpush1.xpose.msra.mxu0 0.0
    %1633 = vmatprep.subr.mxu0 0.0
    %1634 = vmatpush1.xpose.msra.mxu0 0.0
    %1635 = vmatprep.subr.mxu0 0.0
    %1636 = vmatpush1.xpose.msra.mxu0 0.0
    %1637 = vmatprep.subr.mxu0 0.0
    %1638 = vmatpush1.xpose.msra.mxu0 0.0
    %1639 = vmatprep.subr.mxu0 0.0
    %1640 = vmatpush1.xpose.msra.mxu0 0.0
    %1641 = vmatprep.subr.mxu0 0.0
    %1642 = vmatpush1.xpose.msra.mxu0 0.0
    %1643 = vmatprep.subr.mxu0 0.0
    %1644 = vmatpush1.xpose.msra.mxu0 0.0
    %1645 = vmatprep.subr.mxu0 0.0
    %1646 = vmatpush1.xpose.msra.mxu0 0.0
    %1647 = vmatprep.mubr.f32.mxu0 0.0
    %1648 = vmatmul.mubr.f32.gmra.mrb[0].mxu0 %v1572
    %v1649 = vpop.f32.mrb[0].mxu0
    %v1650 = vadd.f32 %v78, %v1649
    %v1651 = vpop.f32.mrb[0].mxu0
    %1652 = vmatprep.mubr.f32.mxu0 0.0
    %1653 = vmatmul.mubr.f32.gmra.mrb[0].mxu0 %v1575
    %v1654 = vpop.f32.mrb[0].mxu0
    %v1655 = vadd.f32 %v79, %v1654
    %v1656 = vpop.f32.mrb[0].mxu0
    %1657 = vdwg.mxu0
    %v1658 = vsel %vm369, %v1650, -inf
    %1659 = vmax.xlane.f32.xlu0 %v1658
    %v1660 = vpop.xlane.xlu0 %1659
    %v1661 = vsel %vm369, %v1655, -inf
    %1662 = vmax.xlane.f32.xlu0 %v1661
    %v1663 = vpop.xlane.xlu0 %1662
    %v1664 = vsub.f32 %v1650, %v1660
    %v1665 = vsub.f32 %v1655, %v1663
    %v1666 = vmul.f32 %v1664, 1.442695
    %v1667 = vpow.pop %v1666
    %v1668 = vmul.f32 %v1665, 1.442695
    %v1669 = vpow.pop %v1668
    %v1670 = vsel %vm369, %v1667, 0.0
    %1671 = vadd.xlane.f32.xlu0 %v1670
    %v1672 = vpop.xlane.xlu0 %1671
    %v1673 = vsel %vm369, %v1669, 0.0
    %1674 = vadd.xlane.f32.xlu0 %v1673
    %v1675 = vpop.xlane.xlu0 %1674
    %v1676 = vrcp.pop %v1672
    %v1677 = vrcp.pop %v1675
    %v1678 = vmul.f32 %v1667, %v1676
    %v1679 = vmul.f32 %v1669, %v1677
    %v1681 = vsel %vm369, %v1678, 0
    %v1684 = vsel %vm369, %v1679, 0
    %1686 = vmatprep.subr.mxu0 0.0
    %1687 = vmatpush1.msra.mxu0 %v1561
    %1688 = vmatprep.subr.mxu0 0.0
    %1689 = vmatpush1.msra.mxu0 %v1566
    %1690 = vmatprep.subr.mxu0 0.0
    %1691 = vmatpush1.msra.mxu0 0.0
    %1692 = vmatprep.subr.mxu0 0.0
    %1693 = vmatpush1.msra.mxu0 0.0
    %1694 = vmatprep.subr.mxu0 0.0
    %1695 = vmatpush1.msra.mxu0 0.0
    %1696 = vmatprep.subr.mxu0 0.0
    %1697 = vmatpush1.msra.mxu0 0.0
    %1698 = vmatprep.subr.mxu0 0.0
    %1699 = vmatpush1.msra.mxu0 0.0
    %1700 = vmatprep.subr.mxu0 0.0
    %1701 = vmatpush1.msra.mxu0 0.0
    %1702 = vmatprep.subr.mxu0 0.0
    %1703 = vmatpush1.msra.mxu0 0.0
    %1704 = vmatprep.subr.mxu0 0.0
    %1705 = vmatpush1.msra.mxu0 0.0
    %1706 = vmatprep.subr.mxu0 0.0
    %1707 = vmatpush1.msra.mxu0 0.0
    %1708 = vmatprep.subr.mxu0 0.0
    %1709 = vmatpush1.msra.mxu0 0.0
    %1710 = vmatprep.subr.mxu0 0.0
    %1711 = vmatpush1.msra.mxu0 0.0
    %1712 = vmatprep.subr.mxu0 0.0
    %1713 = vmatpush1.msra.mxu0 0.0
    %1714 = vmatprep.subr.mxu0 0.0
    %1715 = vmatpush1.msra.mxu0 0.0
    %1716 = vmatprep.subr.mxu0 0.0
    %1717 = vmatpush1.msra.mxu0 0.0
    %1718 = vmatprep.subr.mxu0 0.0
    %1719 = vmatpush1.msra.mxu0 0.0
    %1720 = vmatprep.subr.mxu0 0.0
    %1721 = vmatpush1.msra.mxu0 0.0
    %1722 = vmatprep.subr.mxu0 0.0
    %1723 = vmatpush1.msra.mxu0 0.0
    %1724 = vmatprep.subr.mxu0 0.0
    %1725 = vmatpush1.msra.mxu0 0.0
    %1726 = vmatprep.subr.mxu0 0.0
    %1727 = vmatpush1.msra.mxu0 0.0
    %1728 = vmatprep.subr.mxu0 0.0
    %1729 = vmatpush1.msra.mxu0 0.0
    %1730 = vmatprep.subr.mxu0 0.0
    %1731 = vmatpush1.msra.mxu0 0.0
    %1732 = vmatprep.subr.mxu0 0.0
    %1733 = vmatpush1.msra.mxu0 0.0
    %1734 = vmatprep.subr.mxu0 0.0
    %1735 = vmatpush1.msra.mxu0 0.0
    %1736 = vmatprep.subr.mxu0 0.0
    %1737 = vmatpush1.msra.mxu0 0.0
    %1738 = vmatprep.subr.mxu0 0.0
    %1739 = vmatpush1.msra.mxu0 0.0
    %1740 = vmatprep.subr.mxu0 0.0
    %1741 = vmatpush1.msra.mxu0 0.0
    %1742 = vmatprep.subr.mxu0 0.0
    %1743 = vmatpush1.msra.mxu0 0.0
    %1744 = vmatprep.subr.mxu0 0.0
    %1745 = vmatpush1.msra.mxu0 0.0
    %1746 = vmatprep.subr.mxu0 0.0
    %1747 = vmatpush1.msra.mxu0 0.0
    %1748 = vmatprep.subr.mxu0 0.0
    %1749 = vmatpush1.msra.mxu0 0.0
    %1750 = vmatprep.mubr.f32.mxu0 0.0
    %1751 = vmatmul.mubr.f32.gmra.mrb[0].mxu0 %v1681
    %v1752 = vpop.f32.mrb[0].mxu0
    %v1753 = vadd.f32 0.0, %v1752
    %v1754 = vpop.f32.mrb[0].mxu0
    %1755 = vmatprep.mubr.f32.mxu0 0.0
    %1756 = vmatmul.mubr.f32.gmra.mrb[0].mxu0 %v1684
    %v1757 = vpop.f32.mrb[0].mxu0
    %v1758 = vadd.f32 0.0, %v1757
    %v1759 = vpop.f32.mrb[0].mxu0
    %1760 = vdwg.mxu0
    %1761 = vrot.lane.b32.xlu0 %v1569, 120
    %v1762 = vpop.permute.xlu0 %1761
    %1763 = vrot.lane.b32.xlu0 %v1570, 120
    %v1764 = vpop.permute.xlu0 %1763
    %1765 = vrot.lane.b32.xlu0 %v1561, 120
    %v1766 = vpop.permute.xlu0 %1765
    %1767 = vrot.lane.b32.xlu0 %v1566, 120
    %v1768 = vpop.permute.xlu0 %1767
    %v1769 = vsel %vm281, %v1762, 0
    %v1771 = vsel %vm281, %v1764, 0
    %v1773 = vsel %vm281, %v1766, 0
    %v1775 = vsel %vm281, %v1768, 0
    %1777 = vmatprep.subr.mxu0 0.0
    %1778 = vmatpush1.xpose.msra.mxu0 %v1773
    %1779 = vmatprep.subr.mxu0 0.0
    %1780 = vmatpush1.xpose.msra.mxu0 %v1775
    %1781 = vmatprep.subr.mxu0 0.0
    %1782 = vmatpush1.xpose.msra.mxu0 0.0
    %1783 = vmatprep.subr.mxu0 0.0
    %1784 = vmatpush1.xpose.msra.mxu0 0.0
    %1785 = vmatprep.subr.mxu0 0.0
    %1786 = vmatpush1.xpose.msra.mxu0 0.0
    %1787 = vmatprep.subr.mxu0 0.0
    %1788 = vmatpush1.xpose.msra.mxu0 0.0
    %1789 = vmatprep.subr.mxu0 0.0
    %1790 = vmatpush1.xpose.msra.mxu0 0.0
    %1791 = vmatprep.subr.mxu0 0.0
    %1792 = vmatpush1.xpose.msra.mxu0 0.0
    %1793 = vmatprep.subr.mxu0 0.0
    %1794 = vmatpush1.xpose.msra.mxu0 0.0
    %1795 = vmatprep.subr.mxu0 0.0
    %1796 = vmatpush1.xpose.msra.mxu0 0.0
    %1797 = vmatprep.subr.mxu0 0.0
    %1798 = vmatpush1.xpose.msra.mxu0 0.0
    %1799 = vmatprep.subr.mxu0 0.0
    %1800 = vmatpush1.xpose.msra.mxu0 0.0
    %1801 = vmatprep.subr.mxu0 0.0
    %1802 = vmatpush1.xpose.msra.mxu0 0.0
    %1803 = vmatprep.subr.mxu0 0.0
    %1804 = vmatpush1.xpose.msra.mxu0 0.0
    %1805 = vmatprep.subr.mxu0 0.0
    %1806 = vmatpush1.xpose.msra.mxu0 0.0
    %1807 = vmatprep.subr.mxu0 0.0
    %1808 = vmatpush1.xpose.msra.mxu0 0.0
    %1809 = vmatprep.subr.mxu0 0.0
    %1810 = vmatpush1.xpose.msra.mxu0 0.0
    %1811 = vmatprep.subr.mxu0 0.0
    %1812 = vmatpush1.xpose.msra.mxu0 0.0
    %1813 = vmatprep.subr.mxu0 0.0
    %1814 = vmatpush1.xpose.msra.mxu0 0.0
    %1815 = vmatprep.subr.mxu0 0.0
    %1816 = vmatpush1.xpose.msra.mxu0 0.0
    %1817 = vmatprep.subr.mxu0 0.0
    %1818 = vmatpush1.xpose.msra.mxu0 0.0
    %1819 = vmatprep.subr.mxu0 0.0
    %1820 = vmatpush1.xpose.msra.mxu0 0.0
    %1821 = vmatprep.subr.mxu0 0.0
    %1822 = vmatpush1.xpose.msra.mxu0 0.0
    %1823 = vmatprep.subr.mxu0 0.0
    %1824 = vmatpush1.xpose.msra.mxu0 0.0
    %1825 = vmatprep.subr.mxu0 0.0
    %1826 = vmatpush1.xpose.msra.mxu0 0.0
    %1827 = vmatprep.subr.mxu0 0.0
    %1828 = vmatpush1.xpose.msra.mxu0 0.0
    %1829 = vmatprep.subr.mxu0 0.0
    %1830 = vmatpush1.xpose.msra.mxu0 0.0
    %1831 = vmatprep.subr.mxu0 0.0
    %1832 = vmatpush1.xpose.msra.mxu0 0.0
    %1833 = vmatprep.subr.mxu0 0.0
    %1834 = vmatpush1.xpose.msra.mxu0 0.0
    %1835 = vmatprep.subr.mxu0 0.0
    %1836 = vmatpush1.xpose.msra.mxu0 0.0
    %1837 = vmatprep.subr.mxu0 0.0
    %1838 = vmatpush1.xpose.msra.mxu0 0.0
    %1839 = vmatprep.subr.mxu0 0.0
    %1840 = vmatpush1.xpose.msra.mxu0 0.0
    %1841 = vmatprep.mubr.f32.mxu0 0.0
    %1842 = vmatmul.mubr.f32.gmra.mrb[0].mxu0 %v1769
    %v1843 = vpop.f32.mrb[0].mxu0
    %v1844 = vadd.f32 %v78, %v1843
    %v1845 = vpop.f32.mrb[0].mxu0
    %1846 = vmatprep.mubr.f32.mxu0 0.0
    %1847 = vmatmul.mubr.f32.gmra.mrb[0].mxu0 %v1771
    %v1848 = vpop.f32.mrb[0].mxu0
    %v1849 = vadd.f32 %v79, %v1848
    %v1850 = vpop.f32.mrb[0].mxu0
    %1851 = vdwg.mxu0
    %v1852 = vsel %vm369, %v1844, -inf
    %1853 = vmax.xlane.f32.xlu0 %v1852
    %v1854 = vpop.xlane.xlu0 %1853
    %v1855 = vsel %vm369, %v1849, -inf
    %1856 = vmax.xlane.f32.xlu0 %v1855
    %v1857 = vpop.xlane.xlu0 %1856
    %v1858 = vsub.f32 %v1844, %v1854
    %v1859 = vsub.f32 %v1849, %v1857
    %v1860 = vmul.f32 %v1858, 1.442695
    %v1861 = vpow.pop %v1860
    %v1862 = vmul.f32 %v1859, 1.442695
    %v1863 = vpow.pop %v1862
    %v1864 = vsel %vm369, %v1861, 0.0
    %1865 = vadd.xlane.f32.xlu0 %v1864
    %v1866 = vpop.xlane.xlu0 %1865
    %v1867 = vsel %vm369, %v1863, 0.0
    %1868 = vadd.xlane.f32.xlu0 %v1867
    %v1869 = vpop.xlane.xlu0 %1868
    %v1870 = vrcp.pop %v1866
    %v1871 = vrcp.pop %v1869
    %v1872 = vmul.f32 %v1861, %v1870
    %v1873 = vmul.f32 %v1863, %v1871
    %v1877 = vsel %vm369, %v1872, 0
    %v1880 = vsel %vm369, %v1873, 0
    %1882 = vmatprep.subr.mxu0 0.0
    %1883 = vmatpush1.msra.mxu0 %v1766
    %1884 = vmatprep.subr.mxu0 0.0
    %1885 = vmatpush1.msra.mxu0 %v1768
    %1886 = vmatprep.subr.mxu0 0.0
    %1887 = vmatpush1.msra.mxu0 0.0
    %1888 = vmatprep.subr.mxu0 0.0
    %1889 = vmatpush1.msra.mxu0 0.0
    %1890 = vmatprep.subr.mxu0 0.0
    %1891 = vmatpush1.msra.mxu0 0.0
    %1892 = vmatprep.subr.mxu0 0.0
    %1893 = vmatpush1.msra.mxu0 0.0
    %1894 = vmatprep.subr.mxu0 0.0
    %1895 = vmatpush1.msra.mxu0 0.0
    %1896 = vmatprep.subr.mxu0 0.0
    %1897 = vmatpush1.msra.mxu0 0.0
    %1898 = vmatprep.subr.mxu0 0.0
    %1899 = vmatpush1.msra.mxu0 0.0
    %1900 = vmatprep.subr.mxu0 0.0
    %1901 = vmatpush1.msra.mxu0 0.0
    %1902 = vmatprep.subr.mxu0 0.0
    %1903 = vmatpush1.msra.mxu0 0.0
    %1904 = vmatprep.subr.mxu0 0.0
    %1905 = vmatpush1.msra.mxu0 0.0
    %1906 = vmatprep.subr.mxu0 0.0
    %1907 = vmatpush1.msra.mxu0 0.0
    %1908 = vmatprep.subr.mxu0 0.0
    %1909 = vmatpush1.msra.mxu0 0.0
    %1910 = vmatprep.subr.mxu0 0.0
    %1911 = vmatpush1.msra.mxu0 0.0
    %1912 = vmatprep.subr.mxu0 0.0
    %1913 = vmatpush1.msra.mxu0 0.0
    %1914 = vmatprep.subr.mxu0 0.0
    %1915 = vmatpush1.msra.mxu0 0.0
    %1916 = vmatprep.subr.mxu0 0.0
    %1917 = vmatpush1.msra.mxu0 0.0
    %1918 = vmatprep.subr.mxu0 0.0
    %1919 = vmatpush1.msra.mxu0 0.0
    %1920 = vmatprep.subr.mxu0 0.0
    %1921 = vmatpush1.msra.mxu0 0.0
    %1922 = vmatprep.subr.mxu0 0.0
    %1923 = vmatpush1.msra.mxu0 0.0
    %1924 = vmatprep.subr.mxu0 0.0
    %1925 = vmatpush1.msra.mxu0 0.0
    %1926 = vmatprep.subr.mxu0 0.0
    %1927 = vmatpush1.msra.mxu0 0.0
    %1928 = vmatprep.subr.mxu0 0.0
    %1929 = vmatpush1.msra.mxu0 0.0
    %1930 = vmatprep.subr.mxu0 0.0
    %1931 = vmatpush1.msra.mxu0 0.0
    %1932 = vmatprep.subr.mxu0 0.0
    %1933 = vmatpush1.msra.mxu0 0.0
    %1934 = vmatprep.subr.mxu0 0.0
    %1935 = vmatpush1.msra.mxu0 0.0
    %1936 = vmatprep.subr.mxu0 0.0
    %1937 = vmatpush1.msra.mxu0 0.0
    %1938 = vmatprep.subr.mxu0 0.0
    %1939 = vmatpush1.msra.mxu0 0.0
    %1940 = vmatprep.subr.mxu0 0.0
    %1941 = vmatpush1.msra.mxu0 0.0
    %1942 = vmatprep.subr.mxu0 0.0
    %1943 = vmatpush1.msra.mxu0 0.0
    %1944 = vmatprep.subr.mxu0 0.0
    %1945 = vmatpush1.msra.mxu0 0.0
    %1946 = vmatprep.mubr.f32.mxu0 0.0
    %1947 = vmatmul.mubr.f32.gmra.mrb[0].mxu0 %v1877
    %v1948 = vpop.f32.mrb[0].mxu0
    %v1949 = vadd.f32 0.0, %v1948
    %v1950 = vpop.f32.mrb[0].mxu0
    %1951 = vmatprep.mubr.f32.mxu0 0.0
    %1952 = vmatmul.mubr.f32.gmra.mrb[0].mxu0 %v1880
    %v1953 = vpop.f32.mrb[0].mxu0
    %v1954 = vadd.f32 0.0, %v1953
    %v1955 = vpop.f32.mrb[0].mxu0
    %1956 = vdwg.mxu0
    %1957 = vrot.lane.b32.xlu0 %v1569, 112
    %v1958 = vpop.permute.xlu0 %1957
    %1959 = vrot.lane.b32.xlu0 %v1570, 112
    %v1960 = vpop.permute.xlu0 %1959
    %1961 = vrot.lane.b32.xlu0 %v1561, 112
    %v1962 = vpop.permute.xlu0 %1961
    %1963 = vrot.lane.b32.xlu0 %v1566, 112
    %v1964 = vpop.permute.xlu0 %1963
    %v1965 = vsel %vm281, %v1958, 0
    %v1967 = vsel %vm281, %v1960, 0
    %v1969 = vsel %vm281, %v1962, 0
    %v1971 = vsel %vm281, %v1964, 0
    %1973 = vmatprep.subr.mxu0 0.0
    %1974 = vmatpush1.xpose.msra.mxu0 %v1969
    %1975 = vmatprep.subr.mxu0 0.0
    %1976 = vmatpush1.xpose.msra.mxu0 %v1971
    %1977 = vmatprep.subr.mxu0 0.0
    %1978 = vmatpush1.xpose.msra.mxu0 0.0
    %1979 = vmatprep.subr.mxu0 0.0
    %1980 = vmatpush1.xpose.msra.mxu0 0.0
    %1981 = vmatprep.subr.mxu0 0.0
    %1982 = vmatpush1.xpose.msra.mxu0 0.0
    %1983 = vmatprep.subr.mxu0 0.0
    %1984 = vmatpush1.xpose.msra.mxu0 0.0
    %1985 = vmatprep.subr.mxu0 0.0
    %1986 = vmatpush1.xpose.msra.mxu0 0.0
    %1987 = vmatprep.subr.mxu0 0.0
    %1988 = vmatpush1.xpose.msra.mxu0 0.0
    %1989 = vmatprep.subr.mxu0 0.0
    %1990 = vmatpush1.xpose.msra.mxu0 0.0
    %1991 = vmatprep.subr.mxu0 0.0
    %1992 = vmatpush1.xpose.msra.mxu0 0.0
    %1993 = vmatprep.subr.mxu0 0.0
    %1994 = vmatpush1.xpose.msra.mxu0 0.0
    %1995 = vmatprep.subr.mxu0 0.0
    %1996 = vmatpush1.xpose.msra.mxu0 0.0
    %1997 = vmatprep.subr.mxu0 0.0
    %1998 = vmatpush1.xpose.msra.mxu0 0.0
    %1999 = vmatprep.subr.mxu0 0.0
    %2000 = vmatpush1.xpose.msra.mxu0 0.0
    %2001 = vmatprep.subr.mxu0 0.0
    %2002 = vmatpush1.xpose.msra.mxu0 0.0
    %2003 = vmatprep.subr.mxu0 0.0
    %2004 = vmatpush1.xpose.msra.mxu0 0.0
    %2005 = vmatprep.subr.mxu0 0.0
    %2006 = vmatpush1.xpose.msra.mxu0 0.0
    %2007 = vmatprep.subr.mxu0 0.0
    %2008 = vmatpush1.xpose.msra.mxu0 0.0
    %2009 = vmatprep.subr.mxu0 0.0
    %2010 = vmatpush1.xpose.msra.mxu0 0.0
    %2011 = vmatprep.subr.mxu0 0.0
    %2012 = vmatpush1.xpose.msra.mxu0 0.0
    %2013 = vmatprep.subr.mxu0 0.0
    %2014 = vmatpush1.xpose.msra.mxu0 0.0
    %2015 = vmatprep.subr.mxu0 0.0
    %2016 = vmatpush1.xpose.msra.mxu0 0.0
    %2017 = vmatprep.subr.mxu0 0.0
    %2018 = vmatpush1.xpose.msra.mxu0 0.0
    %2019 = vmatprep.subr.mxu0 0.0
    %2020 = vmatpush1.xpose.msra.mxu0 0.0
    %2021 = vmatprep.subr.mxu0 0.0
    %2022 = vmatpush1.xpose.msra.mxu0 0.0
    %2023 = vmatprep.subr.mxu0 0.0
    %2024 = vmatpush1.xpose.msra.mxu0 0.0
    %2025 = vmatprep.subr.mxu0 0.0
    %2026 = vmatpush1.xpose.msra.mxu0 0.0
    %2027 = vmatprep.subr.mxu0 0.0
    %2028 = vmatpush1.xpose.msra.mxu0 0.0
    %2029 = vmatprep.subr.mxu0 0.0
    %2030 = vmatpush1.xpose.msra.mxu0 0.0
    %2031 = vmatprep.subr.mxu0 0.0
    %2032 = vmatpush1.xpose.msra.mxu0 0.0
    %2033 = vmatprep.subr.mxu0 0.0
    %2034 = vmatpush1.xpose.msra.mxu0 0.0
    %2035 = vmatprep.subr.mxu0 0.0
    %2036 = vmatpush1.xpose.msra.mxu0 0.0
    %2037 = vmatprep.mubr.f32.mxu0 0.0
    %2038 = vmatmul.mubr.f32.gmra.mrb[0].mxu0 %v1965
    %v2039 = vpop.f32.mrb[0].mxu0
    %v2040 = vadd.f32 %v78, %v2039
    %v2041 = vpop.f32.mrb[0].mxu0
    %2042 = vmatprep.mubr.f32.mxu0 0.0
    %2043 = vmatmul.mubr.f32.gmra.mrb[0].mxu0 %v1967
    %v2044 = vpop.f32.mrb[0].mxu0
    %v2045 = vadd.f32 %v79, %v2044
    %v2046 = vpop.f32.mrb[0].mxu0
    %2047 = vdwg.mxu0
    %v2048 = vsel %vm369, %v2040, -inf
    %2049 = vmax.xlane.f32.xlu0 %v2048
    %v2050 = vpop.xlane.xlu0 %2049
    %v2051 = vsel %vm369, %v2045, -inf
    %2052 = vmax.xlane.f32.xlu0 %v2051
    %v2053 = vpop.xlane.xlu0 %2052
    %v2054 = vsub.f32 %v2040, %v2050
    %v2055 = vsub.f32 %v2045, %v2053
    %v2056 = vmul.f32 %v2054, 1.442695
    %v2057 = vpow.pop %v2056
    %v2058 = vmul.f32 %v2055, 1.442695
    %v2059 = vpow.pop %v2058
    %v2060 = vsel %vm369, %v2057, 0.0
    %2061 = vadd.xlane.f32.xlu0 %v2060
    %v2062 = vpop.xlane.xlu0 %2061
    %v2063 = vsel %vm369, %v2059, 0.0
    %2064 = vadd.xlane.f32.xlu0 %v2063
    %v2065 = vpop.xlane.xlu0 %2064
    %v2066 = vrcp.pop %v2062
    %v2067 = vrcp.pop %v2065
    %v2068 = vmul.f32 %v2057, %v2066
    %v2069 = vmul.f32 %v2059, %v2067
    %v2073 = vsel %vm369, %v2068, 0
    %v2076 = vsel %vm369, %v2069, 0
    %2078 = vmatprep.subr.mxu0 0.0
    %2079 = vmatpush1.msra.mxu0 %v1962
    %2080 = vmatprep.subr.mxu0 0.0
    %2081 = vmatpush1.msra.mxu0 %v1964
    %2082 = vmatprep.subr.mxu0 0.0
    %2083 = vmatpush1.msra.mxu0 0.0
    %2084 = vmatprep.subr.mxu0 0.0
    %2085 = vmatpush1.msra.mxu0 0.0
    %2086 = vmatprep.subr.mxu0 0.0
    %2087 = vmatpush1.msra.mxu0 0.0
    %2088 = vmatprep.subr.mxu0 0.0
    %2089 = vmatpush1.msra.mxu0 0.0
    %2090 = vmatprep.subr.mxu0 0.0
    %2091 = vmatpush1.msra.mxu0 0.0
    %2092 = vmatprep.subr.mxu0 0.0
    %2093 = vmatpush1.msra.mxu0 0.0
    %2094 = vmatprep.subr.mxu0 0.0
    %2095 = vmatpush1.msra.mxu0 0.0
    %2096 = vmatprep.subr.mxu0 0.0
    %2097 = vmatpush1.msra.mxu0 0.0
    %2098 = vmatprep.subr.mxu0 0.0
    %2099 = vmatpush1.msra.mxu0 0.0
    %2100 = vmatprep.subr.mxu0 0.0
    %2101 = vmatpush1.msra.mxu0 0.0
    %2102 = vmatprep.subr.mxu0 0.0
    %2103 = vmatpush1.msra.mxu0 0.0
    %2104 = vmatprep.subr.mxu0 0.0
    %2105 = vmatpush1.msra.mxu0 0.0
    %2106 = vmatprep.subr.mxu0 0.0
    %2107 = vmatpush1.msra.mxu0 0.0
    %2108 = vmatprep.subr.mxu0 0.0
    %2109 = vmatpush1.msra.mxu0 0.0
    %2110 = vmatprep.subr.mxu0 0.0
    %2111 = vmatpush1.msra.mxu0 0.0
    %2112 = vmatprep.subr.mxu0 0.0
    %2113 = vmatpush1.msra.mxu0 0.0
    %2114 = vmatprep.subr.mxu0 0.0
    %2115 = vmatpush1.msra.mxu0 0.0
    %2116 = vmatprep.subr.mxu0 0.0
    %2117 = vmatpush1.msra.mxu0 0.0
    %2118 = vmatprep.subr.mxu0 0.0
    %2119 = vmatpush1.msra.mxu0 0.0
    %2120 = vmatprep.subr.mxu0 0.0
    %2121 = vmatpush1.msra.mxu0 0.0
    %2122 = vmatprep.subr.mxu0 0.0
    %2123 = vmatpush1.msra.mxu0 0.0
    %2124 = vmatprep.subr.mxu0 0.0
    %2125 = vmatpush1.msra.mxu0 0.0
    %2126 = vmatprep.subr.mxu0 0.0
    %2127 = vmatpush1.msra.mxu0 0.0
    %2128 = vmatprep.subr.mxu0 0.0
    %2129 = vmatpush1.msra.mxu0 0.0
    %2130 = vmatprep.subr.mxu0 0.0
    %2131 = vmatpush1.msra.mxu0 0.0
    %2132 = vmatprep.subr.mxu0 0.0
    %2133 = vmatpush1.msra.mxu0 0.0
    %2134 = vmatprep.subr.mxu0 0.0
    %2135 = vmatpush1.msra.mxu0 0.0
    %2136 = vmatprep.subr.mxu0 0.0
    %2137 = vmatpush1.msra.mxu0 0.0
    %2138 = vmatprep.subr.mxu0 0.0
    %2139 = vmatpush1.msra.mxu0 0.0
    %2140 = vmatprep.subr.mxu0 0.0
    %2141 = vmatpush1.msra.mxu0 0.0
    %2142 = vmatprep.mubr.f32.mxu0 0.0
    %2143 = vmatmul.mubr.f32.gmra.mrb[0].mxu0 %v2073
    %v2144 = vpop.f32.mrb[0].mxu0
    %v2145 = vadd.f32 0.0, %v2144
    %v2146 = vpop.f32.mrb[0].mxu0
    %2147 = vmatprep.mubr.f32.mxu0 0.0
    %2148 = vmatmul.mubr.f32.gmra.mrb[0].mxu0 %v2076
    %v2149 = vpop.f32.mrb[0].mxu0
    %v2150 = vadd.f32 0.0, %v2149
    %v2151 = vpop.f32.mrb[0].mxu0
    %2152 = vdwg.mxu0
    %2153 = vrot.lane.b32.xlu0 %v1569, 104
    %v2154 = vpop.permute.xlu0 %2153
    %2155 = vrot.lane.b32.xlu0 %v1570, 104
    %v2156 = vpop.permute.xlu0 %2155
    %2157 = vrot.lane.b32.xlu0 %v1561, 104
    %v2158 = vpop.permute.xlu0 %2157
    %2159 = vrot.lane.b32.xlu0 %v1566, 104
    %v2160 = vpop.permute.xlu0 %2159
    %v2161 = vsel %vm281, %v2154, 0
    %v2163 = vsel %vm281, %v2156, 0
    %v2165 = vsel %vm281, %v2158, 0
    %v2167 = vsel %vm281, %v2160, 0
    %2169 = vmatprep.subr.mxu0 0.0
    %2170 = vmatpush1.xpose.msra.mxu0 %v2165
    %2171 = vmatprep.subr.mxu0 0.0
    %2172 = vmatpush1.xpose.msra.mxu0 %v2167
    %2173 = vmatprep.subr.mxu0 0.0
    %2174 = vmatpush1.xpose.msra.mxu0 0.0
    %2175 = vmatprep.subr.mxu0 0.0
    %2176 = vmatpush1.xpose.msra.mxu0 0.0
    %2177 = vmatprep.subr.mxu0 0.0
    %2178 = vmatpush1.xpose.msra.mxu0 0.0
    %2179 = vmatprep.subr.mxu0 0.0
    %2180 = vmatpush1.xpose.msra.mxu0 0.0
    %2181 = vmatprep.subr.mxu0 0.0
    %2182 = vmatpush1.xpose.msra.mxu0 0.0
    %2183 = vmatprep.subr.mxu0 0.0
    %2184 = vmatpush1.xpose.msra.mxu0 0.0
    %2185 = vmatprep.subr.mxu0 0.0
    %2186 = vmatpush1.xpose.msra.mxu0 0.0
    %2187 = vmatprep.subr.mxu0 0.0
    %2188 = vmatpush1.xpose.msra.mxu0 0.0
    %2189 = vmatprep.subr.mxu0 0.0
    %2190 = vmatpush1.xpose.msra.mxu0 0.0
    %2191 = vmatprep.subr.mxu0 0.0
    %2192 = vmatpush1.xpose.msra.mxu0 0.0
    %2193 = vmatprep.subr.mxu0 0.0
    %2194 = vmatpush1.xpose.msra.mxu0 0.0
    %2195 = vmatprep.subr.mxu0 0.0
    %2196 = vmatpush1.xpose.msra.mxu0 0.0
    %2197 = vmatprep.subr.mxu0 0.0
    %2198 = vmatpush1.xpose.msra.mxu0 0.0
    %2199 = vmatprep.subr.mxu0 0.0
    %2200 = vmatpush1.xpose.msra.mxu0 0.0
    %2201 = vmatprep.subr.mxu0 0.0
    %2202 = vmatpush1.xpose.msra.mxu0 0.0
    %2203 = vmatprep.subr.mxu0 0.0
    %2204 = vmatpush1.xpose.msra.mxu0 0.0
    %2205 = vmatprep.subr.mxu0 0.0
    %2206 = vmatpush1.xpose.msra.mxu0 0.0
    %2207 = vmatprep.subr.mxu0 0.0
    %2208 = vmatpush1.xpose.msra.mxu0 0.0
    %2209 = vmatprep.subr.mxu0 0.0
    %2210 = vmatpush1.xpose.msra.mxu0 0.0
    %2211 = vmatprep.subr.mxu0 0.0
    %2212 = vmatpush1.xpose.msra.mxu0 0.0
    %2213 = vmatprep.subr.mxu0 0.0
    %2214 = vmatpush1.xpose.msra.mxu0 0.0
    %2215 = vmatprep.subr.mxu0 0.0
    %2216 = vmatpush1.xpose.msra.mxu0 0.0
    %2217 = vmatprep.subr.mxu0 0.0
    %2218 = vmatpush1.xpose.msra.mxu0 0.0
    %2219 = vmatprep.subr.mxu0 0.0
    %2220 = vmatpush1.xpose.msra.mxu0 0.0
    %2221 = vmatprep.subr.mxu0 0.0
    %2222 = vmatpush1.xpose.msra.mxu0 0.0
    %2223 = vmatprep.subr.mxu0 0.0
    %2224 = vmatpush1.xpose.msra.mxu0 0.0
    %2225 = vmatprep.subr.mxu0 0.0
    %2226 = vmatpush1.xpose.msra.mxu0 0.0
    %2227 = vmatprep.subr.mxu0 0.0
    %2228 = vmatpush1.xpose.msra.mxu0 0.0
    %2229 = vmatprep.subr.mxu0 0.0
    %2230 = vmatpush1.xpose.msra.mxu0 0.0
    %2231 = vmatprep.subr.mxu0 0.0
    %2232 = vmatpush1.xpose.msra.mxu0 0.0
    %2233 = vmatprep.mubr.f32.mxu0 0.0
    %2234 = vmatmul.mubr.f32.gmra.mrb[0].mxu0 %v2161
    %v2235 = vpop.f32.mrb[0].mxu0
    %v2236 = vadd.f32 %v78, %v2235
    %v2237 = vpop.f32.mrb[0].mxu0
    %2238 = vmatprep.mubr.f32.mxu0 0.0
    %2239 = vmatmul.mubr.f32.gmra.mrb[0].mxu0 %v2163
    %v2240 = vpop.f32.mrb[0].mxu0
    %v2241 = vadd.f32 %v79, %v2240
    %v2242 = vpop.f32.mrb[0].mxu0
    %2243 = vdwg.mxu0
    %v2244 = vsel %vm369, %v2236, -inf
    %2245 = vmax.xlane.f32.xlu0 %v2244
    %v2246 = vpop.xlane.xlu0 %2245
    %v2247 = vsel %vm369, %v2241, -inf
    %2248 = vmax.xlane.f32.xlu0 %v2247
    %v2249 = vpop.xlane.xlu0 %2248
    %v2250 = vsub.f32 %v2236, %v2246
    %v2251 = vsub.f32 %v2241, %v2249
    %v2252 = vmul.f32 %v2250, 1.442695
    %v2253 = vpow.pop %v2252
    %v2254 = vmul.f32 %v2251, 1.442695
    %v2255 = vpow.pop %v2254
    %v2256 = vsel %vm369, %v2253, 0.0
    %2257 = vadd.xlane.f32.xlu0 %v2256
    %v2258 = vpop.xlane.xlu0 %2257
    %v2259 = vsel %vm369, %v2255, 0.0
    %2260 = vadd.xlane.f32.xlu0 %v2259
    %v2261 = vpop.xlane.xlu0 %2260
    %v2262 = vrcp.pop %v2258
    %v2263 = vrcp.pop %v2261
    %v2264 = vmul.f32 %v2253, %v2262
    %v2265 = vmul.f32 %v2255, %v2263
    %v2269 = vsel %vm369, %v2264, 0
    %v2272 = vsel %vm369, %v2265, 0
    %2274 = vmatprep.subr.mxu0 0.0
    %2275 = vmatpush1.msra.mxu0 %v2158
    %2276 = vmatprep.subr.mxu0 0.0
    %2277 = vmatpush1.msra.mxu0 %v2160
    %2278 = vmatprep.subr.mxu0 0.0
    %2279 = vmatpush1.msra.mxu0 0.0
    %2280 = vmatprep.subr.mxu0 0.0
    %2281 = vmatpush1.msra.mxu0 0.0
    %2282 = vmatprep.subr.mxu0 0.0
    %2283 = vmatpush1.msra.mxu0 0.0
    %2284 = vmatprep.subr.mxu0 0.0
    %2285 = vmatpush1.msra.mxu0 0.0
    %2286 = vmatprep.subr.mxu0 0.0
    %2287 = vmatpush1.msra.mxu0 0.0
    %2288 = vmatprep.subr.mxu0 0.0
    %2289 = vmatpush1.msra.mxu0 0.0
    %2290 = vmatprep.subr.mxu0 0.0
    %2291 = vmatpush1.msra.mxu0 0.0
    %2292 = vmatprep.subr.mxu0 0.0
    %2293 = vmatpush1.msra.mxu0 0.0
    %2294 = vmatprep.subr.mxu0 0.0
    %2295 = vmatpush1.msra.mxu0 0.0
    %2296 = vmatprep.subr.mxu0 0.0
    %2297 = vmatpush1.msra.mxu0 0.0
    %2298 = vmatprep.subr.mxu0 0.0
    %2299 = vmatpush1.msra.mxu0 0.0
    %2300 = vmatprep.subr.mxu0 0.0
    %2301 = vmatpush1.msra.mxu0 0.0
    %2302 = vmatprep.subr.mxu0 0.0
    %2303 = vmatpush1.msra.mxu0 0.0
    %2304 = vmatprep.subr.mxu0 0.0
    %2305 = vmatpush1.msra.mxu0 0.0
    %2306 = vmatprep.subr.mxu0 0.0
    %2307 = vmatpush1.msra.mxu0 0.0
    %2308 = vmatprep.subr.mxu0 0.0
    %2309 = vmatpush1.msra.mxu0 0.0
    %2310 = vmatprep.subr.mxu0 0.0
    %2311 = vmatpush1.msra.mxu0 0.0
    %2312 = vmatprep.subr.mxu0 0.0
    %2313 = vmatpush1.msra.mxu0 0.0
    %2314 = vmatprep.subr.mxu0 0.0
    %2315 = vmatpush1.msra.mxu0 0.0
    %2316 = vmatprep.subr.mxu0 0.0
    %2317 = vmatpush1.msra.mxu0 0.0
    %2318 = vmatprep.subr.mxu0 0.0
    %2319 = vmatpush1.msra.mxu0 0.0
    %2320 = vmatprep.subr.mxu0 0.0
    %2321 = vmatpush1.msra.mxu0 0.0
    %2322 = vmatprep.subr.mxu0 0.0
    %2323 = vmatpush1.msra.mxu0 0.0
    %2324 = vmatprep.subr.mxu0 0.0
    %2325 = vmatpush1.msra.mxu0 0.0
    %2326 = vmatprep.subr.mxu0 0.0
    %2327 = vmatpush1.msra.mxu0 0.0
    %2328 = vmatprep.subr.mxu0 0.0
    %2329 = vmatpush1.msra.mxu0 0.0
    %2330 = vmatprep.subr.mxu0 0.0
    %2331 = vmatpush1.msra.mxu0 0.0
    %2332 = vmatprep.subr.mxu0 0.0
    %2333 = vmatpush1.msra.mxu0 0.0
    %2334 = vmatprep.subr.mxu0 0.0
    %2335 = vmatpush1.msra.mxu0 0.0
    %2336 = vmatprep.subr.mxu0 0.0
    %2337 = vmatpush1.msra.mxu0 0.0
    %2338 = vmatprep.mubr.f32.mxu0 0.0
    %2339 = vmatmul.mubr.f32.gmra.mrb[0].mxu0 %v2269
    %v2340 = vpop.f32.mrb[0].mxu0
    %v2341 = vadd.f32 0.0, %v2340
    %v2342 = vpop.f32.mrb[0].mxu0
    %2343 = vmatprep.mubr.f32.mxu0 0.0
    %2344 = vmatmul.mubr.f32.gmra.mrb[0].mxu0 %v2272
    %v2345 = vpop.f32.mrb[0].mxu0
    %v2346 = vadd.f32 0.0, %v2345
    %v2347 = vpop.f32.mrb[0].mxu0
    %2348 = vdwg.mxu0
    %2351 = vrot.lane.b32.xlu0 %v1949, 8
    %v2352 = vpop.permute.xlu0 %2351
    %2353 = vrot.lane.b32.xlu0 %v1954, 8
    %v2354 = vpop.permute.xlu0 %2353
    %2359 = vrot.lane.b32.xlu0 %v2145, 16
    %v2360 = vpop.permute.xlu0 %2359
    %2361 = vrot.lane.b32.xlu0 %v2150, 16
    %v2362 = vpop.permute.xlu0 %2361
    %2367 = vrot.lane.b32.xlu0 %v2341, 24
    %v2368 = vpop.permute.xlu0 %2367
    %2369 = vrot.lane.b32.xlu0 %v2346, 24
    %v2370 = vpop.permute.xlu0 %2369
    %v2373 = vsel %vm281, %v1753, %v2352
    %v2374 = vsel %vm281, %v1758, %v2354
    %v2375 = vsel %vm369, %v2373, %v2360
    %v2376 = vsel %vm369, %v2374, %v2362
    %v2377 = vsel %vm1089, %v2375, %v2368
    %v2378 = vsel %vm1089, %v2376, %v2370
    %v2380 = vlaneseq
    %v2381 = vshrl.u32 %v2380, 7
    %v2382 = vsub.s32 0, %v2381
    %v2383 = vrot.slane %v1471, %v2382
    %v2386 = vsel %vm197, %v2377, 0
    %v2389 = vsel %vm197, %v2378, 0
    %2391 = vmatprep.subr.mxu0 0.0
    %2392 = vmatpush1.msra.mxu0 %v1464
    %2393 = vmatprep.subr.mxu0 0.0
    %2394 = vmatpush1.msra.mxu0 %v1465
    %2395 = vmatprep.subr.mxu0 0.0
    %2396 = vmatpush1.msra.mxu0 %v1466
    %2397 = vmatprep.subr.mxu0 0.0
    %2398 = vmatpush1.msra.mxu0 %v1467
    %2399 = vmatprep.subr.mxu0 0.0
    %2400 = vmatpush1.msra.mxu0 0.0
    %2401 = vmatprep.subr.mxu0 0.0
    %2402 = vmatpush1.msra.mxu0 0.0
    %2403 = vmatprep.subr.mxu0 0.0
    %2404 = vmatpush1.msra.mxu0 0.0
    %2405 = vmatprep.subr.mxu0 0.0
    %2406 = vmatpush1.msra.mxu0 0.0
    %2407 = vmatprep.subr.mxu0 0.0
    %2408 = vmatpush1.msra.mxu0 0.0
    %2409 = vmatprep.subr.mxu0 0.0
    %2410 = vmatpush1.msra.mxu0 0.0
    %2411 = vmatprep.subr.mxu0 0.0
    %2412 = vmatpush1.msra.mxu0 0.0
    %2413 = vmatprep.subr.mxu0 0.0
    %2414 = vmatpush1.msra.mxu0 0.0
    %2415 = vmatprep.subr.mxu0 0.0
    %2416 = vmatpush1.msra.mxu0 0.0
    %2417 = vmatprep.subr.mxu0 0.0
    %2418 = vmatpush1.msra.mxu0 0.0
    %2419 = vmatprep.subr.mxu0 0.0
    %2420 = vmatpush1.msra.mxu0 0.0
    %2421 = vmatprep.subr.mxu0 0.0
    %2422 = vmatpush1.msra.mxu0 0.0
    %2423 = vmatprep.subr.mxu0 0.0
    %2424 = vmatpush1.msra.mxu0 0.0
    %2425 = vmatprep.subr.mxu0 0.0
    %2426 = vmatpush1.msra.mxu0 0.0
    %2427 = vmatprep.subr.mxu0 0.0
    %2428 = vmatpush1.msra.mxu0 0.0
    %2429 = vmatprep.subr.mxu0 0.0
    %2430 = vmatpush1.msra.mxu0 0.0
    %2431 = vmatprep.subr.mxu0 0.0
    %2432 = vmatpush1.msra.mxu0 0.0
    %2433 = vmatprep.subr.mxu0 0.0
    %2434 = vmatpush1.msra.mxu0 0.0
    %2435 = vmatprep.subr.mxu0 0.0
    %2436 = vmatpush1.msra.mxu0 0.0
    %2437 = vmatprep.subr.mxu0 0.0
    %2438 = vmatpush1.msra.mxu0 0.0
    %2439 = vmatprep.subr.mxu0 0.0
    %2440 = vmatpush1.msra.mxu0 0.0
    %2441 = vmatprep.subr.mxu0 0.0
    %2442 = vmatpush1.msra.mxu0 0.0
    %2443 = vmatprep.subr.mxu0 0.0
    %2444 = vmatpush1.msra.mxu0 0.0
    %2445 = vmatprep.subr.mxu0 0.0
    %2446 = vmatpush1.msra.mxu0 0.0
    %2447 = vmatprep.subr.mxu0 0.0
    %2448 = vmatpush1.msra.mxu0 0.0
    %2449 = vmatprep.subr.mxu0 0.0
    %2450 = vmatpush1.msra.mxu0 0.0
    %2451 = vmatprep.subr.mxu0 0.0
    %2452 = vmatpush1.msra.mxu0 0.0
    %2453 = vmatprep.subr.mxu0 0.0
    %2454 = vmatpush1.msra.mxu0 0.0
    %2455 = vmatprep.mubr.f32.mxu0 0.0
    %2456 = vmatmul.mubr.f32.gmra.mrb[0].mxu0 %v2386
    %v2457 = vpop.f32.mrb[0].mxu0
    %v2458 = vadd.f32 %v2383, %v2457
    %v2459 = vpop.f32.mrb[0].mxu0
    %2460 = vmatprep.mubr.f32.mxu0 0.0
    %2461 = vmatmul.mubr.f32.gmra.mrb[0].mxu0 %v2389
    %v2462 = vpop.f32.mrb[0].mxu0
    %v2463 = vadd.f32 %v2383, %v2462
    %v2464 = vpop.f32.mrb[0].mxu0
    %2465 = vdwg.mxu0
    %v2466 = vadd.f32 %v2458, %v1456
    %v2467 = vadd.f32 %v2463, %v1457
    %v2468 = vsel %vm197, %v2466, 0.0
    %2469 = vadd.xlane.f32.xlu0 %v2468
    %v2470 = vpop.xlane.xlu0 %2469
    %v2471 = vsel %vm197, %v2467, 0.0
    %2472 = vadd.xlane.f32.xlu0 %v2471
    %v2473 = vpop.xlane.xlu0 %2472
    %v2474 = vmul.f32 %v2470, %v1187
    %v2475 = vmul.f32 %v2473, %v1187
    %v2476 = vsub.f32 %v2466, %v2474
    %v2477 = vsub.f32 %v2467, %v2475
    %v2478 = vmul.f32 %v2476, %v2476
    %v2479 = vmul.f32 %v2477, %v2477
    %v2480 = vsel %vm197, %v2478, 0.0
    %2481 = vadd.xlane.f32.xlu0 %v2480
    %v2482 = vpop.xlane.xlu0 %2481
    %v2483 = vsel %vm197, %v2479, 0.0
    %2484 = vadd.xlane.f32.xlu0 %v2483
    %v2485 = vpop.xlane.xlu0 %2484
    %v2486 = vmul.f32 %v2482, %v1187
    %v2487 = vmul.f32 %v2485, %v1187
    %v2488 = vadd.f32 %v2486, 1e-05
    %v2489 = vadd.f32 %v2487, 1e-05
    %v2490 = vrsqrt.pop %v2488
    %v2491 = vrsqrt.pop %v2489
    %v2492 = vmul.f32 %v2476, %v2490
    %v2493 = vmul.f32 %v2477, %v2491
    %v2495 = vlaneseq
    %v2496 = vshrl.u32 %v2495, 7
    %v2497 = vsub.s32 0, %v2496
    %v2498 = vrot.slane %v1475, %v2497
    %v2500 = vmul.f32 %v2492, %v2498
    %v2501 = vmul.f32 %v2493, %v2498
    %v2503 = vlaneseq
    %v2504 = vshrl.u32 %v2503, 7
    %v2505 = vsub.s32 0, %v2504
    %v2506 = vrot.slane %v1477, %v2505
    %v2508 = vadd.f32 %v2500, %v2506
    %v2509 = vadd.f32 %v2501, %v2506
    %s2510 = scalar_lea.vmem %s5, 32
    %v2511 = vld [vmem:[%s2510] sm:$0xff]
    %v2512 = vld [vmem:[%s2510 + $0x8] sm:$0xff]
    %v2513 = vld [vmem:[%s2510 + $0x10] sm:$0xff]
    %v2514 = vld [vmem:[%s2510 + $0x18] sm:$0xff]
    %s2515 = scalar_lea.vmem %s6, 1
    %v2516 = vld [vmem:[%s2515] sm:$0x1]
    %v2518 = vlaneseq
    %v2519 = vshrl.u32 %v2518, 7
    %v2520 = vsub.s32 0, %v2519
    %v2521 = vrot.slane %v2516, %v2520
    %v2524 = vsel %vm197, %v2508, 0
    %v2527 = vsel %vm197, %v2509, 0
    %2529 = vmatprep.subr.mxu0 0.0
    %2530 = vmatpush1.msra.mxu0 %v2511
    %2531 = vmatprep.subr.mxu0 0.0
    %2532 = vmatpush1.msra.mxu0 %v2512
    %2533 = vmatprep.subr.mxu0 0.0
    %2534 = vmatpush1.msra.mxu0 %v2513
    %2535 = vmatprep.subr.mxu0 0.0
    %2536 = vmatpush1.msra.mxu0 %v2514
    %2537 = vmatprep.subr.mxu0 0.0
    %2538 = vmatpush1.msra.mxu0 0.0
    %2539 = vmatprep.subr.mxu0 0.0
    %2540 = vmatpush1.msra.mxu0 0.0
    %2541 = vmatprep.subr.mxu0 0.0
    %2542 = vmatpush1.msra.mxu0 0.0
    %2543 = vmatprep.subr.mxu0 0.0
    %2544 = vmatpush1.msra.mxu0 0.0
    %2545 = vmatprep.subr.mxu0 0.0
    %2546 = vmatpush1.msra.mxu0 0.0
    %2547 = vmatprep.subr.mxu0 0.0
    %2548 = vmatpush1.msra.mxu0 0.0
    %2549 = vmatprep.subr.mxu0 0.0
    %2550 = vmatpush1.msra.mxu0 0.0
    %2551 = vmatprep.subr.mxu0 0.0
    %2552 = vmatpush1.msra.mxu0 0.0
    %2553 = vmatprep.subr.mxu0 0.0
    %2554 = vmatpush1.msra.mxu0 0.0
    %2555 = vmatprep.subr.mxu0 0.0
    %2556 = vmatpush1.msra.mxu0 0.0
    %2557 = vmatprep.subr.mxu0 0.0
    %2558 = vmatpush1.msra.mxu0 0.0
    %2559 = vmatprep.subr.mxu0 0.0
    %2560 = vmatpush1.msra.mxu0 0.0
    %2561 = vmatprep.subr.mxu0 0.0
    %2562 = vmatpush1.msra.mxu0 0.0
    %2563 = vmatprep.subr.mxu0 0.0
    %2564 = vmatpush1.msra.mxu0 0.0
    %2565 = vmatprep.subr.mxu0 0.0
    %2566 = vmatpush1.msra.mxu0 0.0
    %2567 = vmatprep.subr.mxu0 0.0
    %2568 = vmatpush1.msra.mxu0 0.0
    %2569 = vmatprep.subr.mxu0 0.0
    %2570 = vmatpush1.msra.mxu0 0.0
    %2571 = vmatprep.subr.mxu0 0.0
    %2572 = vmatpush1.msra.mxu0 0.0
    %2573 = vmatprep.subr.mxu0 0.0
    %2574 = vmatpush1.msra.mxu0 0.0
    %2575 = vmatprep.subr.mxu0 0.0
    %2576 = vmatpush1.msra.mxu0 0.0
    %2577 = vmatprep.subr.mxu0 0.0
    %2578 = vmatpush1.msra.mxu0 0.0
    %2579 = vmatprep.subr.mxu0 0.0
    %2580 = vmatpush1.msra.mxu0 0.0
    %2581 = vmatprep.subr.mxu0 0.0
    %2582 = vmatpush1.msra.mxu0 0.0
    %2583 = vmatprep.subr.mxu0 0.0
    %2584 = vmatpush1.msra.mxu0 0.0
    %2585 = vmatprep.subr.mxu0 0.0
    %2586 = vmatpush1.msra.mxu0 0.0
    %2587 = vmatprep.subr.mxu0 0.0
    %2588 = vmatpush1.msra.mxu0 0.0
    %2589 = vmatprep.subr.mxu0 0.0
    %2590 = vmatpush1.msra.mxu0 0.0
    %2591 = vmatprep.subr.mxu0 0.0
    %2592 = vmatpush1.msra.mxu0 0.0
    %2593 = vmatprep.mubr.f32.mxu0 0.0
    %2594 = vmatmul.mubr.f32.gmra.mrb[0].mxu0 %v2524
    %v2595 = vpop.f32.mrb[0].mxu0
    %v2596 = vadd.f32 %v2521, %v2595
    %v2597 = vpop.f32.mrb[0].mxu0
    %2598 = vmatprep.mubr.f32.mxu0 0.0
    %2599 = vmatmul.mubr.f32.gmra.mrb[0].mxu0 %v2527
    %v2600 = vpop.f32.mrb[0].mxu0
    %v2601 = vadd.f32 %v2521, %v2600
    %v2602 = vpop.f32.mrb[0].mxu0
    %2603 = vdwg.mxu0
    %v2604 = vmax.f32 %v2596, 0.0
    %v2605 = vmax.f32 %v2601, 0.0
    %s2606 = scalar_lea.vmem %s7, 64
    %v2607 = vld [vmem:[%s2606] sm:$0xff]
    %v2608 = vld [vmem:[%s2606 + $0x8] sm:$0xff]
    %v2609 = vld [vmem:[%s2606 + $0x10] sm:$0xff]
    %v2610 = vld [vmem:[%s2606 + $0x18] sm:$0xff]
    %v2611 = vld [vmem:[%s2606 + $0x20] sm:$0xff]
    %v2612 = vld [vmem:[%s2606 + $0x28] sm:$0xff]
    %v2613 = vld [vmem:[%s2606 + $0x30] sm:$0xff]
    %v2614 = vld [vmem:[%s2606 + $0x38] sm:$0xff]
    %v2616 = vlaneseq
    %v2617 = vshrl.u32 %v2616, 7
    %v2618 = vsub.s32 0, %v2617
    %v2619 = vrot.slane %v1473, %v2618
    %v2622 = vsel %vm1332, %v2604, 0
    %v2625 = vsel %vm1332, %v2605, 0
    %2627 = vmatprep.subr.mxu0 0.0
    %2628 = vmatpush1.msra.mxu0 %v2607
    %2629 = vmatprep.subr.mxu0 0.0
    %2630 = vmatpush1.msra.mxu0 %v2608
    %2631 = vmatprep.subr.mxu0 0.0
    %2632 = vmatpush1.msra.mxu0 %v2609
    %2633 = vmatprep.subr.mxu0 0.0
    %2634 = vmatpush1.msra.mxu0 %v2610
    %2635 = vmatprep.subr.mxu0 0.0
    %2636 = vmatpush1.msra.mxu0 %v2611
    %2637 = vmatprep.subr.mxu0 0.0
    %2638 = vmatpush1.msra.mxu0 %v2612
    %2639 = vmatprep.subr.mxu0 0.0
    %2640 = vmatpush1.msra.mxu0 %v2613
    %2641 = vmatprep.subr.mxu0 0.0
    %2642 = vmatpush1.msra.mxu0 %v2614
    %2643 = vmatprep.subr.mxu0 0.0
    %2644 = vmatpush1.msra.mxu0 0.0
    %2645 = vmatprep.subr.mxu0 0.0
    %2646 = vmatpush1.msra.mxu0 0.0
    %2647 = vmatprep.subr.mxu0 0.0
    %2648 = vmatpush1.msra.mxu0 0.0
    %2649 = vmatprep.subr.mxu0 0.0
    %2650 = vmatpush1.msra.mxu0 0.0
    %2651 = vmatprep.subr.mxu0 0.0
    %2652 = vmatpush1.msra.mxu0 0.0
    %2653 = vmatprep.subr.mxu0 0.0
    %2654 = vmatpush1.msra.mxu0 0.0
    %2655 = vmatprep.subr.mxu0 0.0
    %2656 = vmatpush1.msra.mxu0 0.0
    %2657 = vmatprep.subr.mxu0 0.0
    %2658 = vmatpush1.msra.mxu0 0.0
    %2659 = vmatprep.subr.mxu0 0.0
    %2660 = vmatpush1.msra.mxu0 0.0
    %2661 = vmatprep.subr.mxu0 0.0
    %2662 = vmatpush1.msra.mxu0 0.0
    %2663 = vmatprep.subr.mxu0 0.0
    %2664 = vmatpush1.msra.mxu0 0.0
    %2665 = vmatprep.subr.mxu0 0.0
    %2666 = vmatpush1.msra.mxu0 0.0
    %2667 = vmatprep.subr.mxu0 0.0
    %2668 = vmatpush1.msra.mxu0 0.0
    %2669 = vmatprep.subr.mxu0 0.0
    %2670 = vmatpush1.msra.mxu0 0.0
    %2671 = vmatprep.subr.mxu0 0.0
    %2672 = vmatpush1.msra.mxu0 0.0
    %2673 = vmatprep.subr.mxu0 0.0
    %2674 = vmatpush1.msra.mxu0 0.0
    %2675 = vmatprep.subr.mxu0 0.0
    %2676 = vmatpush1.msra.mxu0 0.0
    %2677 = vmatprep.subr.mxu0 0.0
    %2678 = vmatpush1.msra.mxu0 0.0
    %2679 = vmatprep.subr.mxu0 0.0
    %2680 = vmatpush1.msra.mxu0 0.0
    %2681 = vmatprep.subr.mxu0 0.0
    %2682 = vmatpush1.msra.mxu0 0.0
    %2683 = vmatprep.subr.mxu0 0.0
    %2684 = vmatpush1.msra.mxu0 0.0
    %2685 = vmatprep.subr.mxu0 0.0
    %2686 = vmatpush1.msra.mxu0 0.0
    %2687 = vmatprep.subr.mxu0 0.0
    %2688 = vmatpush1.msra.mxu0 0.0
    %2689 = vmatprep.subr.mxu0 0.0
    %2690 = vmatpush1.msra.mxu0 0.0
    %2691 = vmatprep.mubr.f32.mxu0 0.0
    %2692 = vmatmul.mubr.f32.gmra.mrb[0].mxu0 %v2622
    %v2693 = vpop.f32.mrb[0].mxu0
    %v2694 = vadd.f32 %v2619, %v2693
    %v2695 = vpop.f32.mrb[0].mxu0
    %2696 = vmatprep.mubr.f32.mxu0 0.0
    %2697 = vmatmul.mubr.f32.gmra.mrb[0].mxu0 %v2625
    %v2698 = vpop.f32.mrb[0].mxu0
    %v2699 = vadd.f32 %v2619, %v2698
    %v2700 = vpop.f32.mrb[0].mxu0
    %2701 = vdwg.mxu0
    %v2702 = vadd.f32 %v2694, %v2508
    %v2703 = vadd.f32 %v2699, %v2509
    %v2704 = vsel %vm197, %v2702, 0.0
    %2705 = vadd.xlane.f32.xlu0 %v2704
    %v2706 = vpop.xlane.xlu0 %2705
    %v2707 = vsel %vm197, %v2703, 0.0
    %2708 = vadd.xlane.f32.xlu0 %v2707
    %v2709 = vpop.xlane.xlu0 %2708
    %v2710 = vmul.f32 %v2706, %v1187
    %v2711 = vmul.f32 %v2709, %v1187
    %v2712 = vsub.f32 %v2702, %v2710
    %v2713 = vsub.f32 %v2703, %v2711
    %v2714 = vmul.f32 %v2712, %v2712
    %v2715 = vmul.f32 %v2713, %v2713
    %v2716 = vsel %vm197, %v2714, 0.0
    %2717 = vadd.xlane.f32.xlu0 %v2716
    %v2718 = vpop.xlane.xlu0 %2717
    %v2719 = vsel %vm197, %v2715, 0.0
    %2720 = vadd.xlane.f32.xlu0 %v2719
    %v2721 = vpop.xlane.xlu0 %2720
    %v2722 = vmul.f32 %v2718, %v1187
    %v2723 = vmul.f32 %v2721, %v1187
    %v2724 = vadd.f32 %v2722, 1e-05
    %v2725 = vadd.f32 %v2723, 1e-05
    %v2726 = vrsqrt.pop %v2724
    %v2727 = vrsqrt.pop %v2725
    %v2728 = vmul.f32 %v2712, %v2726
    %v2729 = vmul.f32 %v2713, %v2727
    %v2731 = vlaneseq
    %v2732 = vshrl.u32 %v2731, 7
    %v2733 = vsub.s32 0, %v2732
    %v2734 = vrot.slane %v1479, %v2733
    %v2736 = vmul.f32 %v2728, %v2734
    %v2737 = vmul.f32 %v2729, %v2734
    %v2739 = vlaneseq
    %v2740 = vshrl.u32 %v2739, 7
    %v2741 = vsub.s32 0, %v2740
    %v2742 = vrot.slane %v1481, %v2741
    %v2744 = vadd.f32 %v2736, %v2742
    %v2745 = vadd.f32 %v2737, %v2742
    %v2746 = vld [vmem:[%s9] sm:$0xff]
    %v2747 = vld [vmem:[%s9 + $0x8] sm:$0xff]
    %v2748 = vld [vmem:[%s9 + $0x10] sm:$0xff]
    %v2749 = vld [vmem:[%s9 + $0x18] sm:$0xff]
    %v2750 = vld [vmem:[#allocation2] sm:$0x1]
    %v2752 = vlaneseq
    %v2753 = vshrl.u32 %v2752, 7
    %v2754 = vsub.s32 0, %v2753
    %v2755 = vrot.slane %v2750, %v2754
    %v2758 = vsel %vm197, %v2744, 0
    %v2761 = vsel %vm197, %v2745, 0
    %2763 = vmatprep.subr.mxu0 0.0
    %2764 = vmatpush1.msra.mxu0 %v2746
    %2765 = vmatprep.subr.mxu0 0.0
    %2766 = vmatpush1.msra.mxu0 %v2747
    %2767 = vmatprep.subr.mxu0 0.0
    %2768 = vmatpush1.msra.mxu0 %v2748
    %2769 = vmatprep.subr.mxu0 0.0
    %2770 = vmatpush1.msra.mxu0 %v2749
    %2771 = vmatprep.subr.mxu0 0.0
    %2772 = vmatpush1.msra.mxu0 0.0
    %2773 = vmatprep.subr.mxu0 0.0
    %2774 = vmatpush1.msra.mxu0 0.0
    %2775 = vmatprep.subr.mxu0 0.0
    %2776 = vmatpush1.msra.mxu0 0.0
    %2777 = vmatprep.subr.mxu0 0.0
    %2778 = vmatpush1.msra.mxu0 0.0
    %2779 = vmatprep.subr.mxu0 0.0
    %2780 = vmatpush1.msra.mxu0 0.0
    %2781 = vmatprep.subr.mxu0 0.0
    %2782 = vmatpush1.msra.mxu0 0.0
    %2783 = vmatprep.subr.mxu0 0.0
    %2784 = vmatpush1.msra.mxu0 0.0
    %2785 = vmatprep.subr.mxu0 0.0
    %2786 = vmatpush1.msra.mxu0 0.0
    %2787 = vmatprep.subr.mxu0 0.0
    %2788 = vmatpush1.msra.mxu0 0.0
    %2789 = vmatprep.subr.mxu0 0.0
    %2790 = vmatpush1.msra.mxu0 0.0
    %2791 = vmatprep.subr.mxu0 0.0
    %2792 = vmatpush1.msra.mxu0 0.0
    %2793 = vmatprep.subr.mxu0 0.0
    %2794 = vmatpush1.msra.mxu0 0.0
    %2795 = vmatprep.subr.mxu0 0.0
    %2796 = vmatpush1.msra.mxu0 0.0
    %2797 = vmatprep.subr.mxu0 0.0
    %2798 = vmatpush1.msra.mxu0 0.0
    %2799 = vmatprep.subr.mxu0 0.0
    %2800 = vmatpush1.msra.mxu0 0.0
    %2801 = vmatprep.subr.mxu0 0.0
    %2802 = vmatpush1.msra.mxu0 0.0
    %2803 = vmatprep.subr.mxu0 0.0
    %2804 = vmatpush1.msra.mxu0 0.0
    %2805 = vmatprep.subr.mxu0 0.0
    %2806 = vmatpush1.msra.mxu0 0.0
    %2807 = vmatprep.subr.mxu0 0.0
    %2808 = vmatpush1.msra.mxu0 0.0
    %2809 = vmatprep.subr.mxu0 0.0
    %2810 = vmatpush1.msra.mxu0 0.0
    %2811 = vmatprep.subr.mxu0 0.0
    %2812 = vmatpush1.msra.mxu0 0.0
    %2813 = vmatprep.subr.mxu0 0.0
    %2814 = vmatpush1.msra.mxu0 0.0
    %2815 = vmatprep.subr.mxu0 0.0
    %2816 = vmatpush1.msra.mxu0 0.0
    %2817 = vmatprep.subr.mxu0 0.0
    %2818 = vmatpush1.msra.mxu0 0.0
    %2819 = vmatprep.subr.mxu0 0.0
    %2820 = vmatpush1.msra.mxu0 0.0
    %2821 = vmatprep.subr.mxu0 0.0
    %2822 = vmatpush1.msra.mxu0 0.0
    %2823 = vmatprep.subr.mxu0 0.0
    %2824 = vmatpush1.msra.mxu0 0.0
    %2825 = vmatprep.subr.mxu0 0.0
    %2826 = vmatpush1.msra.mxu0 0.0
    %2827 = vmatprep.mubr.f32.mxu0 0.0
    %2828 = vmatmul.mubr.f32.gmra.mrb[0].mxu0 %v2758
    %v2829 = vpop.f32.mrb[0].mxu0
    %v2830 = vadd.f32 %v2755, %v2829
    %v2831 = vpop.f32.mrb[0].mxu0
    %2832 = vmatprep.mubr.f32.mxu0 0.0
    %2833 = vmatmul.mubr.f32.gmra.mrb[0].mxu0 %v2761
    %v2834 = vpop.f32.mrb[0].mxu0
    %v2835 = vadd.f32 %v2755, %v2834
    %v2836 = vpop.f32.mrb[0].mxu0
    %2837 = vdwg.mxu0
    %v2838 = vmax.f32 %v2830, 0.0
    %v2839 = vmax.f32 %v2835, 0.0
    %v2840 = vld [vmem:[%s11] sm:$0x3]
    %v2841 = vld [vmem:[#allocation3] sm:$0x1]
    %v2843 = vlaneseq
    %v2844 = vshrl.u32 %v2843, 7
    %v2845 = vsub.s32 0, %v2844
    %v2846 = vrot.slane %v2841, %v2845
    %v2849 = vsel %vm369, %v2840, 0
    %2851 = vmatprep.subr.mxu0 0.0
    %2852 = vmatpush1.msra.mxu0 %v2838
    %2853 = vmatprep.subr.mxu0 0.0
    %2854 = vmatpush1.msra.mxu0 %v2839
    %2855 = vmatprep.subr.mxu0 0.0
    %2856 = vmatpush1.msra.mxu0 0.0
    %2857 = vmatprep.subr.mxu0 0.0
    %2858 = vmatpush1.msra.mxu0 0.0
    %2859 = vmatprep.subr.mxu0 0.0
    %2860 = vmatpush1.msra.mxu0 0.0
    %2861 = vmatprep.subr.mxu0 0.0
    %2862 = vmatpush1.msra.mxu0 0.0
    %2863 = vmatprep.subr.mxu0 0.0
    %2864 = vmatpush1.msra.mxu0 0.0
    %2865 = vmatprep.subr.mxu0 0.0
    %2866 = vmatpush1.msra.mxu0 0.0
    %2867 = vmatprep.subr.mxu0 0.0
    %2868 = vmatpush1.msra.mxu0 0.0
    %2869 = vmatprep.subr.mxu0 0.0
    %2870 = vmatpush1.msra.mxu0 0.0
    %2871 = vmatprep.subr.mxu0 0.0
    %2872 = vmatpush1.msra.mxu0 0.0
    %2873 = vmatprep.subr.mxu0 0.0
    %2874 = vmatpush1.msra.mxu0 0.0
    %2875 = vmatprep.subr.mxu0 0.0
    %2876 = vmatpush1.msra.mxu0 0.0
    %2877 = vmatprep.subr.mxu0 0.0
    %2878 = vmatpush1.msra.mxu0 0.0
    %2879 = vmatprep.subr.mxu0 0.0
    %2880 = vmatpush1.msra.mxu0 0.0
    %2881 = vmatprep.subr.mxu0 0.0
    %2882 = vmatpush1.msra.mxu0 0.0
    %2883 = vmatprep.subr.mxu0 0.0
    %2884 = vmatpush1.msra.mxu0 0.0
    %2885 = vmatprep.subr.mxu0 0.0
    %2886 = vmatpush1.msra.mxu0 0.0
    %2887 = vmatprep.subr.mxu0 0.0
    %2888 = vmatpush1.msra.mxu0 0.0
    %2889 = vmatprep.subr.mxu0 0.0
    %2890 = vmatpush1.msra.mxu0 0.0
    %2891 = vmatprep.subr.mxu0 0.0
    %2892 = vmatpush1.msra.mxu0 0.0
    %2893 = vmatprep.subr.mxu0 0.0
    %2894 = vmatpush1.msra.mxu0 0.0
    %2895 = vmatprep.subr.mxu0 0.0
    %2896 = vmatpush1.msra.mxu0 0.0
    %2897 = vmatprep.subr.mxu0 0.0
    %2898 = vmatpush1.msra.mxu0 0.0
    %2899 = vmatprep.subr.mxu0 0.0
    %2900 = vmatpush1.msra.mxu0 0.0
    %2901 = vmatprep.subr.mxu0 0.0
    %2902 = vmatpush1.msra.mxu0 0.0
    %2903 = vmatprep.subr.mxu0 0.0
    %2904 = vmatpush1.msra.mxu0 0.0
    %2905 = vmatprep.subr.mxu0 0.0
    %2906 = vmatpush1.msra.mxu0 0.0
    %2907 = vmatprep.subr.mxu0 0.0
    %2908 = vmatpush1.msra.mxu0 0.0
    %2909 = vmatprep.subr.mxu0 0.0
    %2910 = vmatpush1.msra.mxu0 0.0
    %2911 = vmatprep.subr.mxu0 0.0
    %2912 = vmatpush1.msra.mxu0 0.0
    %2913 = vmatprep.subr.mxu0 0.0
    %2914 = vmatpush1.msra.mxu0 0.0
    %2915 = vmatprep.mubr.f32.mxu0 0.0
    %2916 = vmatmul.mubr.f32.gmra.mrb[0].mxu0 %v2849
    %v2917 = vpop.f32.mrb[0].mxu0
    %v2918 = vadd.f32 %v2846, %v2917
    %v2919 = vpop.f32.mrb[0].mxu0
    %2920 = vdwg.mxu0
    %vm2921 = vcmask 1024
    %2922 = vst.msk [vmem:[%s13] sm:$0x3] %vm2921, %v2918
    // Predicated region
    $region62: #{tpu_custom_call.1} parent=1 // pred_check
      _
    $region63: #{tpu_custom_call.1} parent=1 // pred_check_branch
      %2924 = sbr.rel (0) target = $region65
    $region64: #{tpu_custom_call.1} parent=1 // pred_region
      _
    $region65: #{tpu_custom_call.1} parent=1 // pred_fallthru
      _
    // Predicated region
    $region66: #{tpu_custom_call.1} parent=1 // pred_check
      _
    $region67: #{tpu_custom_call.1} parent=1 // pred_check_branch
      %2926 = sbr.rel (0) target = $region69
    $region68: #{tpu_custom_call.1} parent=1 // pred_region
      _
    $region69: #{tpu_custom_call.1} parent=1 // pred_fallthru
      _
    %2927 = vsyncpa [#allocation5], 1
    %2928 = vsyncpa [#allocation7], 1

</llo_original>
